<compile_context>
chip_gen: v5e
topology: v5e:2x2
jax: 0.10.0
libtpu: 0.0.40
codegen_flags: <defaults>
</compile_context>

<pallas_src>
import jax
import jax.numpy as jnp
from jax.experimental import pallas as pl
from jax.experimental.pallas import tpu as pltpu

BN_EPS = 1e-5
ROW_PAD = 8            # sublane padding for the transposed final layer / output block
DEFAULT_TILE_B = 1024  # batch tile upper bound (multiple of 16)


def _round_up(x, m):
    return ((x + m - 1) // m) * m


def _vmem_cap_bytes():
    # Generation-aware cap: ~75% of physical VMEM (v7x: 64 MiB, v5e/v6e: 128 MiB),
    # never above 100 MiB.  Falls back to a v7x-safe 48 MiB if the query fails.
    try:
        cap = pltpu.get_tpu_info().vmem_capacity_bytes
        return int(min(0.75 * cap, 100 << 20))
    except Exception:
        return 48 << 20


def _mlp_head_kernel(x_ref, w1_ref, b1_ref, w2_ref, b2_ref, w3t_ref, b3_ref, out_ref):
    # f32 x tile is cast to bf16 on the VPU here instead of in a wrapper-side
    # XLA op (which would cost an extra full HBM round trip of x).
    x = x_ref[...].astype(jnp.bfloat16)

    # Layer 1: Linear (eval-mode BN folded into w1/b1) + ReLU.  Dropout = identity.
    h = jnp.dot(x, w1_ref[...], preferred_element_type=jnp.float32)
    h = jnp.maximum(h + b1_ref[...], 0.0)

    # Layer 2: Linear (BN folded into w2/b2) + ReLU.  Dropout = identity.
    h = jnp.dot(h.astype(jnp.bfloat16), w2_ref[...], preferred_element_type=jnp.float32)
    h = jnp.maximum(h + b2_ref[...], 0.0)

    # Output layer, transposed: (ROW_PAD, 256) . (tile_b, 256)^T -> (ROW_PAD, tile_b).
    # Row 0 is the real logit; rows 1..7 are zero padding (sigmoid(0)=0.5, discarded).
    logits = jax.lax.dot_general(
        w3t_ref[...], h.astype(jnp.bfloat16),
        dimension_numbers=(((1,), (1,)), ((), ())),
        preferred_element_type=jnp.float32,
    )
    out_ref[...] = jax.nn.sigmoid(logits + b3_ref[...])


def _fold_bn(w, b, g, be, m, v, eps=BN_EPS):
    """Fold eval-mode BatchNorm1d into the preceding Linear (one-time constant fold)."""
    scale = g * jax.lax.rsqrt(v + eps)          # (1, N)
    return w * scale, (b - m) * scale + be      # (D, N), (1, N)


def prepare_params(p):
    """BN->Linear fusion, bf16 matmul operands, final layer stored transposed."""
    w1, b1 = _fold_bn(p["w1"], p["b1"], p["g1"], p["be1"], p["m1"], p["v1"])
    w2, b2 = _fold_bn(p["w2"], p["b2"], p["g2"], p["be2"], p["m2"], p["v2"])
    h2 = p["w3"].shape[0]
    # Final Linear(256, 1) stored transposed and sublane-padded to (ROW_PAD, 256).
    w3t = jnp.zeros((ROW_PAD, h2), jnp.float32).at[0, :].set(p["w3"][:, 0])
    b3 = jnp.zeros((ROW_PAD, 1), jnp.float32).at[0, 0].set(p["b3"][0, 0])
    return {
        "w1": w1.astype(jnp.bfloat16), "b1": b1.astype(jnp.float32),
        "w2": w2.astype(jnp.bfloat16), "b2": b2.astype(jnp.float32),
        "w3t": w3t.astype(jnp.bfloat16), "b3": b3.astype(jnp.float32),
    }


def resnet_binary_classifier_forward(x, fused, tile_b_max=DEFAULT_TILE_B):
    """x: [B, D] float32 embeddings.  fused: prepare_params() output.
    Returns sigmoid probabilities [B, 1] (f32)."""
    B, D = x.shape
    h1 = fused["w1"].shape[1]
    h2 = fused["w2"].shape[1]

    # Batch tile: multiple of 16; aim for >= 2 grid steps so ("parallel",)
    # engages both v7x TensorCores (no effect on single-TC v5e/v6e).
    tile_b = max(16, min(tile_b_max, _round_up(pl.cdiv(B, 2), 16)))
    num_tiles = pl.cdiv(B, tile_b)

    def resident(shape):
        # Constant index_map -> block is DMA'd once and stays VMEM-resident.
        return pl.BlockSpec(shape, lambda i: (0, 0))

    in_specs = [
        pl.BlockSpec((tile_b, D), lambda i: (i, 0)),   # x: f32, tiled over batch
        resident((D, h1)), resident((1, h1)),
        resident((h1, h2)), resident((1, h2)),
        resident((ROW_PAD, h2)), resident((ROW_PAD, 1)),
    ]
    out_specs = pl.BlockSpec((ROW_PAD, tile_b), lambda i: (i, 0))

    # Explicit VMEM budget: streamed tiles x 2 buffers, weights x 2 buffers
    # (default double-buffering even with constant index_map), in-kernel
    # intermediates (f32 h + bf16 casts), +25% headroom, generation-aware cap.
    x_buf = 2 * tile_b * D * 4
    out_buf = 2 * ROW_PAD * tile_b * 4
    w_buf = 2 * 2 * (D * h1 + h1 * h2 + ROW_PAD * h2)        # bf16 weights
    b_buf = 2 * 4 * (h1 + h2 + ROW_PAD)                      # f32 biases
    inter = tile_b * (4 * (h1 + h2) + 2 * (D + h1 + h2))
    vmem_bytes = int(1.25 * (x_buf + out_buf + w_buf + b_buf + inter))
    vmem_bytes = min(max(vmem_bytes, 8 << 20), _vmem_cap_bytes())

    out = pl.pallas_call(
        _mlp_head_kernel,
        out_shape=jax.ShapeDtypeStruct((num_tiles * ROW_PAD, tile_b), jnp.float32),
        grid=(num_tiles,),
        in_specs=in_specs,
        out_specs=out_specs,
        compiler_params=pltpu.CompilerParams(
            dimension_semantics=("parallel",),
            vmem_limit_bytes=vmem_bytes,
        ),
    )(x, fused["w1"], fused["b1"], fused["w2"], fused["b2"], fused["w3t"], fused["b3"])

    # Row 0 of each (ROW_PAD, tile_b) block holds the probabilities for that tile;
    # ragged-tail garbage columns (rows of x past B) are sliced away here.
    probs = out.reshape(num_tiles, ROW_PAD, tile_b)[:, 0, :].reshape(num_tiles * tile_b)
    return probs[:B].reshape(B, 1)


def init_params(key, input_dim, hidden_dims=(512, 256)):
    """Deterministic init mimicking PyTorch Linear (uniform +/- 1/sqrt(fan_in))
    and BatchNorm1d affine params / running stats."""
    params = {}
    dims = [input_dim, *hidden_dims, 1]
    keys = jax.random.split(key, 16)
    ki = 0

    def linear(kw, kb, fan_in, fan_out):
        bound = 1.0 / jnp.sqrt(fan_in)
        w = jax.random.uniform(kw, (fan_in, fan_out), jnp.float32, -bound, bound)
        b = jax.random.uniform(kb, (1, fan_out), jnp.float32, -bound, bound)
        return w, b

    # Layer 1: Linear(D, 512) + BN(512)
    params["w1"], params["b1"] = linear(keys[ki], keys[ki + 1], dims[0], dims[1]); ki += 2
    params["g1"] = 1.0 + 0.1 * jax.random.normal(keys[ki], (1, dims[1]), jnp.float32); ki += 1
    params["be1"] = 0.1 * jax.random.normal(keys[ki], (1, dims[1]), jnp.float32); ki += 1
    params["m1"] = 0.05 * jax.random.normal(keys[ki], (1, dims[1]), jnp.float32); ki += 1
    params["v1"] = 1.0 + 0.1 * jax.random.uniform(keys[ki], (1, dims[1]), jnp.float32); ki += 1

    # Layer 2: Linear(512, 256) + BN(256)
    params["w2"], params["b2"] = linear(keys[ki], keys[ki + 1], dims[1], dims[2]); ki += 2
    params["g2"] = 1.0 + 0.1 * jax.random.normal(keys[ki], (1, dims[2]), jnp.float32); ki += 1
    params["be2"] = 0.1 * jax.random.normal(keys[ki], (1, dims[2]), jnp.float32); ki += 1
    params["m2"] = 0.05 * jax.random.normal(keys[ki], (1, dims[2]), jnp.float32); ki += 1
    params["v2"] = 1.0 + 0.1 * jax.random.uniform(keys[ki], (1, dims[2]), jnp.float32); ki += 1

    # Output: Linear(256, 1)
    params["w3"], params["b3"] = linear(keys[ki], keys[ki + 1], dims[2], dims[3]); ki += 2
    return params


def reference_forward(x, p):
    """Pure-JAX f32 reference (eval-mode semantics) for correctness checking."""
    h = x @ p["w1"] + p["b1"]
    h = (h - p["m1"]) * (p["g1"] / jnp.sqrt(p["v1"] + BN_EPS)) + p["be1"]
    h = jnp.maximum(h, 0.0)
    h = h @ p["w2"] + p["b2"]
    h = (h - p["m2"]) * (p["g2"] / jnp.sqrt(p["v2"] + BN_EPS)) + p["be2"]
    h = jnp.maximum(h, 0.0)
    logits = h @ p["w3"] + p["b3"]
    return jax.nn.sigmoid(logits)


if __name__ == "__main__":
    key = jax.random.PRNGKey(0)
    kx, kp = jax.random.split(key)

    batch = 16
    input_dim = 2048   # resnet50 embedding dim implied by the module

    x = jax.random.normal(kx, (batch, input_dim), jnp.float32)
    params = init_params(kp, input_dim)
    fused = prepare_params(params)

    out = resnet_binary_classifier_forward(x, fused)
    out = jax.block_until_ready(out)

    ref = reference_forward(x, params)
    assert out.shape == (batch, 1)
    assert bool(jnp.all(jnp.isfinite(out)))
    # bf16 matmul operands (f32 accumulation) -> loosened tolerance vs f32 reference.
    assert jnp.allclose(out, ref, atol=2e-2, rtol=2e-2), "mismatch vs reference"

    print("KERNEL_OK")
</pallas_src>

<mosaic_0001>
module attributes {stable_mosaic.version = 11 : i64} {
  func.func @_mlp_head_kernel(%arg0: i32, %arg1: memref<16x2048xf32, #tpu.memory_space<vmem>>, %arg2: memref<2048x512xbf16, #tpu.memory_space<vmem>>, %arg3: memref<1x512xf32, #tpu.memory_space<vmem>>, %arg4: memref<512x256xbf16, #tpu.memory_space<vmem>>, %arg5: memref<1x256xf32, #tpu.memory_space<vmem>>, %arg6: memref<8x256xbf16, #tpu.memory_space<vmem>>, %arg7: memref<8x1xf32, #tpu.memory_space<vmem>>, %arg8: memref<8x16xf32, #tpu.memory_space<vmem>>) attributes {dimension_semantics = [#tpu.dimension_semantics<parallel>], iteration_bounds = array<i64: 1>, scalar_prefetch = 0 : i64, scratch_operands = 0 : i64, tpu.core_type = #tpu.core_type<tc>, window_params = [{transform_indices = @transform_0, window_bounds = array<i64: 16, 2048>}, {pipeline_mode = #tpu.pipeline_mode<synchronous>, transform_indices = @transform_1, window_bounds = array<i64: 2048, 512>}, {pipeline_mode = #tpu.pipeline_mode<synchronous>, transform_indices = @transform_2, window_bounds = array<i64: 1, 512>}, {pipeline_mode = #tpu.pipeline_mode<synchronous>, transform_indices = @transform_3, window_bounds = array<i64: 512, 256>}, {pipeline_mode = #tpu.pipeline_mode<synchronous>, transform_indices = @transform_4, window_bounds = array<i64: 1, 256>}, {pipeline_mode = #tpu.pipeline_mode<synchronous>, transform_indices = @transform_5, window_bounds = array<i64: 8, 256>}, {pipeline_mode = #tpu.pipeline_mode<synchronous>, transform_indices = @transform_6, window_bounds = array<i64: 8, 1>}, {transform_indices = @transform_7, window_bounds = array<i64: 8, 16>}]} {
    %c0 = arith.constant 0 : index
    %c0_0 = arith.constant 0 : index
    %0 = vector.load %arg1[%c0, %c0_0] : memref<16x2048xf32, #tpu.memory_space<vmem>>, vector<16x2048xf32>
    %1 = arith.truncf %0 : vector<16x2048xf32> to vector<16x2048xbf16>
    %c0_1 = arith.constant 0 : index
    %c0_2 = arith.constant 0 : index
    %2 = vector.load %arg2[%c0_1, %c0_2] : memref<2048x512xbf16, #tpu.memory_space<vmem>>, vector<2048x512xbf16>
    %cst = arith.constant dense<0.000000e+00> : vector<16x512xf32>
    %3 = tpu.matmul %1, %2, %cst {dimension_numbers = #tpu.dot_dimension_numbers<[1], [0], [0], [1], [0, 0, 1, 1], [], []>} : vector<16x2048xbf16>, vector<2048x512xbf16>, vector<16x512xf32> -> vector<16x512xf32>
    %c0_3 = arith.constant 0 : index
    %c0_4 = arith.constant 0 : index
    %4 = vector.load %arg3[%c0_3, %c0_4] : memref<1x512xf32, #tpu.memory_space<vmem>>, vector<1x512xf32>
    %5 = vector.broadcast %4 : vector<1x512xf32> to vector<16x512xf32>
    %6 = arith.addf %3, %5 : vector<16x512xf32>
    %cst_5 = arith.constant 0.000000e+00 : f32
    %7 = vector.broadcast %cst_5 : f32 to vector<16x512xf32>
    %8 = arith.maximumf %6, %7 : vector<16x512xf32>
    %9 = arith.truncf %8 : vector<16x512xf32> to vector<16x512xbf16>
    %c0_6 = arith.constant 0 : index
    %c0_7 = arith.constant 0 : index
    %10 = vector.load %arg4[%c0_6, %c0_7] : memref<512x256xbf16, #tpu.memory_space<vmem>>, vector<512x256xbf16>
    %cst_8 = arith.constant dense<0.000000e+00> : vector<16x256xf32>
    %11 = tpu.matmul %9, %10, %cst_8 {dimension_numbers = #tpu.dot_dimension_numbers<[1], [0], [0], [1], [0, 0, 1, 1], [], []>} : vector<16x512xbf16>, vector<512x256xbf16>, vector<16x256xf32> -> vector<16x256xf32>
    %c0_9 = arith.constant 0 : index
    %c0_10 = arith.constant 0 : index
    %12 = vector.load %arg5[%c0_9, %c0_10] : memref<1x256xf32, #tpu.memory_space<vmem>>, vector<1x256xf32>
    %13 = vector.broadcast %12 : vector<1x256xf32> to vector<16x256xf32>
    %14 = arith.addf %11, %13 : vector<16x256xf32>
    %cst_11 = arith.constant 0.000000e+00 : f32
    %15 = vector.broadcast %cst_11 : f32 to vector<16x256xf32>
    %16 = arith.maximumf %14, %15 : vector<16x256xf32>
    %c0_12 = arith.constant 0 : index
    %c0_13 = arith.constant 0 : index
    %17 = vector.load %arg6[%c0_12, %c0_13] : memref<8x256xbf16, #tpu.memory_space<vmem>>, vector<8x256xbf16>
    %18 = arith.truncf %16 : vector<16x256xf32> to vector<16x256xbf16>
    %cst_14 = arith.constant dense<0.000000e+00> : vector<8x16xf32>
    %19 = tpu.matmul %17, %18, %cst_14 {dimension_numbers = #tpu.dot_dimension_numbers<[1], [1], [0], [0], [0, 0, 1, 0], [], []>} : vector<8x256xbf16>, vector<16x256xbf16>, vector<8x16xf32> -> vector<8x16xf32>
    %c0_15 = arith.constant 0 : index
    %c0_16 = arith.constant 0 : index
    %20 = vector.load %arg7[%c0_15, %c0_16] : memref<8x1xf32, #tpu.memory_space<vmem>>, vector<8x1xf32>
    %21 = vector.broadcast %20 : vector<8x1xf32> to vector<8x16xf32>
    %22 = arith.addf %19, %21 : vector<8x16xf32>
    %23 = arith.negf %22 : vector<8x16xf32>
    %24 = math.exp %23 : vector<8x16xf32>
    %cst_17 = arith.constant 1.000000e+00 : f32
    %25 = vector.broadcast %cst_17 : f32 to vector<8x16xf32>
    %26 = arith.addf %25, %24 : vector<8x16xf32>
    %27 = arith.divf %25, %26 : vector<8x16xf32>
    %c0_18 = arith.constant 0 : index
    %c0_19 = arith.constant 0 : index
    %28 = vector.load %arg8[%c0_18, %c0_19] : memref<8x16xf32, #tpu.memory_space<vmem>>, vector<8x16xf32>
    tpu.vector_store %arg8[%c0_18, %c0_19], %27 {strides = array<i32>} : memref<8x16xf32, #tpu.memory_space<vmem>>, vector<8x16xf32>,
    return
  }
  func.func @transform_0(%arg0: i32) -> (i32, i32) {
    %c0_i32 = arith.constant 0 : i32
    %c0_i32_0 = arith.constant 0 : i32
    return %arg0, %c0_i32 : i32, i32
  }
  func.func @transform_1(%arg0: i32) -> (i32, i32) {
    %c0_i32 = arith.constant 0 : i32
    %c0_i32_0 = arith.constant 0 : i32
    %c0_i32_1 = arith.constant 0 : i32
    return %c0_i32, %c0_i32_0 : i32, i32
  }
  func.func @transform_2(%arg0: i32) -> (i32, i32) {
    %c0_i32 = arith.constant 0 : i32
    %c0_i32_0 = arith.constant 0 : i32
    %c0_i32_1 = arith.constant 0 : i32
    return %c0_i32, %c0_i32_0 : i32, i32
  }
  func.func @transform_3(%arg0: i32) -> (i32, i32) {
    %c0_i32 = arith.constant 0 : i32
    %c0_i32_0 = arith.constant 0 : i32
    %c0_i32_1 = arith.constant 0 : i32
    return %c0_i32, %c0_i32_0 : i32, i32
  }
  func.func @transform_4(%arg0: i32) -> (i32, i32) {
    %c0_i32 = arith.constant 0 : i32
    %c0_i32_0 = arith.constant 0 : i32
    %c0_i32_1 = arith.constant 0 : i32
    return %c0_i32, %c0_i32_0 : i32, i32
  }
  func.func @transform_5(%arg0: i32) -> (i32, i32) {
    %c0_i32 = arith.constant 0 : i32
    %c0_i32_0 = arith.constant 0 : i32
    %c0_i32_1 = arith.constant 0 : i32
    return %c0_i32, %c0_i32_0 : i32, i32
  }
  func.func @transform_6(%arg0: i32) -> (i32, i32) {
    %c0_i32 = arith.constant 0 : i32
    %c0_i32_0 = arith.constant 0 : i32
    %c0_i32_1 = arith.constant 0 : i32
    return %c0_i32, %c0_i32_0 : i32, i32
  }
  func.func @transform_7(%arg0: i32) -> (i32, i32) {
    %c0_i32 = arith.constant 0 : i32
    %c0_i32_0 = arith.constant 0 : i32
    return %arg0, %c0_i32 : i32, i32
  }
}

</mosaic_0001>

<llo_original>
// kernel: tpu_custom_call.1
$region0: #{tpu_custom_call.1}
  #allocation0 [shape = 'u32[]', space=smem, size = 0x4, offset = 0x4, fixed_abs, tag = 'smem constant byte address 0x4 - core index']
  #allocation1 [shape = 'u32[72,128]{1,0:T(1,128)}', space=vmem, size = 0x9000, scoped, tag = 'internal scratch']
  %s0 = inlined_call_operand.hbm [shape: f32[16,2048], index: 0, kind: input, shape index: {}]
  %s1 = inlined_call_operand.hbm [shape: bf16[2048,512], index: 1, kind: input, shape index: {}]
  %s2 = inlined_call_operand.hbm [shape: f32[1,512], index: 2, kind: input, shape index: {}]
  %s3 = inlined_call_operand.hbm [shape: bf16[512,256], index: 3, kind: input, shape index: {}]
  %s4 = inlined_call_operand.hbm [shape: f32[1,256], index: 4, kind: input, shape index: {}]
  %s5 = inlined_call_operand.hbm [shape: bf16[8,256], index: 5, kind: input, shape index: {}]
  %s6 = inlined_call_operand.vmem [shape: f32[8,1], index: 6, kind: input, shape index: {}]
  %s7 = inlined_call_operand.hbm [shape: f32[8,16], index: 7, kind: output, shape index: {}]
  %s8 = sld [smem:[#allocation0]]
  $region62: #{tpu_custom_call.1} parent=0
    _
  %s10 = ssub.s32 1, %s8
  %s11 = scalar_select 0, %s10, %s8
  $region1: #{tpu_custom_call.1} parent=0
    #allocation2 [shape = 'u8[131072]{0}', space=vmem, size = 0x20000, scoped, tag = 'input window, operand 0, single buffered']
    #allocation3 [shape = 's32[1]{0}', space=sflag, size = 0x4, scoped, tag = 'scoped memory for tpu_custom_call.1']
    #allocation4 [shape = 's32[1]{0}', space=sflag, size = 0x4, scoped, tag = 'scoped memory for tpu_custom_call.1']
    #allocation5 [shape = 'u8[2097152]{0}', space=vmem, size = 0x200000, scoped, tag = 'input window, operand 1, single buffered']
    #allocation6 [shape = 's32[1]{0}', space=sflag, size = 0x4, scoped, tag = 'scoped memory for tpu_custom_call.1']
    #allocation7 [shape = 'u8[2048]{0}', space=vmem, size = 0x800, scoped, tag = 'input window, operand 2, single buffered']
    #allocation8 [shape = 'u8[262144]{0}', space=vmem, size = 0x40000, scoped, tag = 'input window, operand 3, single buffered']
    #allocation9 [shape = 's32[1]{0}', space=sflag, size = 0x4, scoped, tag = 'scoped memory for tpu_custom_call.1']
    #allocation10 [shape = 'u8[1024]{0}', space=vmem, size = 0x400, scoped, tag = 'input window, operand 4, single buffered']
    #allocation11 [shape = 'u8[4096]{0}', space=vmem, size = 0x1000, scoped, tag = 'input window, operand 5, single buffered']
    #allocation12 [shape = 's32[1]{0}', space=sflag, size = 0x4, scoped, tag = 'scoped memory for tpu_custom_call.1']
    #allocation13 [shape = 'u8[4096]{0}', space=vmem, size = 0x1000, scoped, tag = 'output window, operand 0, single buffered']
    %12 = vsyncpa [#allocation3], 0
    %13 = vsyncpa [#allocation6], 0
    %14 = vsyncpa [#allocation9], 0
    %15 = vsyncpa [#allocation12], 0
    %16 = vsyncpa [#allocation4], 0
    // Predicated region
    $region2: #{tpu_custom_call.1} parent=1 // pred_check
      _
    $region3: #{tpu_custom_call.1} parent=1 // pred_check_branch
      %18 = sbr.rel (0) target = $region5
    $region4: #{tpu_custom_call.1} parent=1 // pred_region
      %20 = vsyncadd [#allocation3], 0
      %s21 = sshll.u32 %s0, 4
      %s22 = int_to_ptr.hbm [resolvable:$true] %s21
      %s23 = sshll.u32 [#allocation2], 4
      %s24 = int_to_ptr.vmem [resolvable:$true] %s23
      %29 = dma.hbm_to_vmem [thread:$0]  %s22, 4096, %s24, [#allocation3], 2048, 2048, 128
    $region5: #{tpu_custom_call.1} parent=1 // pred_fallthru
      _
    // Predicated region
    $region6: #{tpu_custom_call.1} parent=1 // pred_check
      _
    $region7: #{tpu_custom_call.1} parent=1 // pred_check_branch
      %31 = sbr.rel (0) target = $region9
    $region8: #{tpu_custom_call.1} parent=1 // pred_region
      %33 = vsyncadd [#allocation6], 0
      %s34 = sshll.u32 %s1, 4
      %s35 = int_to_ptr.hbm [resolvable:$true] %s34
      %s36 = sshll.u32 [#allocation5], 4
      %s37 = int_to_ptr.vmem [resolvable:$true] %s36
      %42 = dma.hbm_to_vmem [thread:$0]  %s35, 65536, %s37, [#allocation6], 256, 256, 16
    $region9: #{tpu_custom_call.1} parent=1 // pred_fallthru
      _
    // Predicated region
    $region10: #{tpu_custom_call.1} parent=1 // pred_check
      _
    $region11: #{tpu_custom_call.1} parent=1 // pred_check_branch
      %44 = sbr.rel (0) target = $region13
    $region12: #{tpu_custom_call.1} parent=1 // pred_region
      %46 = vsyncadd [#allocation6], 0
      %s48 = sshll.u32 %s2, 4
      %s49 = int_to_ptr.hbm [resolvable:$true] %s48
      %s50 = sshll.u32 [#allocation7], 4
      %s51 = int_to_ptr.vmem [resolvable:$true] %s50
      %53 = dma.hbm_to_vmem [thread:$0]  %s49, 64, %s51, [#allocation6]
    $region13: #{tpu_custom_call.1} parent=1 // pred_fallthru
      _
    // Predicated region
    $region14: #{tpu_custom_call.1} parent=1 // pred_check
      _
    $region15: #{tpu_custom_call.1} parent=1 // pred_check_branch
      %55 = sbr.rel (0) target = $region17
    $region16: #{tpu_custom_call.1} parent=1 // pred_region
      %57 = vsyncadd [#allocation9], 0
      %s58 = sshll.u32 %s3, 4
      %s59 = int_to_ptr.hbm [resolvable:$true] %s58
      %s60 = sshll.u32 [#allocation8], 4
      %s61 = int_to_ptr.vmem [resolvable:$true] %s60
      %66 = dma.hbm_to_vmem [thread:$0]  %s59, 8192, %s61, [#allocation9], 128, 128, 8
    $region17: #{tpu_custom_call.1} parent=1 // pred_fallthru
      _
    // Predicated region
    $region18: #{tpu_custom_call.1} parent=1 // pred_check
      _
    $region19: #{tpu_custom_call.1} parent=1 // pred_check_branch
      %68 = sbr.rel (0) target = $region21
    $region20: #{tpu_custom_call.1} parent=1 // pred_region
      %70 = vsyncadd [#allocation9], 0
      %s72 = sshll.u32 %s4, 4
      %s73 = int_to_ptr.hbm [resolvable:$true] %s72
      %s74 = sshll.u32 [#allocation10], 4
      %s75 = int_to_ptr.vmem [resolvable:$true] %s74
      %77 = dma.hbm_to_vmem [thread:$0]  %s73, 32, %s75, [#allocation9]
    $region21: #{tpu_custom_call.1} parent=1 // pred_fallthru
      _
    // Predicated region
    $region22: #{tpu_custom_call.1} parent=1 // pred_check
      _
    $region23: #{tpu_custom_call.1} parent=1 // pred_check_branch
      %79 = sbr.rel (0) target = $region25
    $region24: #{tpu_custom_call.1} parent=1 // pred_region
      %81 = vsyncadd [#allocation12], 0
      %s83 = sshll.u32 %s5, 4
      %s84 = int_to_ptr.hbm [resolvable:$true] %s83
      %s85 = sshll.u32 [#allocation11], 4
      %s86 = int_to_ptr.vmem [resolvable:$true] %s85
      %88 = dma.hbm_to_vmem [thread:$0]  %s84, 128, %s86, [#allocation12]
    $region25: #{tpu_custom_call.1} parent=1 // pred_fallthru
      _
    // Predicated region
    $region26: #{tpu_custom_call.1} parent=1 // pred_check
      _
    $region27: #{tpu_custom_call.1} parent=1 // pred_check_branch
      %90 = sbr.rel (0) target = $region29
    $region28: #{tpu_custom_call.1} parent=1 // pred_region
      _
    $region29: #{tpu_custom_call.1} parent=1 // pred_fallthru
      _
    // Predicated region
    $region30: #{tpu_custom_call.1} parent=1 // pred_check
      _
    $region31: #{tpu_custom_call.1} parent=1 // pred_check_branch
      %92 = sbr.rel (0) target = $region33
    $region32: #{tpu_custom_call.1} parent=1 // pred_region
      %94 = dma.done [#allocation3], 4096
    $region33: #{tpu_custom_call.1} parent=1 // pred_fallthru
      _
    // Predicated region
    $region34: #{tpu_custom_call.1} parent=1 // pred_check
      _
    $region35: #{tpu_custom_call.1} parent=1 // pred_check_branch
      %96 = sbr.rel (0) target = $region37
    $region36: #{tpu_custom_call.1} parent=1 // pred_region
      %98 = dma.done [#allocation6], 65536
    $region37: #{tpu_custom_call.1} parent=1 // pred_fallthru
      _
    // Predicated region
    $region38: #{tpu_custom_call.1} parent=1 // pred_check
      _
    $region39: #{tpu_custom_call.1} parent=1 // pred_check_branch
      %100 = sbr.rel (0) target = $region41
    $region40: #{tpu_custom_call.1} parent=1 // pred_region
      %102 = dma.done [#allocation6], 64
    $region41: #{tpu_custom_call.1} parent=1 // pred_fallthru
      _
    // Predicated region
    $region42: #{tpu_custom_call.1} parent=1 // pred_check
      _
    $region43: #{tpu_custom_call.1} parent=1 // pred_check_branch
      %104 = sbr.rel (0) target = $region45
    $region44: #{tpu_custom_call.1} parent=1 // pred_region
      %106 = dma.done [#allocation9], 8192
    $region45: #{tpu_custom_call.1} parent=1 // pred_fallthru
      _
    // Predicated region
    $region46: #{tpu_custom_call.1} parent=1 // pred_check
      _
    $region47: #{tpu_custom_call.1} parent=1 // pred_check_branch
      %108 = sbr.rel (0) target = $region49
    $region48: #{tpu_custom_call.1} parent=1 // pred_region
      %110 = dma.done [#allocation9], 32
    $region49: #{tpu_custom_call.1} parent=1 // pred_fallthru
      _
    // Predicated region
    $region50: #{tpu_custom_call.1} parent=1 // pred_check
      _
    $region51: #{tpu_custom_call.1} parent=1 // pred_check_branch
      %112 = sbr.rel (0) target = $region53
    $region52: #{tpu_custom_call.1} parent=1 // pred_region
      %114 = dma.done [#allocation12], 128
    $region53: #{tpu_custom_call.1} parent=1 // pred_fallthru
      _
    %v116 = vld [vmem:[#allocation2] sm:$0xff]
    %v117 = vld [vmem:[#allocation2 + $0x8] sm:$0xff]
    %v118 = vld [vmem:[#allocation2 + $0x10] sm:$0xff]
    %v119 = vld [vmem:[#allocation2 + $0x18] sm:$0xff]
    %v120 = vld [vmem:[#allocation2 + $0x20] sm:$0xff]
    %v121 = vld [vmem:[#allocation2 + $0x28] sm:$0xff]
    %v122 = vld [vmem:[#allocation2 + $0x30] sm:$0xff]
    %v123 = vld [vmem:[#allocation2 + $0x38] sm:$0xff]
    %v124 = vld [vmem:[#allocation2 + $0x40] sm:$0xff]
    %v125 = vld [vmem:[#allocation2 + $0x48] sm:$0xff]
    %v126 = vld [vmem:[#allocation2 + $0x50] sm:$0xff]
    %v127 = vld [vmem:[#allocation2 + $0x58] sm:$0xff]
    %v128 = vld [vmem:[#allocation2 + $0x60] sm:$0xff]
    %v129 = vld [vmem:[#allocation2 + $0x68] sm:$0xff]
    %v130 = vld [vmem:[#allocation2 + $0x70] sm:$0xff]
    %v131 = vld [vmem:[#allocation2 + $0x78] sm:$0xff]
    %v132 = vld [vmem:[#allocation2 + $0x80] sm:$0xff]
    %v133 = vld [vmem:[#allocation2 + $0x88] sm:$0xff]
    %v134 = vld [vmem:[#allocation2 + $0x90] sm:$0xff]
    %v135 = vld [vmem:[#allocation2 + $0x98] sm:$0xff]
    %v136 = vld [vmem:[#allocation2 + $0xa0] sm:$0xff]
    %v137 = vld [vmem:[#allocation2 + $0xa8] sm:$0xff]
    %v138 = vld [vmem:[#allocation2 + $0xb0] sm:$0xff]
    %v139 = vld [vmem:[#allocation2 + $0xb8] sm:$0xff]
    %v140 = vld [vmem:[#allocation2 + $0xc0] sm:$0xff]
    %v141 = vld [vmem:[#allocation2 + $0xc8] sm:$0xff]
    %v142 = vld [vmem:[#allocation2 + $0xd0] sm:$0xff]
    %v143 = vld [vmem:[#allocation2 + $0xd8] sm:$0xff]
    %v144 = vld [vmem:[#allocation2 + $0xe0] sm:$0xff]
    %v145 = vld [vmem:[#allocation2 + $0xe8] sm:$0xff]
    %v146 = vld [vmem:[#allocation2 + $0xf0] sm:$0xff]
    %v147 = vld [vmem:[#allocation2 + $0xf8] sm:$0xff]
    %v148 = vpack.c.bf16 %v132, %v116
    %v149 = vpack.c.bf16 %v133, %v117
    %v150 = vpack.c.bf16 %v134, %v118
    %v151 = vpack.c.bf16 %v135, %v119
    %v152 = vpack.c.bf16 %v136, %v120
    %v153 = vpack.c.bf16 %v137, %v121
    %v154 = vpack.c.bf16 %v138, %v122
    %v155 = vpack.c.bf16 %v139, %v123
    %v156 = vpack.c.bf16 %v140, %v124
    %v157 = vpack.c.bf16 %v141, %v125
    %v158 = vpack.c.bf16 %v142, %v126
    %v159 = vpack.c.bf16 %v143, %v127
    %v160 = vpack.c.bf16 %v144, %v128
    %v161 = vpack.c.bf16 %v145, %v129
    %v162 = vpack.c.bf16 %v146, %v130
    %v163 = vpack.c.bf16 %v147, %v131
    %v164 = vld [vmem:[#allocation5] sm:$0xff]
    %v165 = vld [vmem:[#allocation5 + $0x8] sm:$0xff]
    %v166 = vld [vmem:[#allocation5 + $0x10] sm:$0xff]
    %v167 = vld [vmem:[#allocation5 + $0x18] sm:$0xff]
    %v168 = vld [vmem:[#allocation5 + $0x20] sm:$0xff]
    %v169 = vld [vmem:[#allocation5 + $0x28] sm:$0xff]
    %v170 = vld [vmem:[#allocation5 + $0x30] sm:$0xff]
    %v171 = vld [vmem:[#allocation5 + $0x38] sm:$0xff]
    %v172 = vld [vmem:[#allocation5 + $0x40] sm:$0xff]
    %v173 = vld [vmem:[#allocation5 + $0x48] sm:$0xff]
    %v174 = vld [vmem:[#allocation5 + $0x50] sm:$0xff]
    %v175 = vld [vmem:[#allocation5 + $0x58] sm:$0xff]
    %v176 = vld [vmem:[#allocation5 + $0x60] sm:$0xff]
    %v177 = vld [vmem:[#allocation5 + $0x68] sm:$0xff]
    %v178 = vld [vmem:[#allocation5 + $0x70] sm:$0xff]
    %v179 = vld [vmem:[#allocation5 + $0x78] sm:$0xff]
    %v180 = vld [vmem:[#allocation5 + $0x80] sm:$0xff]
    %v181 = vld [vmem:[#allocation5 + $0x88] sm:$0xff]
    %v182 = vld [vmem:[#allocation5 + $0x90] sm:$0xff]
    %v183 = vld [vmem:[#allocation5 + $0x98] sm:$0xff]
    %v184 = vld [vmem:[#allocation5 + $0xa0] sm:$0xff]
    %v185 = vld [vmem:[#allocation5 + $0xa8] sm:$0xff]
    %v186 = vld [vmem:[#allocation5 + $0xb0] sm:$0xff]
    %v187 = vld [vmem:[#allocation5 + $0xb8] sm:$0xff]
    %v188 = vld [vmem:[#allocation5 + $0xc0] sm:$0xff]
    %v189 = vld [vmem:[#allocation5 + $0xc8] sm:$0xff]
    %v190 = vld [vmem:[#allocation5 + $0xd0] sm:$0xff]
    %v191 = vld [vmem:[#allocation5 + $0xd8] sm:$0xff]
    %v192 = vld [vmem:[#allocation5 + $0xe0] sm:$0xff]
    %v193 = vld [vmem:[#allocation5 + $0xe8] sm:$0xff]
    %v194 = vld [vmem:[#allocation5 + $0xf0] sm:$0xff]
    %v195 = vld [vmem:[#allocation5 + $0xf8] sm:$0xff]
    %v196 = vld [vmem:[#allocation5 + $0x100] sm:$0xff]
    %v197 = vld [vmem:[#allocation5 + $0x108] sm:$0xff]
    %v198 = vld [vmem:[#allocation5 + $0x110] sm:$0xff]
    %v199 = vld [vmem:[#allocation5 + $0x118] sm:$0xff]
    %v200 = vld [vmem:[#allocation5 + $0x120] sm:$0xff]
    %v201 = vld [vmem:[#allocation5 + $0x128] sm:$0xff]
    %v202 = vld [vmem:[#allocation5 + $0x130] sm:$0xff]
    %v203 = vld [vmem:[#allocation5 + $0x138] sm:$0xff]
    %v204 = vld [vmem:[#allocation5 + $0x140] sm:$0xff]
    %v205 = vld [vmem:[#allocation5 + $0x148] sm:$0xff]
    %v206 = vld [vmem:[#allocation5 + $0x150] sm:$0xff]
    %v207 = vld [vmem:[#allocation5 + $0x158] sm:$0xff]
    %v208 = vld [vmem:[#allocation5 + $0x160] sm:$0xff]
    %v209 = vld [vmem:[#allocation5 + $0x168] sm:$0xff]
    %v210 = vld [vmem:[#allocation5 + $0x170] sm:$0xff]
    %v211 = vld [vmem:[#allocation5 + $0x178] sm:$0xff]
    %v212 = vld [vmem:[#allocation5 + $0x180] sm:$0xff]
    %v213 = vld [vmem:[#allocation5 + $0x188] sm:$0xff]
    %v214 = vld [vmem:[#allocation5 + $0x190] sm:$0xff]
    %v215 = vld [vmem:[#allocation5 + $0x198] sm:$0xff]
    %v216 = vld [vmem:[#allocation5 + $0x1a0] sm:$0xff]
    %v217 = vld [vmem:[#allocation5 + $0x1a8] sm:$0xff]
    %v218 = vld [vmem:[#allocation5 + $0x1b0] sm:$0xff]
    %v219 = vld [vmem:[#allocation5 + $0x1b8] sm:$0xff]
    %v220 = vld [vmem:[#allocation5 + $0x1c0] sm:$0xff]
    %v221 = vld [vmem:[#allocation5 + $0x1c8] sm:$0xff]
    %v222 = vld [vmem:[#allocation5 + $0x1d0] sm:$0xff]
    %v223 = vld [vmem:[#allocation5 + $0x1d8] sm:$0xff]
    %v224 = vld [vmem:[#allocation5 + $0x1e0] sm:$0xff]
    %v225 = vld [vmem:[#allocation5 + $0x1e8] sm:$0xff]
    %v226 = vld [vmem:[#allocation5 + $0x1f0] sm:$0xff]
    %v227 = vld [vmem:[#allocation5 + $0x1f8] sm:$0xff]
    %v228 = vld [vmem:[#allocation5 + $0x200] sm:$0xff]
    %v229 = vld [vmem:[#allocation5 + $0x208] sm:$0xff]
    %v230 = vld [vmem:[#allocation5 + $0x210] sm:$0xff]
    %v231 = vld [vmem:[#allocation5 + $0x218] sm:$0xff]
    %v232 = vld [vmem:[#allocation5 + $0x220] sm:$0xff]
    %v233 = vld [vmem:[#allocation5 + $0x228] sm:$0xff]
    %v234 = vld [vmem:[#allocation5 + $0x230] sm:$0xff]
    %v235 = vld [vmem:[#allocation5 + $0x238] sm:$0xff]
    %v236 = vld [vmem:[#allocation5 + $0x240] sm:$0xff]
    %v237 = vld [vmem:[#allocation5 + $0x248] sm:$0xff]
    %v238 = vld [vmem:[#allocation5 + $0x250] sm:$0xff]
    %v239 = vld [vmem:[#allocation5 + $0x258] sm:$0xff]
    %v240 = vld [vmem:[#allocation5 + $0x260] sm:$0xff]
    %v241 = vld [vmem:[#allocation5 + $0x268] sm:$0xff]
    %v242 = vld [vmem:[#allocation5 + $0x270] sm:$0xff]
    %v243 = vld [vmem:[#allocation5 + $0x278] sm:$0xff]
    %v244 = vld [vmem:[#allocation5 + $0x280] sm:$0xff]
    %v245 = vld [vmem:[#allocation5 + $0x288] sm:$0xff]
    %v246 = vld [vmem:[#allocation5 + $0x290] sm:$0xff]
    %v247 = vld [vmem:[#allocation5 + $0x298] sm:$0xff]
    %v248 = vld [vmem:[#allocation5 + $0x2a0] sm:$0xff]
    %v249 = vld [vmem:[#allocation5 + $0x2a8] sm:$0xff]
    %v250 = vld [vmem:[#allocation5 + $0x2b0] sm:$0xff]
    %v251 = vld [vmem:[#allocation5 + $0x2b8] sm:$0xff]
    %v252 = vld [vmem:[#allocation5 + $0x2c0] sm:$0xff]
    %v253 = vld [vmem:[#allocation5 + $0x2c8] sm:$0xff]
    %v254 = vld [vmem:[#allocation5 + $0x2d0] sm:$0xff]
    %v255 = vld [vmem:[#allocation5 + $0x2d8] sm:$0xff]
    %v256 = vld [vmem:[#allocation5 + $0x2e0] sm:$0xff]
    %v257 = vld [vmem:[#allocation5 + $0x2e8] sm:$0xff]
    %v258 = vld [vmem:[#allocation5 + $0x2f0] sm:$0xff]
    %v259 = vld [vmem:[#allocation5 + $0x2f8] sm:$0xff]
    %v260 = vld [vmem:[#allocation5 + $0x300] sm:$0xff]
    %v261 = vld [vmem:[#allocation5 + $0x308] sm:$0xff]
    %v262 = vld [vmem:[#allocation5 + $0x310] sm:$0xff]
    %v263 = vld [vmem:[#allocation5 + $0x318] sm:$0xff]
    %v264 = vld [vmem:[#allocation5 + $0x320] sm:$0xff]
    %v265 = vld [vmem:[#allocation5 + $0x328] sm:$0xff]
    %v266 = vld [vmem:[#allocation5 + $0x330] sm:$0xff]
    %v267 = vld [vmem:[#allocation5 + $0x338] sm:$0xff]
    %v268 = vld [vmem:[#allocation5 + $0x340] sm:$0xff]
    %v269 = vld [vmem:[#allocation5 + $0x348] sm:$0xff]
    %v270 = vld [vmem:[#allocation5 + $0x350] sm:$0xff]
    %v271 = vld [vmem:[#allocation5 + $0x358] sm:$0xff]
    %v272 = vld [vmem:[#allocation5 + $0x360] sm:$0xff]
    %v273 = vld [vmem:[#allocation5 + $0x368] sm:$0xff]
    %v274 = vld [vmem:[#allocation5 + $0x370] sm:$0xff]
    %v275 = vld [vmem:[#allocation5 + $0x378] sm:$0xff]
    %v276 = vld [vmem:[#allocation5 + $0x380] sm:$0xff]
    %v277 = vld [vmem:[#allocation5 + $0x388] sm:$0xff]
    %v278 = vld [vmem:[#allocation5 + $0x390] sm:$0xff]
    %v279 = vld [vmem:[#allocation5 + $0x398] sm:$0xff]
    %v280 = vld [vmem:[#allocation5 + $0x3a0] sm:$0xff]
    %v281 = vld [vmem:[#allocation5 + $0x3a8] sm:$0xff]
    %v282 = vld [vmem:[#allocation5 + $0x3b0] sm:$0xff]
    %v283 = vld [vmem:[#allocation5 + $0x3b8] sm:$0xff]
    %v284 = vld [vmem:[#allocation5 + $0x3c0] sm:$0xff]
    %v285 = vld [vmem:[#allocation5 + $0x3c8] sm:$0xff]
    %v286 = vld [vmem:[#allocation5 + $0x3d0] sm:$0xff]
    %v287 = vld [vmem:[#allocation5 + $0x3d8] sm:$0xff]
    %v288 = vld [vmem:[#allocation5 + $0x3e0] sm:$0xff]
    %v289 = vld [vmem:[#allocation5 + $0x3e8] sm:$0xff]
    %v290 = vld [vmem:[#allocation5 + $0x3f0] sm:$0xff]
    %v291 = vld [vmem:[#allocation5 + $0x3f8] sm:$0xff]
    %v292 = vld [vmem:[#allocation5 + $0x400] sm:$0xff]
    %v293 = vld [vmem:[#allocation5 + $0x408] sm:$0xff]
    %v294 = vld [vmem:[#allocation5 + $0x410] sm:$0xff]
    %v295 = vld [vmem:[#allocation5 + $0x418] sm:$0xff]
    %v296 = vld [vmem:[#allocation5 + $0x420] sm:$0xff]
    %v297 = vld [vmem:[#allocation5 + $0x428] sm:$0xff]
    %v298 = vld [vmem:[#allocation5 + $0x430] sm:$0xff]
    %v299 = vld [vmem:[#allocation5 + $0x438] sm:$0xff]
    %v300 = vld [vmem:[#allocation5 + $0x440] sm:$0xff]
    %v301 = vld [vmem:[#allocation5 + $0x448] sm:$0xff]
    %v302 = vld [vmem:[#allocation5 + $0x450] sm:$0xff]
    %v303 = vld [vmem:[#allocation5 + $0x458] sm:$0xff]
    %v304 = vld [vmem:[#allocation5 + $0x460] sm:$0xff]
    %v305 = vld [vmem:[#allocation5 + $0x468] sm:$0xff]
    %v306 = vld [vmem:[#allocation5 + $0x470] sm:$0xff]
    %v307 = vld [vmem:[#allocation5 + $0x478] sm:$0xff]
    %v308 = vld [vmem:[#allocation5 + $0x480] sm:$0xff]
    %v309 = vld [vmem:[#allocation5 + $0x488] sm:$0xff]
    %v310 = vld [vmem:[#allocation5 + $0x490] sm:$0xff]
    %v311 = vld [vmem:[#allocation5 + $0x498] sm:$0xff]
    %v312 = vld [vmem:[#allocation5 + $0x4a0] sm:$0xff]
    %v313 = vld [vmem:[#allocation5 + $0x4a8] sm:$0xff]
    %v314 = vld [vmem:[#allocation5 + $0x4b0] sm:$0xff]
    %v315 = vld [vmem:[#allocation5 + $0x4b8] sm:$0xff]
    %v316 = vld [vmem:[#allocation5 + $0x4c0] sm:$0xff]
    %v317 = vld [vmem:[#allocation5 + $0x4c8] sm:$0xff]
    %v318 = vld [vmem:[#allocation5 + $0x4d0] sm:$0xff]
    %v319 = vld [vmem:[#allocation5 + $0x4d8] sm:$0xff]
    %v320 = vld [vmem:[#allocation5 + $0x4e0] sm:$0xff]
    %v321 = vld [vmem:[#allocation5 + $0x4e8] sm:$0xff]
    %v322 = vld [vmem:[#allocation5 + $0x4f0] sm:$0xff]
    %v323 = vld [vmem:[#allocation5 + $0x4f8] sm:$0xff]
    %v324 = vld [vmem:[#allocation5 + $0x500] sm:$0xff]
    %v325 = vld [vmem:[#allocation5 + $0x508] sm:$0xff]
    %v326 = vld [vmem:[#allocation5 + $0x510] sm:$0xff]
    %v327 = vld [vmem:[#allocation5 + $0x518] sm:$0xff]
    %v328 = vld [vmem:[#allocation5 + $0x520] sm:$0xff]
    %v329 = vld [vmem:[#allocation5 + $0x528] sm:$0xff]
    %v330 = vld [vmem:[#allocation5 + $0x530] sm:$0xff]
    %v331 = vld [vmem:[#allocation5 + $0x538] sm:$0xff]
    %v332 = vld [vmem:[#allocation5 + $0x540] sm:$0xff]
    %v333 = vld [vmem:[#allocation5 + $0x548] sm:$0xff]
    %v334 = vld [vmem:[#allocation5 + $0x550] sm:$0xff]
    %v335 = vld [vmem:[#allocation5 + $0x558] sm:$0xff]
    %v336 = vld [vmem:[#allocation5 + $0x560] sm:$0xff]
    %v337 = vld [vmem:[#allocation5 + $0x568] sm:$0xff]
    %v338 = vld [vmem:[#allocation5 + $0x570] sm:$0xff]
    %v339 = vld [vmem:[#allocation5 + $0x578] sm:$0xff]
    %v340 = vld [vmem:[#allocation5 + $0x580] sm:$0xff]
    %v341 = vld [vmem:[#allocation5 + $0x588] sm:$0xff]
    %v342 = vld [vmem:[#allocation5 + $0x590] sm:$0xff]
    %v343 = vld [vmem:[#allocation5 + $0x598] sm:$0xff]
    %v344 = vld [vmem:[#allocation5 + $0x5a0] sm:$0xff]
    %v345 = vld [vmem:[#allocation5 + $0x5a8] sm:$0xff]
    %v346 = vld [vmem:[#allocation5 + $0x5b0] sm:$0xff]
    %v347 = vld [vmem:[#allocation5 + $0x5b8] sm:$0xff]
    %v348 = vld [vmem:[#allocation5 + $0x5c0] sm:$0xff]
    %v349 = vld [vmem:[#allocation5 + $0x5c8] sm:$0xff]
    %v350 = vld [vmem:[#allocation5 + $0x5d0] sm:$0xff]
    %v351 = vld [vmem:[#allocation5 + $0x5d8] sm:$0xff]
    %v352 = vld [vmem:[#allocation5 + $0x5e0] sm:$0xff]
    %v353 = vld [vmem:[#allocation5 + $0x5e8] sm:$0xff]
    %v354 = vld [vmem:[#allocation5 + $0x5f0] sm:$0xff]
    %v355 = vld [vmem:[#allocation5 + $0x5f8] sm:$0xff]
    %v356 = vld [vmem:[#allocation5 + $0x600] sm:$0xff]
    %v357 = vld [vmem:[#allocation5 + $0x608] sm:$0xff]
    %v358 = vld [vmem:[#allocation5 + $0x610] sm:$0xff]
    %v359 = vld [vmem:[#allocation5 + $0x618] sm:$0xff]
    %v360 = vld [vmem:[#allocation5 + $0x620] sm:$0xff]
    %v361 = vld [vmem:[#allocation5 + $0x628] sm:$0xff]
    %v362 = vld [vmem:[#allocation5 + $0x630] sm:$0xff]
    %v363 = vld [vmem:[#allocation5 + $0x638] sm:$0xff]
    %v364 = vld [vmem:[#allocation5 + $0x640] sm:$0xff]
    %v365 = vld [vmem:[#allocation5 + $0x648] sm:$0xff]
    %v366 = vld [vmem:[#allocation5 + $0x650] sm:$0xff]
    %v367 = vld [vmem:[#allocation5 + $0x658] sm:$0xff]
    %v368 = vld [vmem:[#allocation5 + $0x660] sm:$0xff]
    %v369 = vld [vmem:[#allocation5 + $0x668] sm:$0xff]
    %v370 = vld [vmem:[#allocation5 + $0x670] sm:$0xff]
    %v371 = vld [vmem:[#allocation5 + $0x678] sm:$0xff]
    %v372 = vld [vmem:[#allocation5 + $0x680] sm:$0xff]
    %v373 = vld [vmem:[#allocation5 + $0x688] sm:$0xff]
    %v374 = vld [vmem:[#allocation5 + $0x690] sm:$0xff]
    %v375 = vld [vmem:[#allocation5 + $0x698] sm:$0xff]
    %v376 = vld [vmem:[#allocation5 + $0x6a0] sm:$0xff]
    %v377 = vld [vmem:[#allocation5 + $0x6a8] sm:$0xff]
    %v378 = vld [vmem:[#allocation5 + $0x6b0] sm:$0xff]
    %v379 = vld [vmem:[#allocation5 + $0x6b8] sm:$0xff]
    %v380 = vld [vmem:[#allocation5 + $0x6c0] sm:$0xff]
    %v381 = vld [vmem:[#allocation5 + $0x6c8] sm:$0xff]
    %v382 = vld [vmem:[#allocation5 + $0x6d0] sm:$0xff]
    %v383 = vld [vmem:[#allocation5 + $0x6d8] sm:$0xff]
    %v384 = vld [vmem:[#allocation5 + $0x6e0] sm:$0xff]
    %v385 = vld [vmem:[#allocation5 + $0x6e8] sm:$0xff]
    %v386 = vld [vmem:[#allocation5 + $0x6f0] sm:$0xff]
    %v387 = vld [vmem:[#allocation5 + $0x6f8] sm:$0xff]
    %v388 = vld [vmem:[#allocation5 + $0x700] sm:$0xff]
    %v389 = vld [vmem:[#allocation5 + $0x708] sm:$0xff]
    %v390 = vld [vmem:[#allocation5 + $0x710] sm:$0xff]
    %v391 = vld [vmem:[#allocation5 + $0x718] sm:$0xff]
    %v392 = vld [vmem:[#allocation5 + $0x720] sm:$0xff]
    %v393 = vld [vmem:[#allocation5 + $0x728] sm:$0xff]
    %v394 = vld [vmem:[#allocation5 + $0x730] sm:$0xff]
    %v395 = vld [vmem:[#allocation5 + $0x738] sm:$0xff]
    %v396 = vld [vmem:[#allocation5 + $0x740] sm:$0xff]
    %v397 = vld [vmem:[#allocation5 + $0x748] sm:$0xff]
    %v398 = vld [vmem:[#allocation5 + $0x750] sm:$0xff]
    %v399 = vld [vmem:[#allocation5 + $0x758] sm:$0xff]
    %v400 = vld [vmem:[#allocation5 + $0x760] sm:$0xff]
    %v401 = vld [vmem:[#allocation5 + $0x768] sm:$0xff]
    %v402 = vld [vmem:[#allocation5 + $0x770] sm:$0xff]
    %v403 = vld [vmem:[#allocation5 + $0x778] sm:$0xff]
    %v404 = vld [vmem:[#allocation5 + $0x780] sm:$0xff]
    %v405 = vld [vmem:[#allocation5 + $0x788] sm:$0xff]
    %v406 = vld [vmem:[#allocation5 + $0x790] sm:$0xff]
    %v407 = vld [vmem:[#allocation5 + $0x798] sm:$0xff]
    %v408 = vld [vmem:[#allocation5 + $0x7a0] sm:$0xff]
    %v409 = vld [vmem:[#allocation5 + $0x7a8] sm:$0xff]
    %v410 = vld [vmem:[#allocation5 + $0x7b0] sm:$0xff]
    %v411 = vld [vmem:[#allocation5 + $0x7b8] sm:$0xff]
    %v412 = vld [vmem:[#allocation5 + $0x7c0] sm:$0xff]
    %v413 = vld [vmem:[#allocation5 + $0x7c8] sm:$0xff]
    %v414 = vld [vmem:[#allocation5 + $0x7d0] sm:$0xff]
    %v415 = vld [vmem:[#allocation5 + $0x7d8] sm:$0xff]
    %v416 = vld [vmem:[#allocation5 + $0x7e0] sm:$0xff]
    %v417 = vld [vmem:[#allocation5 + $0x7e8] sm:$0xff]
    %v418 = vld [vmem:[#allocation5 + $0x7f0] sm:$0xff]
    %v419 = vld [vmem:[#allocation5 + $0x7f8] sm:$0xff]
    %v420 = vld [vmem:[#allocation5 + $0x800] sm:$0xff]
    %v421 = vld [vmem:[#allocation5 + $0x808] sm:$0xff]
    %v422 = vld [vmem:[#allocation5 + $0x810] sm:$0xff]
    %v423 = vld [vmem:[#allocation5 + $0x818] sm:$0xff]
    %v424 = vld [vmem:[#allocation5 + $0x820] sm:$0xff]
    %v425 = vld [vmem:[#allocation5 + $0x828] sm:$0xff]
    %v426 = vld [vmem:[#allocation5 + $0x830] sm:$0xff]
    %v427 = vld [vmem:[#allocation5 + $0x838] sm:$0xff]
    %v428 = vld [vmem:[#allocation5 + $0x840] sm:$0xff]
    %v429 = vld [vmem:[#allocation5 + $0x848] sm:$0xff]
    %v430 = vld [vmem:[#allocation5 + $0x850] sm:$0xff]
    %v431 = vld [vmem:[#allocation5 + $0x858] sm:$0xff]
    %v432 = vld [vmem:[#allocation5 + $0x860] sm:$0xff]
    %v433 = vld [vmem:[#allocation5 + $0x868] sm:$0xff]
    %v434 = vld [vmem:[#allocation5 + $0x870] sm:$0xff]
    %v435 = vld [vmem:[#allocation5 + $0x878] sm:$0xff]
    %v436 = vld [vmem:[#allocation5 + $0x880] sm:$0xff]
    %v437 = vld [vmem:[#allocation5 + $0x888] sm:$0xff]
    %v438 = vld [vmem:[#allocation5 + $0x890] sm:$0xff]
    %v439 = vld [vmem:[#allocation5 + $0x898] sm:$0xff]
    %v440 = vld [vmem:[#allocation5 + $0x8a0] sm:$0xff]
    %v441 = vld [vmem:[#allocation5 + $0x8a8] sm:$0xff]
    %v442 = vld [vmem:[#allocation5 + $0x8b0] sm:$0xff]
    %v443 = vld [vmem:[#allocation5 + $0x8b8] sm:$0xff]
    %v444 = vld [vmem:[#allocation5 + $0x8c0] sm:$0xff]
    %v445 = vld [vmem:[#allocation5 + $0x8c8] sm:$0xff]
    %v446 = vld [vmem:[#allocation5 + $0x8d0] sm:$0xff]
    %v447 = vld [vmem:[#allocation5 + $0x8d8] sm:$0xff]
    %v448 = vld [vmem:[#allocation5 + $0x8e0] sm:$0xff]
    %v449 = vld [vmem:[#allocation5 + $0x8e8] sm:$0xff]
    %v450 = vld [vmem:[#allocation5 + $0x8f0] sm:$0xff]
    %v451 = vld [vmem:[#allocation5 + $0x8f8] sm:$0xff]
    %v452 = vld [vmem:[#allocation5 + $0x900] sm:$0xff]
    %v453 = vld [vmem:[#allocation5 + $0x908] sm:$0xff]
    %v454 = vld [vmem:[#allocation5 + $0x910] sm:$0xff]
    %v455 = vld [vmem:[#allocation5 + $0x918] sm:$0xff]
    %v456 = vld [vmem:[#allocation5 + $0x920] sm:$0xff]
    %v457 = vld [vmem:[#allocation5 + $0x928] sm:$0xff]
    %v458 = vld [vmem:[#allocation5 + $0x930] sm:$0xff]
    %v459 = vld [vmem:[#allocation5 + $0x938] sm:$0xff]
    %v460 = vld [vmem:[#allocation5 + $0x940] sm:$0xff]
    %v461 = vld [vmem:[#allocation5 + $0x948] sm:$0xff]
    %v462 = vld [vmem:[#allocation5 + $0x950] sm:$0xff]
    %v463 = vld [vmem:[#allocation5 + $0x958] sm:$0xff]
    %v464 = vld [vmem:[#allocation5 + $0x960] sm:$0xff]
    %v465 = vld [vmem:[#allocation5 + $0x968] sm:$0xff]
    %v466 = vld [vmem:[#allocation5 + $0x970] sm:$0xff]
    %v467 = vld [vmem:[#allocation5 + $0x978] sm:$0xff]
    %v468 = vld [vmem:[#allocation5 + $0x980] sm:$0xff]
    %v469 = vld [vmem:[#allocation5 + $0x988] sm:$0xff]
    %v470 = vld [vmem:[#allocation5 + $0x990] sm:$0xff]
    %v471 = vld [vmem:[#allocation5 + $0x998] sm:$0xff]
    %v472 = vld [vmem:[#allocation5 + $0x9a0] sm:$0xff]
    %v473 = vld [vmem:[#allocation5 + $0x9a8] sm:$0xff]
    %v474 = vld [vmem:[#allocation5 + $0x9b0] sm:$0xff]
    %v475 = vld [vmem:[#allocation5 + $0x9b8] sm:$0xff]
    %v476 = vld [vmem:[#allocation5 + $0x9c0] sm:$0xff]
    %v477 = vld [vmem:[#allocation5 + $0x9c8] sm:$0xff]
    %v478 = vld [vmem:[#allocation5 + $0x9d0] sm:$0xff]
    %v479 = vld [vmem:[#allocation5 + $0x9d8] sm:$0xff]
    %v480 = vld [vmem:[#allocation5 + $0x9e0] sm:$0xff]
    %v481 = vld [vmem:[#allocation5 + $0x9e8] sm:$0xff]
    %v482 = vld [vmem:[#allocation5 + $0x9f0] sm:$0xff]
    %v483 = vld [vmem:[#allocation5 + $0x9f8] sm:$0xff]
    %v484 = vld [vmem:[#allocation5 + $0xa00] sm:$0xff]
    %v485 = vld [vmem:[#allocation5 + $0xa08] sm:$0xff]
    %v486 = vld [vmem:[#allocation5 + $0xa10] sm:$0xff]
    %v487 = vld [vmem:[#allocation5 + $0xa18] sm:$0xff]
    %v488 = vld [vmem:[#allocation5 + $0xa20] sm:$0xff]
    %v489 = vld [vmem:[#allocation5 + $0xa28] sm:$0xff]
    %v490 = vld [vmem:[#allocation5 + $0xa30] sm:$0xff]
    %v491 = vld [vmem:[#allocation5 + $0xa38] sm:$0xff]
    %v492 = vld [vmem:[#allocation5 + $0xa40] sm:$0xff]
    %v493 = vld [vmem:[#allocation5 + $0xa48] sm:$0xff]
    %v494 = vld [vmem:[#allocation5 + $0xa50] sm:$0xff]
    %v495 = vld [vmem:[#allocation5 + $0xa58] sm:$0xff]
    %v496 = vld [vmem:[#allocation5 + $0xa60] sm:$0xff]
    %v497 = vld [vmem:[#allocation5 + $0xa68] sm:$0xff]
    %v498 = vld [vmem:[#allocation5 + $0xa70] sm:$0xff]
    %v499 = vld [vmem:[#allocation5 + $0xa78] sm:$0xff]
    %v500 = vld [vmem:[#allocation5 + $0xa80] sm:$0xff]
    %v501 = vld [vmem:[#allocation5 + $0xa88] sm:$0xff]
    %v502 = vld [vmem:[#allocation5 + $0xa90] sm:$0xff]
    %v503 = vld [vmem:[#allocation5 + $0xa98] sm:$0xff]
    %v504 = vld [vmem:[#allocation5 + $0xaa0] sm:$0xff]
    %v505 = vld [vmem:[#allocation5 + $0xaa8] sm:$0xff]
    %v506 = vld [vmem:[#allocation5 + $0xab0] sm:$0xff]
    %v507 = vld [vmem:[#allocation5 + $0xab8] sm:$0xff]
    %v508 = vld [vmem:[#allocation5 + $0xac0] sm:$0xff]
    %v509 = vld [vmem:[#allocation5 + $0xac8] sm:$0xff]
    %v510 = vld [vmem:[#allocation5 + $0xad0] sm:$0xff]
    %v511 = vld [vmem:[#allocation5 + $0xad8] sm:$0xff]
    %v512 = vld [vmem:[#allocation5 + $0xae0] sm:$0xff]
    %v513 = vld [vmem:[#allocation5 + $0xae8] sm:$0xff]
    %v514 = vld [vmem:[#allocation5 + $0xaf0] sm:$0xff]
    %v515 = vld [vmem:[#allocation5 + $0xaf8] sm:$0xff]
    %v516 = vld [vmem:[#allocation5 + $0xb00] sm:$0xff]
    %v517 = vld [vmem:[#allocation5 + $0xb08] sm:$0xff]
    %v518 = vld [vmem:[#allocation5 + $0xb10] sm:$0xff]
    %v519 = vld [vmem:[#allocation5 + $0xb18] sm:$0xff]
    %v520 = vld [vmem:[#allocation5 + $0xb20] sm:$0xff]
    %v521 = vld [vmem:[#allocation5 + $0xb28] sm:$0xff]
    %v522 = vld [vmem:[#allocation5 + $0xb30] sm:$0xff]
    %v523 = vld [vmem:[#allocation5 + $0xb38] sm:$0xff]
    %v524 = vld [vmem:[#allocation5 + $0xb40] sm:$0xff]
    %v525 = vld [vmem:[#allocation5 + $0xb48] sm:$0xff]
    %v526 = vld [vmem:[#allocation5 + $0xb50] sm:$0xff]
    %v527 = vld [vmem:[#allocation5 + $0xb58] sm:$0xff]
    %v528 = vld [vmem:[#allocation5 + $0xb60] sm:$0xff]
    %v529 = vld [vmem:[#allocation5 + $0xb68] sm:$0xff]
    %v530 = vld [vmem:[#allocation5 + $0xb70] sm:$0xff]
    %v531 = vld [vmem:[#allocation5 + $0xb78] sm:$0xff]
    %v532 = vld [vmem:[#allocation5 + $0xb80] sm:$0xff]
    %v533 = vld [vmem:[#allocation5 + $0xb88] sm:$0xff]
    %v534 = vld [vmem:[#allocation5 + $0xb90] sm:$0xff]
    %v535 = vld [vmem:[#allocation5 + $0xb98] sm:$0xff]
    %v536 = vld [vmem:[#allocation5 + $0xba0] sm:$0xff]
    %v537 = vld [vmem:[#allocation5 + $0xba8] sm:$0xff]
    %v538 = vld [vmem:[#allocation5 + $0xbb0] sm:$0xff]
    %v539 = vld [vmem:[#allocation5 + $0xbb8] sm:$0xff]
    %v540 = vld [vmem:[#allocation5 + $0xbc0] sm:$0xff]
    %v541 = vld [vmem:[#allocation5 + $0xbc8] sm:$0xff]
    %v542 = vld [vmem:[#allocation5 + $0xbd0] sm:$0xff]
    %v543 = vld [vmem:[#allocation5 + $0xbd8] sm:$0xff]
    %v544 = vld [vmem:[#allocation5 + $0xbe0] sm:$0xff]
    %v545 = vld [vmem:[#allocation5 + $0xbe8] sm:$0xff]
    %v546 = vld [vmem:[#allocation5 + $0xbf0] sm:$0xff]
    %v547 = vld [vmem:[#allocation5 + $0xbf8] sm:$0xff]
    %v548 = vld [vmem:[#allocation5 + $0xc00] sm:$0xff]
    %v549 = vld [vmem:[#allocation5 + $0xc08] sm:$0xff]
    %v550 = vld [vmem:[#allocation5 + $0xc10] sm:$0xff]
    %v551 = vld [vmem:[#allocation5 + $0xc18] sm:$0xff]
    %v552 = vld [vmem:[#allocation5 + $0xc20] sm:$0xff]
    %v553 = vld [vmem:[#allocation5 + $0xc28] sm:$0xff]
    %v554 = vld [vmem:[#allocation5 + $0xc30] sm:$0xff]
    %v555 = vld [vmem:[#allocation5 + $0xc38] sm:$0xff]
    %v556 = vld [vmem:[#allocation5 + $0xc40] sm:$0xff]
    %v557 = vld [vmem:[#allocation5 + $0xc48] sm:$0xff]
    %v558 = vld [vmem:[#allocation5 + $0xc50] sm:$0xff]
    %v559 = vld [vmem:[#allocation5 + $0xc58] sm:$0xff]
    %v560 = vld [vmem:[#allocation5 + $0xc60] sm:$0xff]
    %v561 = vld [vmem:[#allocation5 + $0xc68] sm:$0xff]
    %v562 = vld [vmem:[#allocation5 + $0xc70] sm:$0xff]
    %v563 = vld [vmem:[#allocation5 + $0xc78] sm:$0xff]
    %v564 = vld [vmem:[#allocation5 + $0xc80] sm:$0xff]
    %v565 = vld [vmem:[#allocation5 + $0xc88] sm:$0xff]
    %v566 = vld [vmem:[#allocation5 + $0xc90] sm:$0xff]
    %v567 = vld [vmem:[#allocation5 + $0xc98] sm:$0xff]
    %v568 = vld [vmem:[#allocation5 + $0xca0] sm:$0xff]
    %v569 = vld [vmem:[#allocation5 + $0xca8] sm:$0xff]
    %v570 = vld [vmem:[#allocation5 + $0xcb0] sm:$0xff]
    %v571 = vld [vmem:[#allocation5 + $0xcb8] sm:$0xff]
    %v572 = vld [vmem:[#allocation5 + $0xcc0] sm:$0xff]
    %v573 = vld [vmem:[#allocation5 + $0xcc8] sm:$0xff]
    %v574 = vld [vmem:[#allocation5 + $0xcd0] sm:$0xff]
    %v575 = vld [vmem:[#allocation5 + $0xcd8] sm:$0xff]
    %v576 = vld [vmem:[#allocation5 + $0xce0] sm:$0xff]
    %v577 = vld [vmem:[#allocation5 + $0xce8] sm:$0xff]
    %v578 = vld [vmem:[#allocation5 + $0xcf0] sm:$0xff]
    %v579 = vld [vmem:[#allocation5 + $0xcf8] sm:$0xff]
    %v580 = vld [vmem:[#allocation5 + $0xd00] sm:$0xff]
    %v581 = vld [vmem:[#allocation5 + $0xd08] sm:$0xff]
    %v582 = vld [vmem:[#allocation5 + $0xd10] sm:$0xff]
    %v583 = vld [vmem:[#allocation5 + $0xd18] sm:$0xff]
    %v584 = vld [vmem:[#allocation5 + $0xd20] sm:$0xff]
    %v585 = vld [vmem:[#allocation5 + $0xd28] sm:$0xff]
    %v586 = vld [vmem:[#allocation5 + $0xd30] sm:$0xff]
    %v587 = vld [vmem:[#allocation5 + $0xd38] sm:$0xff]
    %v588 = vld [vmem:[#allocation5 + $0xd40] sm:$0xff]
    %v589 = vld [vmem:[#allocation5 + $0xd48] sm:$0xff]
    %v590 = vld [vmem:[#allocation5 + $0xd50] sm:$0xff]
    %v591 = vld [vmem:[#allocation5 + $0xd58] sm:$0xff]
    %v592 = vld [vmem:[#allocation5 + $0xd60] sm:$0xff]
    %v593 = vld [vmem:[#allocation5 + $0xd68] sm:$0xff]
    %v594 = vld [vmem:[#allocation5 + $0xd70] sm:$0xff]
    %v595 = vld [vmem:[#allocation5 + $0xd78] sm:$0xff]
    %v596 = vld [vmem:[#allocation5 + $0xd80] sm:$0xff]
    %v597 = vld [vmem:[#allocation5 + $0xd88] sm:$0xff]
    %v598 = vld [vmem:[#allocation5 + $0xd90] sm:$0xff]
    %v599 = vld [vmem:[#allocation5 + $0xd98] sm:$0xff]
    %v600 = vld [vmem:[#allocation5 + $0xda0] sm:$0xff]
    %v601 = vld [vmem:[#allocation5 + $0xda8] sm:$0xff]
    %v602 = vld [vmem:[#allocation5 + $0xdb0] sm:$0xff]
    %v603 = vld [vmem:[#allocation5 + $0xdb8] sm:$0xff]
    %v604 = vld [vmem:[#allocation5 + $0xdc0] sm:$0xff]
    %v605 = vld [vmem:[#allocation5 + $0xdc8] sm:$0xff]
    %v606 = vld [vmem:[#allocation5 + $0xdd0] sm:$0xff]
    %v607 = vld [vmem:[#allocation5 + $0xdd8] sm:$0xff]
    %v608 = vld [vmem:[#allocation5 + $0xde0] sm:$0xff]
    %v609 = vld [vmem:[#allocation5 + $0xde8] sm:$0xff]
    %v610 = vld [vmem:[#allocation5 + $0xdf0] sm:$0xff]
    %v611 = vld [vmem:[#allocation5 + $0xdf8] sm:$0xff]
    %v612 = vld [vmem:[#allocation5 + $0xe00] sm:$0xff]
    %v613 = vld [vmem:[#allocation5 + $0xe08] sm:$0xff]
    %v614 = vld [vmem:[#allocation5 + $0xe10] sm:$0xff]
    %v615 = vld [vmem:[#allocation5 + $0xe18] sm:$0xff]
    %v616 = vld [vmem:[#allocation5 + $0xe20] sm:$0xff]
    %v617 = vld [vmem:[#allocation5 + $0xe28] sm:$0xff]
    %v618 = vld [vmem:[#allocation5 + $0xe30] sm:$0xff]
    %v619 = vld [vmem:[#allocation5 + $0xe38] sm:$0xff]
    %v620 = vld [vmem:[#allocation5 + $0xe40] sm:$0xff]
    %v621 = vld [vmem:[#allocation5 + $0xe48] sm:$0xff]
    %v622 = vld [vmem:[#allocation5 + $0xe50] sm:$0xff]
    %v623 = vld [vmem:[#allocation5 + $0xe58] sm:$0xff]
    %v624 = vld [vmem:[#allocation5 + $0xe60] sm:$0xff]
    %v625 = vld [vmem:[#allocation5 + $0xe68] sm:$0xff]
    %v626 = vld [vmem:[#allocation5 + $0xe70] sm:$0xff]
    %v627 = vld [vmem:[#allocation5 + $0xe78] sm:$0xff]
    %v628 = vld [vmem:[#allocation5 + $0xe80] sm:$0xff]
    %v629 = vld [vmem:[#allocation5 + $0xe88] sm:$0xff]
    %v630 = vld [vmem:[#allocation5 + $0xe90] sm:$0xff]
    %v631 = vld [vmem:[#allocation5 + $0xe98] sm:$0xff]
    %v632 = vld [vmem:[#allocation5 + $0xea0] sm:$0xff]
    %v633 = vld [vmem:[#allocation5 + $0xea8] sm:$0xff]
    %v634 = vld [vmem:[#allocation5 + $0xeb0] sm:$0xff]
    %v635 = vld [vmem:[#allocation5 + $0xeb8] sm:$0xff]
    %v636 = vld [vmem:[#allocation5 + $0xec0] sm:$0xff]
    %v637 = vld [vmem:[#allocation5 + $0xec8] sm:$0xff]
    %v638 = vld [vmem:[#allocation5 + $0xed0] sm:$0xff]
    %v639 = vld [vmem:[#allocation5 + $0xed8] sm:$0xff]
    %v640 = vld [vmem:[#allocation5 + $0xee0] sm:$0xff]
    %v641 = vld [vmem:[#allocation5 + $0xee8] sm:$0xff]
    %v642 = vld [vmem:[#allocation5 + $0xef0] sm:$0xff]
    %v643 = vld [vmem:[#allocation5 + $0xef8] sm:$0xff]
    %v644 = vld [vmem:[#allocation5 + $0xf00] sm:$0xff]
    %v645 = vld [vmem:[#allocation5 + $0xf08] sm:$0xff]
    %v646 = vld [vmem:[#allocation5 + $0xf10] sm:$0xff]
    %v647 = vld [vmem:[#allocation5 + $0xf18] sm:$0xff]
    %v648 = vld [vmem:[#allocation5 + $0xf20] sm:$0xff]
    %v649 = vld [vmem:[#allocation5 + $0xf28] sm:$0xff]
    %v650 = vld [vmem:[#allocation5 + $0xf30] sm:$0xff]
    %v651 = vld [vmem:[#allocation5 + $0xf38] sm:$0xff]
    %v652 = vld [vmem:[#allocation5 + $0xf40] sm:$0xff]
    %v653 = vld [vmem:[#allocation5 + $0xf48] sm:$0xff]
    %v654 = vld [vmem:[#allocation5 + $0xf50] sm:$0xff]
    %v655 = vld [vmem:[#allocation5 + $0xf58] sm:$0xff]
    %v656 = vld [vmem:[#allocation5 + $0xf60] sm:$0xff]
    %v657 = vld [vmem:[#allocation5 + $0xf68] sm:$0xff]
    %v658 = vld [vmem:[#allocation5 + $0xf70] sm:$0xff]
    %v659 = vld [vmem:[#allocation5 + $0xf78] sm:$0xff]
    %v660 = vld [vmem:[#allocation5 + $0xf80] sm:$0xff]
    %v661 = vld [vmem:[#allocation5 + $0xf88] sm:$0xff]
    %v662 = vld [vmem:[#allocation5 + $0xf90] sm:$0xff]
    %v663 = vld [vmem:[#allocation5 + $0xf98] sm:$0xff]
    %v664 = vld [vmem:[#allocation5 + $0xfa0] sm:$0xff]
    %v665 = vld [vmem:[#allocation5 + $0xfa8] sm:$0xff]
    %v666 = vld [vmem:[#allocation5 + $0xfb0] sm:$0xff]
    %v667 = vld [vmem:[#allocation5 + $0xfb8] sm:$0xff]
    %v668 = vld [vmem:[#allocation5 + $0xfc0] sm:$0xff]
    %v669 = vld [vmem:[#allocation5 + $0xfc8] sm:$0xff]
    %v670 = vld [vmem:[#allocation5 + $0xfd0] sm:$0xff]
    %v671 = vld [vmem:[#allocation5 + $0xfd8] sm:$0xff]
    %v672 = vld [vmem:[#allocation5 + $0xfe0] sm:$0xff]
    %v673 = vld [vmem:[#allocation5 + $0xfe8] sm:$0xff]
    %v674 = vld [vmem:[#allocation5 + $0xff0] sm:$0xff]
    %v675 = vld [vmem:[#allocation5 + $0xff8] sm:$0xff]
    %v676 = vld [vmem:[#allocation7] sm:$0xf]
    %v678 = vperm.slane %v676, 0
    %v679 = vperm.slane %v676, 1
    %v680 = vperm.slane %v676, 2
    %v681 = vperm.slane %v676, 3
    %v1198 = vunpack.c.l.b16 %v164
    %v1199 = vunpack.c.h.b16 %v164
    %v1200 = vunpack.c.l.b16 %v165
    %v1201 = vunpack.c.h.b16 %v165
    %v1202 = vunpack.c.l.b16 %v166
    %v1203 = vunpack.c.h.b16 %v166
    %v1204 = vunpack.c.l.b16 %v167
    %v1205 = vunpack.c.h.b16 %v167
    %v1206 = vunpack.c.l.b16 %v168
    %v1207 = vunpack.c.h.b16 %v168
    %v1208 = vunpack.c.l.b16 %v169
    %v1209 = vunpack.c.h.b16 %v169
    %v1210 = vunpack.c.l.b16 %v170
    %v1211 = vunpack.c.h.b16 %v170
    %v1212 = vunpack.c.l.b16 %v171
    %v1213 = vunpack.c.h.b16 %v171
    %v1214 = vunpack.c.l.b16 %v172
    %v1215 = vunpack.c.h.b16 %v172
    %v1216 = vunpack.c.l.b16 %v173
    %v1217 = vunpack.c.h.b16 %v173
    %v1218 = vunpack.c.l.b16 %v174
    %v1219 = vunpack.c.h.b16 %v174
    %v1220 = vunpack.c.l.b16 %v175
    %v1221 = vunpack.c.h.b16 %v175
    %v1222 = vunpack.c.l.b16 %v176
    %v1223 = vunpack.c.h.b16 %v176
    %v1224 = vunpack.c.l.b16 %v177
    %v1225 = vunpack.c.h.b16 %v177
    %v1226 = vunpack.c.l.b16 %v178
    %v1227 = vunpack.c.h.b16 %v178
    %v1228 = vunpack.c.l.b16 %v179
    %v1229 = vunpack.c.h.b16 %v179
    %v1230 = vunpack.c.l.b16 %v180
    %v1231 = vunpack.c.h.b16 %v180
    %v1232 = vunpack.c.l.b16 %v181
    %v1233 = vunpack.c.h.b16 %v181
    %v1234 = vunpack.c.l.b16 %v182
    %v1235 = vunpack.c.h.b16 %v182
    %v1236 = vunpack.c.l.b16 %v183
    %v1237 = vunpack.c.h.b16 %v183
    %v1238 = vunpack.c.l.b16 %v184
    %v1239 = vunpack.c.h.b16 %v184
    %v1240 = vunpack.c.l.b16 %v185
    %v1241 = vunpack.c.h.b16 %v185
    %v1242 = vunpack.c.l.b16 %v186
    %v1243 = vunpack.c.h.b16 %v186
    %v1244 = vunpack.c.l.b16 %v187
    %v1245 = vunpack.c.h.b16 %v187
    %v1246 = vunpack.c.l.b16 %v188
    %v1247 = vunpack.c.h.b16 %v188
    %v1248 = vunpack.c.l.b16 %v189
    %v1249 = vunpack.c.h.b16 %v189
    %v1250 = vunpack.c.l.b16 %v190
    %v1251 = vunpack.c.h.b16 %v190
    %v1252 = vunpack.c.l.b16 %v191
    %v1253 = vunpack.c.h.b16 %v191
    %v1254 = vunpack.c.l.b16 %v192
    %v1255 = vunpack.c.h.b16 %v192
    %v1256 = vunpack.c.l.b16 %v193
    %v1257 = vunpack.c.h.b16 %v193
    %v1258 = vunpack.c.l.b16 %v194
    %v1259 = vunpack.c.h.b16 %v194
    %v1260 = vunpack.c.l.b16 %v195
    %v1261 = vunpack.c.h.b16 %v195
    %v1262 = vunpack.c.l.b16 %v196
    %v1263 = vunpack.c.h.b16 %v196
    %v1264 = vunpack.c.l.b16 %v197
    %v1265 = vunpack.c.h.b16 %v197
    %v1266 = vunpack.c.l.b16 %v198
    %v1267 = vunpack.c.h.b16 %v198
    %v1268 = vunpack.c.l.b16 %v199
    %v1269 = vunpack.c.h.b16 %v199
    %v1270 = vunpack.c.l.b16 %v200
    %v1271 = vunpack.c.h.b16 %v200
    %v1272 = vunpack.c.l.b16 %v201
    %v1273 = vunpack.c.h.b16 %v201
    %v1274 = vunpack.c.l.b16 %v202
    %v1275 = vunpack.c.h.b16 %v202
    %v1276 = vunpack.c.l.b16 %v203
    %v1277 = vunpack.c.h.b16 %v203
    %v1278 = vunpack.c.l.b16 %v204
    %v1279 = vunpack.c.h.b16 %v204
    %v1280 = vunpack.c.l.b16 %v205
    %v1281 = vunpack.c.h.b16 %v205
    %v1282 = vunpack.c.l.b16 %v206
    %v1283 = vunpack.c.h.b16 %v206
    %v1284 = vunpack.c.l.b16 %v207
    %v1285 = vunpack.c.h.b16 %v207
    %v1286 = vunpack.c.l.b16 %v208
    %v1287 = vunpack.c.h.b16 %v208
    %v1288 = vunpack.c.l.b16 %v209
    %v1289 = vunpack.c.h.b16 %v209
    %v1290 = vunpack.c.l.b16 %v210
    %v1291 = vunpack.c.h.b16 %v210
    %v1292 = vunpack.c.l.b16 %v211
    %v1293 = vunpack.c.h.b16 %v211
    %v1294 = vunpack.c.l.b16 %v212
    %v1295 = vunpack.c.h.b16 %v212
    %v1296 = vunpack.c.l.b16 %v213
    %v1297 = vunpack.c.h.b16 %v213
    %v1298 = vunpack.c.l.b16 %v214
    %v1299 = vunpack.c.h.b16 %v214
    %v1300 = vunpack.c.l.b16 %v215
    %v1301 = vunpack.c.h.b16 %v215
    %v1302 = vunpack.c.l.b16 %v216
    %v1303 = vunpack.c.h.b16 %v216
    %v1304 = vunpack.c.l.b16 %v217
    %v1305 = vunpack.c.h.b16 %v217
    %v1306 = vunpack.c.l.b16 %v218
    %v1307 = vunpack.c.h.b16 %v218
    %v1308 = vunpack.c.l.b16 %v219
    %v1309 = vunpack.c.h.b16 %v219
    %v1310 = vunpack.c.l.b16 %v220
    %v1311 = vunpack.c.h.b16 %v220
    %v1312 = vunpack.c.l.b16 %v221
    %v1313 = vunpack.c.h.b16 %v221
    %v1314 = vunpack.c.l.b16 %v222
    %v1315 = vunpack.c.h.b16 %v222
    %v1316 = vunpack.c.l.b16 %v223
    %v1317 = vunpack.c.h.b16 %v223
    %v1318 = vunpack.c.l.b16 %v224
    %v1319 = vunpack.c.h.b16 %v224
    %v1320 = vunpack.c.l.b16 %v225
    %v1321 = vunpack.c.h.b16 %v225
    %v1322 = vunpack.c.l.b16 %v226
    %v1323 = vunpack.c.h.b16 %v226
    %v1324 = vunpack.c.l.b16 %v227
    %v1325 = vunpack.c.h.b16 %v227
    %v1326 = vunpack.c.l.b16 %v228
    %v1327 = vunpack.c.h.b16 %v228
    %v1328 = vunpack.c.l.b16 %v229
    %v1329 = vunpack.c.h.b16 %v229
    %v1330 = vunpack.c.l.b16 %v230
    %v1331 = vunpack.c.h.b16 %v230
    %v1332 = vunpack.c.l.b16 %v231
    %v1333 = vunpack.c.h.b16 %v231
    %v1334 = vunpack.c.l.b16 %v232
    %v1335 = vunpack.c.h.b16 %v232
    %v1336 = vunpack.c.l.b16 %v233
    %v1337 = vunpack.c.h.b16 %v233
    %v1338 = vunpack.c.l.b16 %v234
    %v1339 = vunpack.c.h.b16 %v234
    %v1340 = vunpack.c.l.b16 %v235
    %v1341 = vunpack.c.h.b16 %v235
    %v1342 = vunpack.c.l.b16 %v236
    %v1343 = vunpack.c.h.b16 %v236
    %v1344 = vunpack.c.l.b16 %v237
    %v1345 = vunpack.c.h.b16 %v237
    %v1346 = vunpack.c.l.b16 %v238
    %v1347 = vunpack.c.h.b16 %v238
    %v1348 = vunpack.c.l.b16 %v239
    %v1349 = vunpack.c.h.b16 %v239
    %v1350 = vunpack.c.l.b16 %v240
    %v1351 = vunpack.c.h.b16 %v240
    %v1352 = vunpack.c.l.b16 %v241
    %v1353 = vunpack.c.h.b16 %v241
    %v1354 = vunpack.c.l.b16 %v242
    %v1355 = vunpack.c.h.b16 %v242
    %v1356 = vunpack.c.l.b16 %v243
    %v1357 = vunpack.c.h.b16 %v243
    %v1358 = vunpack.c.l.b16 %v244
    %v1359 = vunpack.c.h.b16 %v244
    %v1360 = vunpack.c.l.b16 %v245
    %v1361 = vunpack.c.h.b16 %v245
    %v1362 = vunpack.c.l.b16 %v246
    %v1363 = vunpack.c.h.b16 %v246
    %v1364 = vunpack.c.l.b16 %v247
    %v1365 = vunpack.c.h.b16 %v247
    %v1366 = vunpack.c.l.b16 %v248
    %v1367 = vunpack.c.h.b16 %v248
    %v1368 = vunpack.c.l.b16 %v249
    %v1369 = vunpack.c.h.b16 %v249
    %v1370 = vunpack.c.l.b16 %v250
    %v1371 = vunpack.c.h.b16 %v250
    %v1372 = vunpack.c.l.b16 %v251
    %v1373 = vunpack.c.h.b16 %v251
    %v1374 = vunpack.c.l.b16 %v252
    %v1375 = vunpack.c.h.b16 %v252
    %v1376 = vunpack.c.l.b16 %v253
    %v1377 = vunpack.c.h.b16 %v253
    %v1378 = vunpack.c.l.b16 %v254
    %v1379 = vunpack.c.h.b16 %v254
    %v1380 = vunpack.c.l.b16 %v255
    %v1381 = vunpack.c.h.b16 %v255
    %v1382 = vunpack.c.l.b16 %v256
    %v1383 = vunpack.c.h.b16 %v256
    %v1384 = vunpack.c.l.b16 %v257
    %v1385 = vunpack.c.h.b16 %v257
    %v1386 = vunpack.c.l.b16 %v258
    %v1387 = vunpack.c.h.b16 %v258
    %v1388 = vunpack.c.l.b16 %v259
    %v1389 = vunpack.c.h.b16 %v259
    %v1390 = vunpack.c.l.b16 %v260
    %v1391 = vunpack.c.h.b16 %v260
    %v1392 = vunpack.c.l.b16 %v261
    %v1393 = vunpack.c.h.b16 %v261
    %v1394 = vunpack.c.l.b16 %v262
    %v1395 = vunpack.c.h.b16 %v262
    %v1396 = vunpack.c.l.b16 %v263
    %v1397 = vunpack.c.h.b16 %v263
    %v1398 = vunpack.c.l.b16 %v264
    %v1399 = vunpack.c.h.b16 %v264
    %v1400 = vunpack.c.l.b16 %v265
    %v1401 = vunpack.c.h.b16 %v265
    %v1402 = vunpack.c.l.b16 %v266
    %v1403 = vunpack.c.h.b16 %v266
    %v1404 = vunpack.c.l.b16 %v267
    %v1405 = vunpack.c.h.b16 %v267
    %v1406 = vunpack.c.l.b16 %v268
    %v1407 = vunpack.c.h.b16 %v268
    %v1408 = vunpack.c.l.b16 %v269
    %v1409 = vunpack.c.h.b16 %v269
    %v1410 = vunpack.c.l.b16 %v270
    %v1411 = vunpack.c.h.b16 %v270
    %v1412 = vunpack.c.l.b16 %v271
    %v1413 = vunpack.c.h.b16 %v271
    %v1414 = vunpack.c.l.b16 %v272
    %v1415 = vunpack.c.h.b16 %v272
    %v1416 = vunpack.c.l.b16 %v273
    %v1417 = vunpack.c.h.b16 %v273
    %v1418 = vunpack.c.l.b16 %v274
    %v1419 = vunpack.c.h.b16 %v274
    %v1420 = vunpack.c.l.b16 %v275
    %v1421 = vunpack.c.h.b16 %v275
    %v1422 = vunpack.c.l.b16 %v276
    %v1423 = vunpack.c.h.b16 %v276
    %v1424 = vunpack.c.l.b16 %v277
    %v1425 = vunpack.c.h.b16 %v277
    %v1426 = vunpack.c.l.b16 %v278
    %v1427 = vunpack.c.h.b16 %v278
    %v1428 = vunpack.c.l.b16 %v279
    %v1429 = vunpack.c.h.b16 %v279
    %v1430 = vunpack.c.l.b16 %v280
    %v1431 = vunpack.c.h.b16 %v280
    %v1432 = vunpack.c.l.b16 %v281
    %v1433 = vunpack.c.h.b16 %v281
    %v1434 = vunpack.c.l.b16 %v282
    %v1435 = vunpack.c.h.b16 %v282
    %v1436 = vunpack.c.l.b16 %v283
    %v1437 = vunpack.c.h.b16 %v283
    %v1438 = vunpack.c.l.b16 %v284
    %v1439 = vunpack.c.h.b16 %v284
    %v1440 = vunpack.c.l.b16 %v285
    %v1441 = vunpack.c.h.b16 %v285
    %v1442 = vunpack.c.l.b16 %v286
    %v1443 = vunpack.c.h.b16 %v286
    %v1444 = vunpack.c.l.b16 %v287
    %v1445 = vunpack.c.h.b16 %v287
    %v1446 = vunpack.c.l.b16 %v288
    %v1447 = vunpack.c.h.b16 %v288
    %v1448 = vunpack.c.l.b16 %v289
    %v1449 = vunpack.c.h.b16 %v289
    %v1450 = vunpack.c.l.b16 %v290
    %v1451 = vunpack.c.h.b16 %v290
    %v1452 = vunpack.c.l.b16 %v291
    %v1453 = vunpack.c.h.b16 %v291
    %v1454 = vunpack.c.l.b16 %v292
    %v1455 = vunpack.c.h.b16 %v292
    %v1456 = vunpack.c.l.b16 %v293
    %v1457 = vunpack.c.h.b16 %v293
    %v1458 = vunpack.c.l.b16 %v294
    %v1459 = vunpack.c.h.b16 %v294
    %v1460 = vunpack.c.l.b16 %v295
    %v1461 = vunpack.c.h.b16 %v295
    %v1462 = vunpack.c.l.b16 %v296
    %v1463 = vunpack.c.h.b16 %v296
    %v1464 = vunpack.c.l.b16 %v297
    %v1465 = vunpack.c.h.b16 %v297
    %v1466 = vunpack.c.l.b16 %v298
    %v1467 = vunpack.c.h.b16 %v298
    %v1468 = vunpack.c.l.b16 %v299
    %v1469 = vunpack.c.h.b16 %v299
    %v1470 = vunpack.c.l.b16 %v300
    %v1471 = vunpack.c.h.b16 %v300
    %v1472 = vunpack.c.l.b16 %v301
    %v1473 = vunpack.c.h.b16 %v301
    %v1474 = vunpack.c.l.b16 %v302
    %v1475 = vunpack.c.h.b16 %v302
    %v1476 = vunpack.c.l.b16 %v303
    %v1477 = vunpack.c.h.b16 %v303
    %v1478 = vunpack.c.l.b16 %v304
    %v1479 = vunpack.c.h.b16 %v304
    %v1480 = vunpack.c.l.b16 %v305
    %v1481 = vunpack.c.h.b16 %v305
    %v1482 = vunpack.c.l.b16 %v306
    %v1483 = vunpack.c.h.b16 %v306
    %v1484 = vunpack.c.l.b16 %v307
    %v1485 = vunpack.c.h.b16 %v307
    %v1486 = vunpack.c.l.b16 %v308
    %v1487 = vunpack.c.h.b16 %v308
    %v1488 = vunpack.c.l.b16 %v309
    %v1489 = vunpack.c.h.b16 %v309
    %v1490 = vunpack.c.l.b16 %v310
    %v1491 = vunpack.c.h.b16 %v310
    %v1492 = vunpack.c.l.b16 %v311
    %v1493 = vunpack.c.h.b16 %v311
    %v1494 = vunpack.c.l.b16 %v312
    %v1495 = vunpack.c.h.b16 %v312
    %v1496 = vunpack.c.l.b16 %v313
    %v1497 = vunpack.c.h.b16 %v313
    %v1498 = vunpack.c.l.b16 %v314
    %v1499 = vunpack.c.h.b16 %v314
    %v1500 = vunpack.c.l.b16 %v315
    %v1501 = vunpack.c.h.b16 %v315
    %v1502 = vunpack.c.l.b16 %v316
    %v1503 = vunpack.c.h.b16 %v316
    %v1504 = vunpack.c.l.b16 %v317
    %v1505 = vunpack.c.h.b16 %v317
    %v1506 = vunpack.c.l.b16 %v318
    %v1507 = vunpack.c.h.b16 %v318
    %v1508 = vunpack.c.l.b16 %v319
    %v1509 = vunpack.c.h.b16 %v319
    %v1510 = vunpack.c.l.b16 %v320
    %v1511 = vunpack.c.h.b16 %v320
    %v1512 = vunpack.c.l.b16 %v321
    %v1513 = vunpack.c.h.b16 %v321
    %v1514 = vunpack.c.l.b16 %v322
    %v1515 = vunpack.c.h.b16 %v322
    %v1516 = vunpack.c.l.b16 %v323
    %v1517 = vunpack.c.h.b16 %v323
    %v1518 = vunpack.c.l.b16 %v324
    %v1519 = vunpack.c.h.b16 %v324
    %v1520 = vunpack.c.l.b16 %v325
    %v1521 = vunpack.c.h.b16 %v325
    %v1522 = vunpack.c.l.b16 %v326
    %v1523 = vunpack.c.h.b16 %v326
    %v1524 = vunpack.c.l.b16 %v327
    %v1525 = vunpack.c.h.b16 %v327
    %v1526 = vunpack.c.l.b16 %v328
    %v1527 = vunpack.c.h.b16 %v328
    %v1528 = vunpack.c.l.b16 %v329
    %v1529 = vunpack.c.h.b16 %v329
    %v1530 = vunpack.c.l.b16 %v330
    %v1531 = vunpack.c.h.b16 %v330
    %v1532 = vunpack.c.l.b16 %v331
    %v1533 = vunpack.c.h.b16 %v331
    %v1534 = vunpack.c.l.b16 %v332
    %v1535 = vunpack.c.h.b16 %v332
    %v1536 = vunpack.c.l.b16 %v333
    %v1537 = vunpack.c.h.b16 %v333
    %v1538 = vunpack.c.l.b16 %v334
    %v1539 = vunpack.c.h.b16 %v334
    %v1540 = vunpack.c.l.b16 %v335
    %v1541 = vunpack.c.h.b16 %v335
    %v1542 = vunpack.c.l.b16 %v336
    %v1543 = vunpack.c.h.b16 %v336
    %v1544 = vunpack.c.l.b16 %v337
    %v1545 = vunpack.c.h.b16 %v337
    %v1546 = vunpack.c.l.b16 %v338
    %v1547 = vunpack.c.h.b16 %v338
    %v1548 = vunpack.c.l.b16 %v339
    %v1549 = vunpack.c.h.b16 %v339
    %v1550 = vunpack.c.l.b16 %v340
    %v1551 = vunpack.c.h.b16 %v340
    %v1552 = vunpack.c.l.b16 %v341
    %v1553 = vunpack.c.h.b16 %v341
    %v1554 = vunpack.c.l.b16 %v342
    %v1555 = vunpack.c.h.b16 %v342
    %v1556 = vunpack.c.l.b16 %v343
    %v1557 = vunpack.c.h.b16 %v343
    %v1558 = vunpack.c.l.b16 %v344
    %v1559 = vunpack.c.h.b16 %v344
    %v1560 = vunpack.c.l.b16 %v345
    %v1561 = vunpack.c.h.b16 %v345
    %v1562 = vunpack.c.l.b16 %v346
    %v1563 = vunpack.c.h.b16 %v346
    %v1564 = vunpack.c.l.b16 %v347
    %v1565 = vunpack.c.h.b16 %v347
    %v1566 = vunpack.c.l.b16 %v348
    %v1567 = vunpack.c.h.b16 %v348
    %v1568 = vunpack.c.l.b16 %v349
    %v1569 = vunpack.c.h.b16 %v349
    %v1570 = vunpack.c.l.b16 %v350
    %v1571 = vunpack.c.h.b16 %v350
    %v1572 = vunpack.c.l.b16 %v351
    %v1573 = vunpack.c.h.b16 %v351
    %v1574 = vunpack.c.l.b16 %v352
    %v1575 = vunpack.c.h.b16 %v352
    %v1576 = vunpack.c.l.b16 %v353
    %v1577 = vunpack.c.h.b16 %v353
    %v1578 = vunpack.c.l.b16 %v354
    %v1579 = vunpack.c.h.b16 %v354
    %v1580 = vunpack.c.l.b16 %v355
    %v1581 = vunpack.c.h.b16 %v355
    %v1582 = vunpack.c.l.b16 %v356
    %v1583 = vunpack.c.h.b16 %v356
    %v1584 = vunpack.c.l.b16 %v357
    %v1585 = vunpack.c.h.b16 %v357
    %v1586 = vunpack.c.l.b16 %v358
    %v1587 = vunpack.c.h.b16 %v358
    %v1588 = vunpack.c.l.b16 %v359
    %v1589 = vunpack.c.h.b16 %v359
    %v1590 = vunpack.c.l.b16 %v360
    %v1591 = vunpack.c.h.b16 %v360
    %v1592 = vunpack.c.l.b16 %v361
    %v1593 = vunpack.c.h.b16 %v361
    %v1594 = vunpack.c.l.b16 %v362
    %v1595 = vunpack.c.h.b16 %v362
    %v1596 = vunpack.c.l.b16 %v363
    %v1597 = vunpack.c.h.b16 %v363
    %v1598 = vunpack.c.l.b16 %v364
    %v1599 = vunpack.c.h.b16 %v364
    %v1600 = vunpack.c.l.b16 %v365
    %v1601 = vunpack.c.h.b16 %v365
    %v1602 = vunpack.c.l.b16 %v366
    %v1603 = vunpack.c.h.b16 %v366
    %v1604 = vunpack.c.l.b16 %v367
    %v1605 = vunpack.c.h.b16 %v367
    %v1606 = vunpack.c.l.b16 %v368
    %v1607 = vunpack.c.h.b16 %v368
    %v1608 = vunpack.c.l.b16 %v369
    %v1609 = vunpack.c.h.b16 %v369
    %v1610 = vunpack.c.l.b16 %v370
    %v1611 = vunpack.c.h.b16 %v370
    %v1612 = vunpack.c.l.b16 %v371
    %v1613 = vunpack.c.h.b16 %v371
    %v1614 = vunpack.c.l.b16 %v372
    %v1615 = vunpack.c.h.b16 %v372
    %v1616 = vunpack.c.l.b16 %v373
    %v1617 = vunpack.c.h.b16 %v373
    %v1618 = vunpack.c.l.b16 %v374
    %v1619 = vunpack.c.h.b16 %v374
    %v1620 = vunpack.c.l.b16 %v375
    %v1621 = vunpack.c.h.b16 %v375
    %v1622 = vunpack.c.l.b16 %v376
    %v1623 = vunpack.c.h.b16 %v376
    %v1624 = vunpack.c.l.b16 %v377
    %v1625 = vunpack.c.h.b16 %v377
    %v1626 = vunpack.c.l.b16 %v378
    %v1627 = vunpack.c.h.b16 %v378
    %v1628 = vunpack.c.l.b16 %v379
    %v1629 = vunpack.c.h.b16 %v379
    %v1630 = vunpack.c.l.b16 %v380
    %v1631 = vunpack.c.h.b16 %v380
    %v1632 = vunpack.c.l.b16 %v381
    %v1633 = vunpack.c.h.b16 %v381
    %v1634 = vunpack.c.l.b16 %v382
    %v1635 = vunpack.c.h.b16 %v382
    %v1636 = vunpack.c.l.b16 %v383
    %v1637 = vunpack.c.h.b16 %v383
    %v1638 = vunpack.c.l.b16 %v384
    %v1639 = vunpack.c.h.b16 %v384
    %v1640 = vunpack.c.l.b16 %v385
    %v1641 = vunpack.c.h.b16 %v385
    %v1642 = vunpack.c.l.b16 %v386
    %v1643 = vunpack.c.h.b16 %v386
    %v1644 = vunpack.c.l.b16 %v387
    %v1645 = vunpack.c.h.b16 %v387
    %v1646 = vunpack.c.l.b16 %v388
    %v1647 = vunpack.c.h.b16 %v388
    %v1648 = vunpack.c.l.b16 %v389
    %v1649 = vunpack.c.h.b16 %v389
    %v1650 = vunpack.c.l.b16 %v390
    %v1651 = vunpack.c.h.b16 %v390
    %v1652 = vunpack.c.l.b16 %v391
    %v1653 = vunpack.c.h.b16 %v391
    %v1654 = vunpack.c.l.b16 %v392
    %v1655 = vunpack.c.h.b16 %v392
    %v1656 = vunpack.c.l.b16 %v393
    %v1657 = vunpack.c.h.b16 %v393
    %v1658 = vunpack.c.l.b16 %v394
    %v1659 = vunpack.c.h.b16 %v394
    %v1660 = vunpack.c.l.b16 %v395
    %v1661 = vunpack.c.h.b16 %v395
    %v1662 = vunpack.c.l.b16 %v396
    %v1663 = vunpack.c.h.b16 %v396
    %v1664 = vunpack.c.l.b16 %v397
    %v1665 = vunpack.c.h.b16 %v397
    %v1666 = vunpack.c.l.b16 %v398
    %v1667 = vunpack.c.h.b16 %v398
    %v1668 = vunpack.c.l.b16 %v399
    %v1669 = vunpack.c.h.b16 %v399
    %v1670 = vunpack.c.l.b16 %v400
    %v1671 = vunpack.c.h.b16 %v400
    %v1672 = vunpack.c.l.b16 %v401
    %v1673 = vunpack.c.h.b16 %v401
    %v1674 = vunpack.c.l.b16 %v402
    %v1675 = vunpack.c.h.b16 %v402
    %v1676 = vunpack.c.l.b16 %v403
    %v1677 = vunpack.c.h.b16 %v403
    %v1678 = vunpack.c.l.b16 %v404
    %v1679 = vunpack.c.h.b16 %v404
    %v1680 = vunpack.c.l.b16 %v405
    %v1681 = vunpack.c.h.b16 %v405
    %v1682 = vunpack.c.l.b16 %v406
    %v1683 = vunpack.c.h.b16 %v406
    %v1684 = vunpack.c.l.b16 %v407
    %v1685 = vunpack.c.h.b16 %v407
    %v1686 = vunpack.c.l.b16 %v408
    %v1687 = vunpack.c.h.b16 %v408
    %v1688 = vunpack.c.l.b16 %v409
    %v1689 = vunpack.c.h.b16 %v409
    %v1690 = vunpack.c.l.b16 %v410
    %v1691 = vunpack.c.h.b16 %v410
    %v1692 = vunpack.c.l.b16 %v411
    %v1693 = vunpack.c.h.b16 %v411
    %v1694 = vunpack.c.l.b16 %v412
    %v1695 = vunpack.c.h.b16 %v412
    %v1696 = vunpack.c.l.b16 %v413
    %v1697 = vunpack.c.h.b16 %v413
    %v1698 = vunpack.c.l.b16 %v414
    %v1699 = vunpack.c.h.b16 %v414
    %v1700 = vunpack.c.l.b16 %v415
    %v1701 = vunpack.c.h.b16 %v415
    %v1702 = vunpack.c.l.b16 %v416
    %v1703 = vunpack.c.h.b16 %v416
    %v1704 = vunpack.c.l.b16 %v417
    %v1705 = vunpack.c.h.b16 %v417
    %v1706 = vunpack.c.l.b16 %v418
    %v1707 = vunpack.c.h.b16 %v418
    %v1708 = vunpack.c.l.b16 %v419
    %v1709 = vunpack.c.h.b16 %v419
    %v1710 = vunpack.c.l.b16 %v420
    %v1711 = vunpack.c.h.b16 %v420
    %v1712 = vunpack.c.l.b16 %v421
    %v1713 = vunpack.c.h.b16 %v421
    %v1714 = vunpack.c.l.b16 %v422
    %v1715 = vunpack.c.h.b16 %v422
    %v1716 = vunpack.c.l.b16 %v423
    %v1717 = vunpack.c.h.b16 %v423
    %v1718 = vunpack.c.l.b16 %v424
    %v1719 = vunpack.c.h.b16 %v424
    %v1720 = vunpack.c.l.b16 %v425
    %v1721 = vunpack.c.h.b16 %v425
    %v1722 = vunpack.c.l.b16 %v426
    %v1723 = vunpack.c.h.b16 %v426
    %v1724 = vunpack.c.l.b16 %v427
    %v1725 = vunpack.c.h.b16 %v427
    %v1726 = vunpack.c.l.b16 %v428
    %v1727 = vunpack.c.h.b16 %v428
    %v1728 = vunpack.c.l.b16 %v429
    %v1729 = vunpack.c.h.b16 %v429
    %v1730 = vunpack.c.l.b16 %v430
    %v1731 = vunpack.c.h.b16 %v430
    %v1732 = vunpack.c.l.b16 %v431
    %v1733 = vunpack.c.h.b16 %v431
    %v1734 = vunpack.c.l.b16 %v432
    %v1735 = vunpack.c.h.b16 %v432
    %v1736 = vunpack.c.l.b16 %v433
    %v1737 = vunpack.c.h.b16 %v433
    %v1738 = vunpack.c.l.b16 %v434
    %v1739 = vunpack.c.h.b16 %v434
    %v1740 = vunpack.c.l.b16 %v435
    %v1741 = vunpack.c.h.b16 %v435
    %v1742 = vunpack.c.l.b16 %v436
    %v1743 = vunpack.c.h.b16 %v436
    %v1744 = vunpack.c.l.b16 %v437
    %v1745 = vunpack.c.h.b16 %v437
    %v1746 = vunpack.c.l.b16 %v438
    %v1747 = vunpack.c.h.b16 %v438
    %v1748 = vunpack.c.l.b16 %v439
    %v1749 = vunpack.c.h.b16 %v439
    %v1750 = vunpack.c.l.b16 %v440
    %v1751 = vunpack.c.h.b16 %v440
    %v1752 = vunpack.c.l.b16 %v441
    %v1753 = vunpack.c.h.b16 %v441
    %v1754 = vunpack.c.l.b16 %v442
    %v1755 = vunpack.c.h.b16 %v442
    %v1756 = vunpack.c.l.b16 %v443
    %v1757 = vunpack.c.h.b16 %v443
    %v1758 = vunpack.c.l.b16 %v444
    %v1759 = vunpack.c.h.b16 %v444
    %v1760 = vunpack.c.l.b16 %v445
    %v1761 = vunpack.c.h.b16 %v445
    %v1762 = vunpack.c.l.b16 %v446
    %v1763 = vunpack.c.h.b16 %v446
    %v1764 = vunpack.c.l.b16 %v447
    %v1765 = vunpack.c.h.b16 %v447
    %v1766 = vunpack.c.l.b16 %v448
    %v1767 = vunpack.c.h.b16 %v448
    %v1768 = vunpack.c.l.b16 %v449
    %v1769 = vunpack.c.h.b16 %v449
    %v1770 = vunpack.c.l.b16 %v450
    %v1771 = vunpack.c.h.b16 %v450
    %v1772 = vunpack.c.l.b16 %v451
    %v1773 = vunpack.c.h.b16 %v451
    %v1774 = vunpack.c.l.b16 %v452
    %v1775 = vunpack.c.h.b16 %v452
    %v1776 = vunpack.c.l.b16 %v453
    %v1777 = vunpack.c.h.b16 %v453
    %v1778 = vunpack.c.l.b16 %v454
    %v1779 = vunpack.c.h.b16 %v454
    %v1780 = vunpack.c.l.b16 %v455
    %v1781 = vunpack.c.h.b16 %v455
    %v1782 = vunpack.c.l.b16 %v456
    %v1783 = vunpack.c.h.b16 %v456
    %v1784 = vunpack.c.l.b16 %v457
    %v1785 = vunpack.c.h.b16 %v457
    %v1786 = vunpack.c.l.b16 %v458
    %v1787 = vunpack.c.h.b16 %v458
    %v1788 = vunpack.c.l.b16 %v459
    %v1789 = vunpack.c.h.b16 %v459
    %v1790 = vunpack.c.l.b16 %v460
    %v1791 = vunpack.c.h.b16 %v460
    %v1792 = vunpack.c.l.b16 %v461
    %v1793 = vunpack.c.h.b16 %v461
    %v1794 = vunpack.c.l.b16 %v462
    %v1795 = vunpack.c.h.b16 %v462
    %v1796 = vunpack.c.l.b16 %v463
    %v1797 = vunpack.c.h.b16 %v463
    %v1798 = vunpack.c.l.b16 %v464
    %v1799 = vunpack.c.h.b16 %v464
    %v1800 = vunpack.c.l.b16 %v465
    %v1801 = vunpack.c.h.b16 %v465
    %v1802 = vunpack.c.l.b16 %v466
    %v1803 = vunpack.c.h.b16 %v466
    %v1804 = vunpack.c.l.b16 %v467
    %v1805 = vunpack.c.h.b16 %v467
    %v1806 = vunpack.c.l.b16 %v468
    %v1807 = vunpack.c.h.b16 %v468
    %v1808 = vunpack.c.l.b16 %v469
    %v1809 = vunpack.c.h.b16 %v469
    %v1810 = vunpack.c.l.b16 %v470
    %v1811 = vunpack.c.h.b16 %v470
    %v1812 = vunpack.c.l.b16 %v471
    %v1813 = vunpack.c.h.b16 %v471
    %v1814 = vunpack.c.l.b16 %v472
    %v1815 = vunpack.c.h.b16 %v472
    %v1816 = vunpack.c.l.b16 %v473
    %v1817 = vunpack.c.h.b16 %v473
    %v1818 = vunpack.c.l.b16 %v474
    %v1819 = vunpack.c.h.b16 %v474
    %v1820 = vunpack.c.l.b16 %v475
    %v1821 = vunpack.c.h.b16 %v475
    %v1822 = vunpack.c.l.b16 %v476
    %v1823 = vunpack.c.h.b16 %v476
    %v1824 = vunpack.c.l.b16 %v477
    %v1825 = vunpack.c.h.b16 %v477
    %v1826 = vunpack.c.l.b16 %v478
    %v1827 = vunpack.c.h.b16 %v478
    %v1828 = vunpack.c.l.b16 %v479
    %v1829 = vunpack.c.h.b16 %v479
    %v1830 = vunpack.c.l.b16 %v480
    %v1831 = vunpack.c.h.b16 %v480
    %v1832 = vunpack.c.l.b16 %v481
    %v1833 = vunpack.c.h.b16 %v481
    %v1834 = vunpack.c.l.b16 %v482
    %v1835 = vunpack.c.h.b16 %v482
    %v1836 = vunpack.c.l.b16 %v483
    %v1837 = vunpack.c.h.b16 %v483
    %v1838 = vunpack.c.l.b16 %v484
    %v1839 = vunpack.c.h.b16 %v484
    %v1840 = vunpack.c.l.b16 %v485
    %v1841 = vunpack.c.h.b16 %v485
    %v1842 = vunpack.c.l.b16 %v486
    %v1843 = vunpack.c.h.b16 %v486
    %v1844 = vunpack.c.l.b16 %v487
    %v1845 = vunpack.c.h.b16 %v487
    %v1846 = vunpack.c.l.b16 %v488
    %v1847 = vunpack.c.h.b16 %v488
    %v1848 = vunpack.c.l.b16 %v489
    %v1849 = vunpack.c.h.b16 %v489
    %v1850 = vunpack.c.l.b16 %v490
    %v1851 = vunpack.c.h.b16 %v490
    %v1852 = vunpack.c.l.b16 %v491
    %v1853 = vunpack.c.h.b16 %v491
    %v1854 = vunpack.c.l.b16 %v492
    %v1855 = vunpack.c.h.b16 %v492
    %v1856 = vunpack.c.l.b16 %v493
    %v1857 = vunpack.c.h.b16 %v493
    %v1858 = vunpack.c.l.b16 %v494
    %v1859 = vunpack.c.h.b16 %v494
    %v1860 = vunpack.c.l.b16 %v495
    %v1861 = vunpack.c.h.b16 %v495
    %v1862 = vunpack.c.l.b16 %v496
    %v1863 = vunpack.c.h.b16 %v496
    %v1864 = vunpack.c.l.b16 %v497
    %v1865 = vunpack.c.h.b16 %v497
    %v1866 = vunpack.c.l.b16 %v498
    %v1867 = vunpack.c.h.b16 %v498
    %v1868 = vunpack.c.l.b16 %v499
    %v1869 = vunpack.c.h.b16 %v499
    %v1870 = vunpack.c.l.b16 %v500
    %v1871 = vunpack.c.h.b16 %v500
    %v1872 = vunpack.c.l.b16 %v501
    %v1873 = vunpack.c.h.b16 %v501
    %v1874 = vunpack.c.l.b16 %v502
    %v1875 = vunpack.c.h.b16 %v502
    %v1876 = vunpack.c.l.b16 %v503
    %v1877 = vunpack.c.h.b16 %v503
    %v1878 = vunpack.c.l.b16 %v504
    %v1879 = vunpack.c.h.b16 %v504
    %v1880 = vunpack.c.l.b16 %v505
    %v1881 = vunpack.c.h.b16 %v505
    %v1882 = vunpack.c.l.b16 %v506
    %v1883 = vunpack.c.h.b16 %v506
    %v1884 = vunpack.c.l.b16 %v507
    %v1885 = vunpack.c.h.b16 %v507
    %v1886 = vunpack.c.l.b16 %v508
    %v1887 = vunpack.c.h.b16 %v508
    %v1888 = vunpack.c.l.b16 %v509
    %v1889 = vunpack.c.h.b16 %v509
    %v1890 = vunpack.c.l.b16 %v510
    %v1891 = vunpack.c.h.b16 %v510
    %v1892 = vunpack.c.l.b16 %v511
    %v1893 = vunpack.c.h.b16 %v511
    %v1894 = vunpack.c.l.b16 %v512
    %v1895 = vunpack.c.h.b16 %v512
    %v1896 = vunpack.c.l.b16 %v513
    %v1897 = vunpack.c.h.b16 %v513
    %v1898 = vunpack.c.l.b16 %v514
    %v1899 = vunpack.c.h.b16 %v514
    %v1900 = vunpack.c.l.b16 %v515
    %v1901 = vunpack.c.h.b16 %v515
    %v1902 = vunpack.c.l.b16 %v516
    %v1903 = vunpack.c.h.b16 %v516
    %v1904 = vunpack.c.l.b16 %v517
    %v1905 = vunpack.c.h.b16 %v517
    %v1906 = vunpack.c.l.b16 %v518
    %v1907 = vunpack.c.h.b16 %v518
    %v1908 = vunpack.c.l.b16 %v519
    %v1909 = vunpack.c.h.b16 %v519
    %v1910 = vunpack.c.l.b16 %v520
    %v1911 = vunpack.c.h.b16 %v520
    %v1912 = vunpack.c.l.b16 %v521
    %v1913 = vunpack.c.h.b16 %v521
    %v1914 = vunpack.c.l.b16 %v522
    %v1915 = vunpack.c.h.b16 %v522
    %v1916 = vunpack.c.l.b16 %v523
    %v1917 = vunpack.c.h.b16 %v523
    %v1918 = vunpack.c.l.b16 %v524
    %v1919 = vunpack.c.h.b16 %v524
    %v1920 = vunpack.c.l.b16 %v525
    %v1921 = vunpack.c.h.b16 %v525
    %v1922 = vunpack.c.l.b16 %v526
    %v1923 = vunpack.c.h.b16 %v526
    %v1924 = vunpack.c.l.b16 %v527
    %v1925 = vunpack.c.h.b16 %v527
    %v1926 = vunpack.c.l.b16 %v528
    %v1927 = vunpack.c.h.b16 %v528
    %v1928 = vunpack.c.l.b16 %v529
    %v1929 = vunpack.c.h.b16 %v529
    %v1930 = vunpack.c.l.b16 %v530
    %v1931 = vunpack.c.h.b16 %v530
    %v1932 = vunpack.c.l.b16 %v531
    %v1933 = vunpack.c.h.b16 %v531
    %v1934 = vunpack.c.l.b16 %v532
    %v1935 = vunpack.c.h.b16 %v532
    %v1936 = vunpack.c.l.b16 %v533
    %v1937 = vunpack.c.h.b16 %v533
    %v1938 = vunpack.c.l.b16 %v534
    %v1939 = vunpack.c.h.b16 %v534
    %v1940 = vunpack.c.l.b16 %v535
    %v1941 = vunpack.c.h.b16 %v535
    %v1942 = vunpack.c.l.b16 %v536
    %v1943 = vunpack.c.h.b16 %v536
    %v1944 = vunpack.c.l.b16 %v537
    %v1945 = vunpack.c.h.b16 %v537
    %v1946 = vunpack.c.l.b16 %v538
    %v1947 = vunpack.c.h.b16 %v538
    %v1948 = vunpack.c.l.b16 %v539
    %v1949 = vunpack.c.h.b16 %v539
    %v1950 = vunpack.c.l.b16 %v540
    %v1951 = vunpack.c.h.b16 %v540
    %v1952 = vunpack.c.l.b16 %v541
    %v1953 = vunpack.c.h.b16 %v541
    %v1954 = vunpack.c.l.b16 %v542
    %v1955 = vunpack.c.h.b16 %v542
    %v1956 = vunpack.c.l.b16 %v543
    %v1957 = vunpack.c.h.b16 %v543
    %v1958 = vunpack.c.l.b16 %v544
    %v1959 = vunpack.c.h.b16 %v544
    %v1960 = vunpack.c.l.b16 %v545
    %v1961 = vunpack.c.h.b16 %v545
    %v1962 = vunpack.c.l.b16 %v546
    %v1963 = vunpack.c.h.b16 %v546
    %v1964 = vunpack.c.l.b16 %v547
    %v1965 = vunpack.c.h.b16 %v547
    %v1966 = vunpack.c.l.b16 %v548
    %v1967 = vunpack.c.h.b16 %v548
    %v1968 = vunpack.c.l.b16 %v549
    %v1969 = vunpack.c.h.b16 %v549
    %v1970 = vunpack.c.l.b16 %v550
    %v1971 = vunpack.c.h.b16 %v550
    %v1972 = vunpack.c.l.b16 %v551
    %v1973 = vunpack.c.h.b16 %v551
    %v1974 = vunpack.c.l.b16 %v552
    %v1975 = vunpack.c.h.b16 %v552
    %v1976 = vunpack.c.l.b16 %v553
    %v1977 = vunpack.c.h.b16 %v553
    %v1978 = vunpack.c.l.b16 %v554
    %v1979 = vunpack.c.h.b16 %v554
    %v1980 = vunpack.c.l.b16 %v555
    %v1981 = vunpack.c.h.b16 %v555
    %v1982 = vunpack.c.l.b16 %v556
    %v1983 = vunpack.c.h.b16 %v556
    %v1984 = vunpack.c.l.b16 %v557
    %v1985 = vunpack.c.h.b16 %v557
    %v1986 = vunpack.c.l.b16 %v558
    %v1987 = vunpack.c.h.b16 %v558
    %v1988 = vunpack.c.l.b16 %v559
    %v1989 = vunpack.c.h.b16 %v559
    %v1990 = vunpack.c.l.b16 %v560
    %v1991 = vunpack.c.h.b16 %v560
    %v1992 = vunpack.c.l.b16 %v561
    %v1993 = vunpack.c.h.b16 %v561
    %v1994 = vunpack.c.l.b16 %v562
    %v1995 = vunpack.c.h.b16 %v562
    %v1996 = vunpack.c.l.b16 %v563
    %v1997 = vunpack.c.h.b16 %v563
    %v1998 = vunpack.c.l.b16 %v564
    %v1999 = vunpack.c.h.b16 %v564
    %v2000 = vunpack.c.l.b16 %v565
    %v2001 = vunpack.c.h.b16 %v565
    %v2002 = vunpack.c.l.b16 %v566
    %v2003 = vunpack.c.h.b16 %v566
    %v2004 = vunpack.c.l.b16 %v567
    %v2005 = vunpack.c.h.b16 %v567
    %v2006 = vunpack.c.l.b16 %v568
    %v2007 = vunpack.c.h.b16 %v568
    %v2008 = vunpack.c.l.b16 %v569
    %v2009 = vunpack.c.h.b16 %v569
    %v2010 = vunpack.c.l.b16 %v570
    %v2011 = vunpack.c.h.b16 %v570
    %v2012 = vunpack.c.l.b16 %v571
    %v2013 = vunpack.c.h.b16 %v571
    %v2014 = vunpack.c.l.b16 %v572
    %v2015 = vunpack.c.h.b16 %v572
    %v2016 = vunpack.c.l.b16 %v573
    %v2017 = vunpack.c.h.b16 %v573
    %v2018 = vunpack.c.l.b16 %v574
    %v2019 = vunpack.c.h.b16 %v574
    %v2020 = vunpack.c.l.b16 %v575
    %v2021 = vunpack.c.h.b16 %v575
    %v2022 = vunpack.c.l.b16 %v576
    %v2023 = vunpack.c.h.b16 %v576
    %v2024 = vunpack.c.l.b16 %v577
    %v2025 = vunpack.c.h.b16 %v577
    %v2026 = vunpack.c.l.b16 %v578
    %v2027 = vunpack.c.h.b16 %v578
    %v2028 = vunpack.c.l.b16 %v579
    %v2029 = vunpack.c.h.b16 %v579
    %v2030 = vunpack.c.l.b16 %v580
    %v2031 = vunpack.c.h.b16 %v580
    %v2032 = vunpack.c.l.b16 %v581
    %v2033 = vunpack.c.h.b16 %v581
    %v2034 = vunpack.c.l.b16 %v582
    %v2035 = vunpack.c.h.b16 %v582
    %v2036 = vunpack.c.l.b16 %v583
    %v2037 = vunpack.c.h.b16 %v583
    %v2038 = vunpack.c.l.b16 %v584
    %v2039 = vunpack.c.h.b16 %v584
    %v2040 = vunpack.c.l.b16 %v585
    %v2041 = vunpack.c.h.b16 %v585
    %v2042 = vunpack.c.l.b16 %v586
    %v2043 = vunpack.c.h.b16 %v586
    %v2044 = vunpack.c.l.b16 %v587
    %v2045 = vunpack.c.h.b16 %v587
    %v2046 = vunpack.c.l.b16 %v588
    %v2047 = vunpack.c.h.b16 %v588
    %v2048 = vunpack.c.l.b16 %v589
    %v2049 = vunpack.c.h.b16 %v589
    %v2050 = vunpack.c.l.b16 %v590
    %v2051 = vunpack.c.h.b16 %v590
    %v2052 = vunpack.c.l.b16 %v591
    %v2053 = vunpack.c.h.b16 %v591
    %v2054 = vunpack.c.l.b16 %v592
    %v2055 = vunpack.c.h.b16 %v592
    %v2056 = vunpack.c.l.b16 %v593
    %v2057 = vunpack.c.h.b16 %v593
    %v2058 = vunpack.c.l.b16 %v594
    %v2059 = vunpack.c.h.b16 %v594
    %v2060 = vunpack.c.l.b16 %v595
    %v2061 = vunpack.c.h.b16 %v595
    %v2062 = vunpack.c.l.b16 %v596
    %v2063 = vunpack.c.h.b16 %v596
    %v2064 = vunpack.c.l.b16 %v597
    %v2065 = vunpack.c.h.b16 %v597
    %v2066 = vunpack.c.l.b16 %v598
    %v2067 = vunpack.c.h.b16 %v598
    %v2068 = vunpack.c.l.b16 %v599
    %v2069 = vunpack.c.h.b16 %v599
    %v2070 = vunpack.c.l.b16 %v600
    %v2071 = vunpack.c.h.b16 %v600
    %v2072 = vunpack.c.l.b16 %v601
    %v2073 = vunpack.c.h.b16 %v601
    %v2074 = vunpack.c.l.b16 %v602
    %v2075 = vunpack.c.h.b16 %v602
    %v2076 = vunpack.c.l.b16 %v603
    %v2077 = vunpack.c.h.b16 %v603
    %v2078 = vunpack.c.l.b16 %v604
    %v2079 = vunpack.c.h.b16 %v604
    %v2080 = vunpack.c.l.b16 %v605
    %v2081 = vunpack.c.h.b16 %v605
    %v2082 = vunpack.c.l.b16 %v606
    %v2083 = vunpack.c.h.b16 %v606
    %v2084 = vunpack.c.l.b16 %v607
    %v2085 = vunpack.c.h.b16 %v607
    %v2086 = vunpack.c.l.b16 %v608
    %v2087 = vunpack.c.h.b16 %v608
    %v2088 = vunpack.c.l.b16 %v609
    %v2089 = vunpack.c.h.b16 %v609
    %v2090 = vunpack.c.l.b16 %v610
    %v2091 = vunpack.c.h.b16 %v610
    %v2092 = vunpack.c.l.b16 %v611
    %v2093 = vunpack.c.h.b16 %v611
    %v2094 = vunpack.c.l.b16 %v612
    %v2095 = vunpack.c.h.b16 %v612
    %v2096 = vunpack.c.l.b16 %v613
    %v2097 = vunpack.c.h.b16 %v613
    %v2098 = vunpack.c.l.b16 %v614
    %v2099 = vunpack.c.h.b16 %v614
    %v2100 = vunpack.c.l.b16 %v615
    %v2101 = vunpack.c.h.b16 %v615
    %v2102 = vunpack.c.l.b16 %v616
    %v2103 = vunpack.c.h.b16 %v616
    %v2104 = vunpack.c.l.b16 %v617
    %v2105 = vunpack.c.h.b16 %v617
    %v2106 = vunpack.c.l.b16 %v618
    %v2107 = vunpack.c.h.b16 %v618
    %v2108 = vunpack.c.l.b16 %v619
    %v2109 = vunpack.c.h.b16 %v619
    %v2110 = vunpack.c.l.b16 %v620
    %v2111 = vunpack.c.h.b16 %v620
    %v2112 = vunpack.c.l.b16 %v621
    %v2113 = vunpack.c.h.b16 %v621
    %v2114 = vunpack.c.l.b16 %v622
    %v2115 = vunpack.c.h.b16 %v622
    %v2116 = vunpack.c.l.b16 %v623
    %v2117 = vunpack.c.h.b16 %v623
    %v2118 = vunpack.c.l.b16 %v624
    %v2119 = vunpack.c.h.b16 %v624
    %v2120 = vunpack.c.l.b16 %v625
    %v2121 = vunpack.c.h.b16 %v625
    %v2122 = vunpack.c.l.b16 %v626
    %v2123 = vunpack.c.h.b16 %v626
    %v2124 = vunpack.c.l.b16 %v627
    %v2125 = vunpack.c.h.b16 %v627
    %v2126 = vunpack.c.l.b16 %v628
    %v2127 = vunpack.c.h.b16 %v628
    %v2128 = vunpack.c.l.b16 %v629
    %v2129 = vunpack.c.h.b16 %v629
    %v2130 = vunpack.c.l.b16 %v630
    %v2131 = vunpack.c.h.b16 %v630
    %v2132 = vunpack.c.l.b16 %v631
    %v2133 = vunpack.c.h.b16 %v631
    %v2134 = vunpack.c.l.b16 %v632
    %v2135 = vunpack.c.h.b16 %v632
    %v2136 = vunpack.c.l.b16 %v633
    %v2137 = vunpack.c.h.b16 %v633
    %v2138 = vunpack.c.l.b16 %v634
    %v2139 = vunpack.c.h.b16 %v634
    %v2140 = vunpack.c.l.b16 %v635
    %v2141 = vunpack.c.h.b16 %v635
    %v2142 = vunpack.c.l.b16 %v636
    %v2143 = vunpack.c.h.b16 %v636
    %v2144 = vunpack.c.l.b16 %v637
    %v2145 = vunpack.c.h.b16 %v637
    %v2146 = vunpack.c.l.b16 %v638
    %v2147 = vunpack.c.h.b16 %v638
    %v2148 = vunpack.c.l.b16 %v639
    %v2149 = vunpack.c.h.b16 %v639
    %v2150 = vunpack.c.l.b16 %v640
    %v2151 = vunpack.c.h.b16 %v640
    %v2152 = vunpack.c.l.b16 %v641
    %v2153 = vunpack.c.h.b16 %v641
    %v2154 = vunpack.c.l.b16 %v642
    %v2155 = vunpack.c.h.b16 %v642
    %v2156 = vunpack.c.l.b16 %v643
    %v2157 = vunpack.c.h.b16 %v643
    %v2158 = vunpack.c.l.b16 %v644
    %v2159 = vunpack.c.h.b16 %v644
    %v2160 = vunpack.c.l.b16 %v645
    %v2161 = vunpack.c.h.b16 %v645
    %v2162 = vunpack.c.l.b16 %v646
    %v2163 = vunpack.c.h.b16 %v646
    %v2164 = vunpack.c.l.b16 %v647
    %v2165 = vunpack.c.h.b16 %v647
    %v2166 = vunpack.c.l.b16 %v648
    %v2167 = vunpack.c.h.b16 %v648
    %v2168 = vunpack.c.l.b16 %v649
    %v2169 = vunpack.c.h.b16 %v649
    %v2170 = vunpack.c.l.b16 %v650
    %v2171 = vunpack.c.h.b16 %v650
    %v2172 = vunpack.c.l.b16 %v651
    %v2173 = vunpack.c.h.b16 %v651
    %v2174 = vunpack.c.l.b16 %v652
    %v2175 = vunpack.c.h.b16 %v652
    %v2176 = vunpack.c.l.b16 %v653
    %v2177 = vunpack.c.h.b16 %v653
    %v2178 = vunpack.c.l.b16 %v654
    %v2179 = vunpack.c.h.b16 %v654
    %v2180 = vunpack.c.l.b16 %v655
    %v2181 = vunpack.c.h.b16 %v655
    %v2182 = vunpack.c.l.b16 %v656
    %v2183 = vunpack.c.h.b16 %v656
    %v2184 = vunpack.c.l.b16 %v657
    %v2185 = vunpack.c.h.b16 %v657
    %v2186 = vunpack.c.l.b16 %v658
    %v2187 = vunpack.c.h.b16 %v658
    %v2188 = vunpack.c.l.b16 %v659
    %v2189 = vunpack.c.h.b16 %v659
    %v2190 = vunpack.c.l.b16 %v660
    %v2191 = vunpack.c.h.b16 %v660
    %v2192 = vunpack.c.l.b16 %v661
    %v2193 = vunpack.c.h.b16 %v661
    %v2194 = vunpack.c.l.b16 %v662
    %v2195 = vunpack.c.h.b16 %v662
    %v2196 = vunpack.c.l.b16 %v663
    %v2197 = vunpack.c.h.b16 %v663
    %v2198 = vunpack.c.l.b16 %v664
    %v2199 = vunpack.c.h.b16 %v664
    %v2200 = vunpack.c.l.b16 %v665
    %v2201 = vunpack.c.h.b16 %v665
    %v2202 = vunpack.c.l.b16 %v666
    %v2203 = vunpack.c.h.b16 %v666
    %v2204 = vunpack.c.l.b16 %v667
    %v2205 = vunpack.c.h.b16 %v667
    %v2206 = vunpack.c.l.b16 %v668
    %v2207 = vunpack.c.h.b16 %v668
    %v2208 = vunpack.c.l.b16 %v669
    %v2209 = vunpack.c.h.b16 %v669
    %v2210 = vunpack.c.l.b16 %v670
    %v2211 = vunpack.c.h.b16 %v670
    %v2212 = vunpack.c.l.b16 %v671
    %v2213 = vunpack.c.h.b16 %v671
    %v2214 = vunpack.c.l.b16 %v672
    %v2215 = vunpack.c.h.b16 %v672
    %v2216 = vunpack.c.l.b16 %v673
    %v2217 = vunpack.c.h.b16 %v673
    %v2218 = vunpack.c.l.b16 %v674
    %v2219 = vunpack.c.h.b16 %v674
    %v2220 = vunpack.c.l.b16 %v675
    %v2221 = vunpack.c.h.b16 %v675
    %v2222 = vpack.c.b16 %v1202, %v1198
    %v2223 = vpack.c.b16 %v1203, %v1199
    %v2224 = vpack.c.b16 %v1204, %v1200
    %v2225 = vpack.c.b16 %v1205, %v1201
    %v2226 = vpack.c.b16 %v1210, %v1206
    %v2227 = vpack.c.b16 %v1211, %v1207
    %v2228 = vpack.c.b16 %v1212, %v1208
    %v2229 = vpack.c.b16 %v1213, %v1209
    %v2230 = vpack.c.b16 %v1218, %v1214
    %v2231 = vpack.c.b16 %v1219, %v1215
    %v2232 = vpack.c.b16 %v1220, %v1216
    %v2233 = vpack.c.b16 %v1221, %v1217
    %v2234 = vpack.c.b16 %v1226, %v1222
    %v2235 = vpack.c.b16 %v1227, %v1223
    %v2236 = vpack.c.b16 %v1228, %v1224
    %v2237 = vpack.c.b16 %v1229, %v1225
    %v2238 = vpack.c.b16 %v1234, %v1230
    %v2239 = vpack.c.b16 %v1235, %v1231
    %v2240 = vpack.c.b16 %v1236, %v1232
    %v2241 = vpack.c.b16 %v1237, %v1233
    %v2242 = vpack.c.b16 %v1242, %v1238
    %v2243 = vpack.c.b16 %v1243, %v1239
    %v2244 = vpack.c.b16 %v1244, %v1240
    %v2245 = vpack.c.b16 %v1245, %v1241
    %v2246 = vpack.c.b16 %v1250, %v1246
    %v2247 = vpack.c.b16 %v1251, %v1247
    %v2248 = vpack.c.b16 %v1252, %v1248
    %v2249 = vpack.c.b16 %v1253, %v1249
    %v2250 = vpack.c.b16 %v1258, %v1254
    %v2251 = vpack.c.b16 %v1259, %v1255
    %v2252 = vpack.c.b16 %v1260, %v1256
    %v2253 = vpack.c.b16 %v1261, %v1257
    %v2254 = vpack.c.b16 %v1266, %v1262
    %v2255 = vpack.c.b16 %v1267, %v1263
    %v2256 = vpack.c.b16 %v1268, %v1264
    %v2257 = vpack.c.b16 %v1269, %v1265
    %v2258 = vpack.c.b16 %v1274, %v1270
    %v2259 = vpack.c.b16 %v1275, %v1271
    %v2260 = vpack.c.b16 %v1276, %v1272
    %v2261 = vpack.c.b16 %v1277, %v1273
    %v2262 = vpack.c.b16 %v1282, %v1278
    %v2263 = vpack.c.b16 %v1283, %v1279
    %v2264 = vpack.c.b16 %v1284, %v1280
    %v2265 = vpack.c.b16 %v1285, %v1281
    %v2266 = vpack.c.b16 %v1290, %v1286
    %v2267 = vpack.c.b16 %v1291, %v1287
    %v2268 = vpack.c.b16 %v1292, %v1288
    %v2269 = vpack.c.b16 %v1293, %v1289
    %v2270 = vpack.c.b16 %v1298, %v1294
    %v2271 = vpack.c.b16 %v1299, %v1295
    %v2272 = vpack.c.b16 %v1300, %v1296
    %v2273 = vpack.c.b16 %v1301, %v1297
    %v2274 = vpack.c.b16 %v1306, %v1302
    %v2275 = vpack.c.b16 %v1307, %v1303
    %v2276 = vpack.c.b16 %v1308, %v1304
    %v2277 = vpack.c.b16 %v1309, %v1305
    %v2278 = vpack.c.b16 %v1314, %v1310
    %v2279 = vpack.c.b16 %v1315, %v1311
    %v2280 = vpack.c.b16 %v1316, %v1312
    %v2281 = vpack.c.b16 %v1317, %v1313
    %v2282 = vpack.c.b16 %v1322, %v1318
    %v2283 = vpack.c.b16 %v1323, %v1319
    %v2284 = vpack.c.b16 %v1324, %v1320
    %v2285 = vpack.c.b16 %v1325, %v1321
    %v2286 = vpack.c.b16 %v1330, %v1326
    %v2287 = vpack.c.b16 %v1331, %v1327
    %v2288 = vpack.c.b16 %v1332, %v1328
    %v2289 = vpack.c.b16 %v1333, %v1329
    %v2290 = vpack.c.b16 %v1338, %v1334
    %v2291 = vpack.c.b16 %v1339, %v1335
    %v2292 = vpack.c.b16 %v1340, %v1336
    %v2293 = vpack.c.b16 %v1341, %v1337
    %v2294 = vpack.c.b16 %v1346, %v1342
    %v2295 = vpack.c.b16 %v1347, %v1343
    %v2296 = vpack.c.b16 %v1348, %v1344
    %v2297 = vpack.c.b16 %v1349, %v1345
    %v2298 = vpack.c.b16 %v1354, %v1350
    %v2299 = vpack.c.b16 %v1355, %v1351
    %v2300 = vpack.c.b16 %v1356, %v1352
    %v2301 = vpack.c.b16 %v1357, %v1353
    %v2302 = vpack.c.b16 %v1362, %v1358
    %v2303 = vpack.c.b16 %v1363, %v1359
    %v2304 = vpack.c.b16 %v1364, %v1360
    %v2305 = vpack.c.b16 %v1365, %v1361
    %v2306 = vpack.c.b16 %v1370, %v1366
    %v2307 = vpack.c.b16 %v1371, %v1367
    %v2308 = vpack.c.b16 %v1372, %v1368
    %v2309 = vpack.c.b16 %v1373, %v1369
    %v2310 = vpack.c.b16 %v1378, %v1374
    %v2311 = vpack.c.b16 %v1379, %v1375
    %v2312 = vpack.c.b16 %v1380, %v1376
    %v2313 = vpack.c.b16 %v1381, %v1377
    %v2314 = vpack.c.b16 %v1386, %v1382
    %v2315 = vpack.c.b16 %v1387, %v1383
    %v2316 = vpack.c.b16 %v1388, %v1384
    %v2317 = vpack.c.b16 %v1389, %v1385
    %v2318 = vpack.c.b16 %v1394, %v1390
    %v2319 = vpack.c.b16 %v1395, %v1391
    %v2320 = vpack.c.b16 %v1396, %v1392
    %v2321 = vpack.c.b16 %v1397, %v1393
    %v2322 = vpack.c.b16 %v1402, %v1398
    %v2323 = vpack.c.b16 %v1403, %v1399
    %v2324 = vpack.c.b16 %v1404, %v1400
    %v2325 = vpack.c.b16 %v1405, %v1401
    %v2326 = vpack.c.b16 %v1410, %v1406
    %v2327 = vpack.c.b16 %v1411, %v1407
    %v2328 = vpack.c.b16 %v1412, %v1408
    %v2329 = vpack.c.b16 %v1413, %v1409
    %v2330 = vpack.c.b16 %v1418, %v1414
    %v2331 = vpack.c.b16 %v1419, %v1415
    %v2332 = vpack.c.b16 %v1420, %v1416
    %v2333 = vpack.c.b16 %v1421, %v1417
    %v2334 = vpack.c.b16 %v1426, %v1422
    %v2335 = vpack.c.b16 %v1427, %v1423
    %v2336 = vpack.c.b16 %v1428, %v1424
    %v2337 = vpack.c.b16 %v1429, %v1425
    %v2338 = vpack.c.b16 %v1434, %v1430
    %v2339 = vpack.c.b16 %v1435, %v1431
    %v2340 = vpack.c.b16 %v1436, %v1432
    %v2341 = vpack.c.b16 %v1437, %v1433
    %v2342 = vpack.c.b16 %v1442, %v1438
    %v2343 = vpack.c.b16 %v1443, %v1439
    %v2344 = vpack.c.b16 %v1444, %v1440
    %v2345 = vpack.c.b16 %v1445, %v1441
    %v2346 = vpack.c.b16 %v1450, %v1446
    %v2347 = vpack.c.b16 %v1451, %v1447
    %v2348 = vpack.c.b16 %v1452, %v1448
    %v2349 = vpack.c.b16 %v1453, %v1449
    %v2350 = vpack.c.b16 %v1458, %v1454
    %v2351 = vpack.c.b16 %v1459, %v1455
    %v2352 = vpack.c.b16 %v1460, %v1456
    %v2353 = vpack.c.b16 %v1461, %v1457
    %v2354 = vpack.c.b16 %v1466, %v1462
    %v2355 = vpack.c.b16 %v1467, %v1463
    %v2356 = vpack.c.b16 %v1468, %v1464
    %v2357 = vpack.c.b16 %v1469, %v1465
    %v2358 = vpack.c.b16 %v1474, %v1470
    %v2359 = vpack.c.b16 %v1475, %v1471
    %v2360 = vpack.c.b16 %v1476, %v1472
    %v2361 = vpack.c.b16 %v1477, %v1473
    %v2362 = vpack.c.b16 %v1482, %v1478
    %v2363 = vpack.c.b16 %v1483, %v1479
    %v2364 = vpack.c.b16 %v1484, %v1480
    %v2365 = vpack.c.b16 %v1485, %v1481
    %v2366 = vpack.c.b16 %v1490, %v1486
    %v2367 = vpack.c.b16 %v1491, %v1487
    %v2368 = vpack.c.b16 %v1492, %v1488
    %v2369 = vpack.c.b16 %v1493, %v1489
    %v2370 = vpack.c.b16 %v1498, %v1494
    %v2371 = vpack.c.b16 %v1499, %v1495
    %v2372 = vpack.c.b16 %v1500, %v1496
    %v2373 = vpack.c.b16 %v1501, %v1497
    %v2374 = vpack.c.b16 %v1506, %v1502
    %v2375 = vpack.c.b16 %v1507, %v1503
    %v2376 = vpack.c.b16 %v1508, %v1504
    %v2377 = vpack.c.b16 %v1509, %v1505
    %v2378 = vpack.c.b16 %v1514, %v1510
    %v2379 = vpack.c.b16 %v1515, %v1511
    %v2380 = vpack.c.b16 %v1516, %v1512
    %v2381 = vpack.c.b16 %v1517, %v1513
    %v2382 = vpack.c.b16 %v1522, %v1518
    %v2383 = vpack.c.b16 %v1523, %v1519
    %v2384 = vpack.c.b16 %v1524, %v1520
    %v2385 = vpack.c.b16 %v1525, %v1521
    %v2386 = vpack.c.b16 %v1530, %v1526
    %v2387 = vpack.c.b16 %v1531, %v1527
    %v2388 = vpack.c.b16 %v1532, %v1528
    %v2389 = vpack.c.b16 %v1533, %v1529
    %v2390 = vpack.c.b16 %v1538, %v1534
    %v2391 = vpack.c.b16 %v1539, %v1535
    %v2392 = vpack.c.b16 %v1540, %v1536
    %v2393 = vpack.c.b16 %v1541, %v1537
    %v2394 = vpack.c.b16 %v1546, %v1542
    %v2395 = vpack.c.b16 %v1547, %v1543
    %v2396 = vpack.c.b16 %v1548, %v1544
    %v2397 = vpack.c.b16 %v1549, %v1545
    %v2398 = vpack.c.b16 %v1554, %v1550
    %v2399 = vpack.c.b16 %v1555, %v1551
    %v2400 = vpack.c.b16 %v1556, %v1552
    %v2401 = vpack.c.b16 %v1557, %v1553
    %v2402 = vpack.c.b16 %v1562, %v1558
    %v2403 = vpack.c.b16 %v1563, %v1559
    %v2404 = vpack.c.b16 %v1564, %v1560
    %v2405 = vpack.c.b16 %v1565, %v1561
    %v2406 = vpack.c.b16 %v1570, %v1566
    %v2407 = vpack.c.b16 %v1571, %v1567
    %v2408 = vpack.c.b16 %v1572, %v1568
    %v2409 = vpack.c.b16 %v1573, %v1569
    %v2410 = vpack.c.b16 %v1578, %v1574
    %v2411 = vpack.c.b16 %v1579, %v1575
    %v2412 = vpack.c.b16 %v1580, %v1576
    %v2413 = vpack.c.b16 %v1581, %v1577
    %v2414 = vpack.c.b16 %v1586, %v1582
    %v2415 = vpack.c.b16 %v1587, %v1583
    %v2416 = vpack.c.b16 %v1588, %v1584
    %v2417 = vpack.c.b16 %v1589, %v1585
    %v2418 = vpack.c.b16 %v1594, %v1590
    %v2419 = vpack.c.b16 %v1595, %v1591
    %v2420 = vpack.c.b16 %v1596, %v1592
    %v2421 = vpack.c.b16 %v1597, %v1593
    %v2422 = vpack.c.b16 %v1602, %v1598
    %v2423 = vpack.c.b16 %v1603, %v1599
    %v2424 = vpack.c.b16 %v1604, %v1600
    %v2425 = vpack.c.b16 %v1605, %v1601
    %v2426 = vpack.c.b16 %v1610, %v1606
    %v2427 = vpack.c.b16 %v1611, %v1607
    %v2428 = vpack.c.b16 %v1612, %v1608
    %v2429 = vpack.c.b16 %v1613, %v1609
    %v2430 = vpack.c.b16 %v1618, %v1614
    %v2431 = vpack.c.b16 %v1619, %v1615
    %v2432 = vpack.c.b16 %v1620, %v1616
    %v2433 = vpack.c.b16 %v1621, %v1617
    %v2434 = vpack.c.b16 %v1626, %v1622
    %v2435 = vpack.c.b16 %v1627, %v1623
    %v2436 = vpack.c.b16 %v1628, %v1624
    %v2437 = vpack.c.b16 %v1629, %v1625
    %v2438 = vpack.c.b16 %v1634, %v1630
    %v2439 = vpack.c.b16 %v1635, %v1631
    %v2440 = vpack.c.b16 %v1636, %v1632
    %v2441 = vpack.c.b16 %v1637, %v1633
    %v2442 = vpack.c.b16 %v1642, %v1638
    %v2443 = vpack.c.b16 %v1643, %v1639
    %v2444 = vpack.c.b16 %v1644, %v1640
    %v2445 = vpack.c.b16 %v1645, %v1641
    %v2446 = vpack.c.b16 %v1650, %v1646
    %v2447 = vpack.c.b16 %v1651, %v1647
    %v2448 = vpack.c.b16 %v1652, %v1648
    %v2449 = vpack.c.b16 %v1653, %v1649
    %v2450 = vpack.c.b16 %v1658, %v1654
    %v2451 = vpack.c.b16 %v1659, %v1655
    %v2452 = vpack.c.b16 %v1660, %v1656
    %v2453 = vpack.c.b16 %v1661, %v1657
    %v2454 = vpack.c.b16 %v1666, %v1662
    %v2455 = vpack.c.b16 %v1667, %v1663
    %v2456 = vpack.c.b16 %v1668, %v1664
    %v2457 = vpack.c.b16 %v1669, %v1665
    %v2458 = vpack.c.b16 %v1674, %v1670
    %v2459 = vpack.c.b16 %v1675, %v1671
    %v2460 = vpack.c.b16 %v1676, %v1672
    %v2461 = vpack.c.b16 %v1677, %v1673
    %v2462 = vpack.c.b16 %v1682, %v1678
    %v2463 = vpack.c.b16 %v1683, %v1679
    %v2464 = vpack.c.b16 %v1684, %v1680
    %v2465 = vpack.c.b16 %v1685, %v1681
    %v2466 = vpack.c.b16 %v1690, %v1686
    %v2467 = vpack.c.b16 %v1691, %v1687
    %v2468 = vpack.c.b16 %v1692, %v1688
    %v2469 = vpack.c.b16 %v1693, %v1689
    %v2470 = vpack.c.b16 %v1698, %v1694
    %v2471 = vpack.c.b16 %v1699, %v1695
    %v2472 = vpack.c.b16 %v1700, %v1696
    %v2473 = vpack.c.b16 %v1701, %v1697
    %v2474 = vpack.c.b16 %v1706, %v1702
    %v2475 = vpack.c.b16 %v1707, %v1703
    %v2476 = vpack.c.b16 %v1708, %v1704
    %v2477 = vpack.c.b16 %v1709, %v1705
    %v2478 = vpack.c.b16 %v1714, %v1710
    %v2479 = vpack.c.b16 %v1715, %v1711
    %v2480 = vpack.c.b16 %v1716, %v1712
    %v2481 = vpack.c.b16 %v1717, %v1713
    %v2482 = vpack.c.b16 %v1722, %v1718
    %v2483 = vpack.c.b16 %v1723, %v1719
    %v2484 = vpack.c.b16 %v1724, %v1720
    %v2485 = vpack.c.b16 %v1725, %v1721
    %v2486 = vpack.c.b16 %v1730, %v1726
    %v2487 = vpack.c.b16 %v1731, %v1727
    %v2488 = vpack.c.b16 %v1732, %v1728
    %v2489 = vpack.c.b16 %v1733, %v1729
    %v2490 = vpack.c.b16 %v1738, %v1734
    %v2491 = vpack.c.b16 %v1739, %v1735
    %v2492 = vpack.c.b16 %v1740, %v1736
    %v2493 = vpack.c.b16 %v1741, %v1737
    %v2494 = vpack.c.b16 %v1746, %v1742
    %v2495 = vpack.c.b16 %v1747, %v1743
    %v2496 = vpack.c.b16 %v1748, %v1744
    %v2497 = vpack.c.b16 %v1749, %v1745
    %v2498 = vpack.c.b16 %v1754, %v1750
    %v2499 = vpack.c.b16 %v1755, %v1751
    %v2500 = vpack.c.b16 %v1756, %v1752
    %v2501 = vpack.c.b16 %v1757, %v1753
    %v2502 = vpack.c.b16 %v1762, %v1758
    %v2503 = vpack.c.b16 %v1763, %v1759
    %v2504 = vpack.c.b16 %v1764, %v1760
    %v2505 = vpack.c.b16 %v1765, %v1761
    %v2506 = vpack.c.b16 %v1770, %v1766
    %v2507 = vpack.c.b16 %v1771, %v1767
    %v2508 = vpack.c.b16 %v1772, %v1768
    %v2509 = vpack.c.b16 %v1773, %v1769
    %v2510 = vpack.c.b16 %v1778, %v1774
    %v2511 = vpack.c.b16 %v1779, %v1775
    %v2512 = vpack.c.b16 %v1780, %v1776
    %v2513 = vpack.c.b16 %v1781, %v1777
    %v2514 = vpack.c.b16 %v1786, %v1782
    %v2515 = vpack.c.b16 %v1787, %v1783
    %v2516 = vpack.c.b16 %v1788, %v1784
    %v2517 = vpack.c.b16 %v1789, %v1785
    %v2518 = vpack.c.b16 %v1794, %v1790
    %v2519 = vpack.c.b16 %v1795, %v1791
    %v2520 = vpack.c.b16 %v1796, %v1792
    %v2521 = vpack.c.b16 %v1797, %v1793
    %v2522 = vpack.c.b16 %v1802, %v1798
    %v2523 = vpack.c.b16 %v1803, %v1799
    %v2524 = vpack.c.b16 %v1804, %v1800
    %v2525 = vpack.c.b16 %v1805, %v1801
    %v2526 = vpack.c.b16 %v1810, %v1806
    %v2527 = vpack.c.b16 %v1811, %v1807
    %v2528 = vpack.c.b16 %v1812, %v1808
    %v2529 = vpack.c.b16 %v1813, %v1809
    %v2530 = vpack.c.b16 %v1818, %v1814
    %v2531 = vpack.c.b16 %v1819, %v1815
    %v2532 = vpack.c.b16 %v1820, %v1816
    %v2533 = vpack.c.b16 %v1821, %v1817
    %v2534 = vpack.c.b16 %v1826, %v1822
    %v2535 = vpack.c.b16 %v1827, %v1823
    %v2536 = vpack.c.b16 %v1828, %v1824
    %v2537 = vpack.c.b16 %v1829, %v1825
    %v2538 = vpack.c.b16 %v1834, %v1830
    %v2539 = vpack.c.b16 %v1835, %v1831
    %v2540 = vpack.c.b16 %v1836, %v1832
    %v2541 = vpack.c.b16 %v1837, %v1833
    %v2542 = vpack.c.b16 %v1842, %v1838
    %v2543 = vpack.c.b16 %v1843, %v1839
    %v2544 = vpack.c.b16 %v1844, %v1840
    %v2545 = vpack.c.b16 %v1845, %v1841
    %v2546 = vpack.c.b16 %v1850, %v1846
    %v2547 = vpack.c.b16 %v1851, %v1847
    %v2548 = vpack.c.b16 %v1852, %v1848
    %v2549 = vpack.c.b16 %v1853, %v1849
    %v2550 = vpack.c.b16 %v1858, %v1854
    %v2551 = vpack.c.b16 %v1859, %v1855
    %v2552 = vpack.c.b16 %v1860, %v1856
    %v2553 = vpack.c.b16 %v1861, %v1857
    %v2554 = vpack.c.b16 %v1866, %v1862
    %v2555 = vpack.c.b16 %v1867, %v1863
    %v2556 = vpack.c.b16 %v1868, %v1864
    %v2557 = vpack.c.b16 %v1869, %v1865
    %v2558 = vpack.c.b16 %v1874, %v1870
    %v2559 = vpack.c.b16 %v1875, %v1871
    %v2560 = vpack.c.b16 %v1876, %v1872
    %v2561 = vpack.c.b16 %v1877, %v1873
    %v2562 = vpack.c.b16 %v1882, %v1878
    %v2563 = vpack.c.b16 %v1883, %v1879
    %v2564 = vpack.c.b16 %v1884, %v1880
    %v2565 = vpack.c.b16 %v1885, %v1881
    %v2566 = vpack.c.b16 %v1890, %v1886
    %v2567 = vpack.c.b16 %v1891, %v1887
    %v2568 = vpack.c.b16 %v1892, %v1888
    %v2569 = vpack.c.b16 %v1893, %v1889
    %v2570 = vpack.c.b16 %v1898, %v1894
    %v2571 = vpack.c.b16 %v1899, %v1895
    %v2572 = vpack.c.b16 %v1900, %v1896
    %v2573 = vpack.c.b16 %v1901, %v1897
    %v2574 = vpack.c.b16 %v1906, %v1902
    %v2575 = vpack.c.b16 %v1907, %v1903
    %v2576 = vpack.c.b16 %v1908, %v1904
    %v2577 = vpack.c.b16 %v1909, %v1905
    %v2578 = vpack.c.b16 %v1914, %v1910
    %v2579 = vpack.c.b16 %v1915, %v1911
    %v2580 = vpack.c.b16 %v1916, %v1912
    %v2581 = vpack.c.b16 %v1917, %v1913
    %v2582 = vpack.c.b16 %v1922, %v1918
    %v2583 = vpack.c.b16 %v1923, %v1919
    %v2584 = vpack.c.b16 %v1924, %v1920
    %v2585 = vpack.c.b16 %v1925, %v1921
    %v2586 = vpack.c.b16 %v1930, %v1926
    %v2587 = vpack.c.b16 %v1931, %v1927
    %v2588 = vpack.c.b16 %v1932, %v1928
    %v2589 = vpack.c.b16 %v1933, %v1929
    %v2590 = vpack.c.b16 %v1938, %v1934
    %v2591 = vpack.c.b16 %v1939, %v1935
    %v2592 = vpack.c.b16 %v1940, %v1936
    %v2593 = vpack.c.b16 %v1941, %v1937
    %v2594 = vpack.c.b16 %v1946, %v1942
    %v2595 = vpack.c.b16 %v1947, %v1943
    %v2596 = vpack.c.b16 %v1948, %v1944
    %v2597 = vpack.c.b16 %v1949, %v1945
    %v2598 = vpack.c.b16 %v1954, %v1950
    %v2599 = vpack.c.b16 %v1955, %v1951
    %v2600 = vpack.c.b16 %v1956, %v1952
    %v2601 = vpack.c.b16 %v1957, %v1953
    %v2602 = vpack.c.b16 %v1962, %v1958
    %v2603 = vpack.c.b16 %v1963, %v1959
    %v2604 = vpack.c.b16 %v1964, %v1960
    %v2605 = vpack.c.b16 %v1965, %v1961
    %v2606 = vpack.c.b16 %v1970, %v1966
    %v2607 = vpack.c.b16 %v1971, %v1967
    %v2608 = vpack.c.b16 %v1972, %v1968
    %v2609 = vpack.c.b16 %v1973, %v1969
    %v2610 = vpack.c.b16 %v1978, %v1974
    %v2611 = vpack.c.b16 %v1979, %v1975
    %v2612 = vpack.c.b16 %v1980, %v1976
    %v2613 = vpack.c.b16 %v1981, %v1977
    %v2614 = vpack.c.b16 %v1986, %v1982
    %v2615 = vpack.c.b16 %v1987, %v1983
    %v2616 = vpack.c.b16 %v1988, %v1984
    %v2617 = vpack.c.b16 %v1989, %v1985
    %v2618 = vpack.c.b16 %v1994, %v1990
    %v2619 = vpack.c.b16 %v1995, %v1991
    %v2620 = vpack.c.b16 %v1996, %v1992
    %v2621 = vpack.c.b16 %v1997, %v1993
    %v2622 = vpack.c.b16 %v2002, %v1998
    %v2623 = vpack.c.b16 %v2003, %v1999
    %v2624 = vpack.c.b16 %v2004, %v2000
    %v2625 = vpack.c.b16 %v2005, %v2001
    %v2626 = vpack.c.b16 %v2010, %v2006
    %v2627 = vpack.c.b16 %v2011, %v2007
    %v2628 = vpack.c.b16 %v2012, %v2008
    %v2629 = vpack.c.b16 %v2013, %v2009
    %v2630 = vpack.c.b16 %v2018, %v2014
    %v2631 = vpack.c.b16 %v2019, %v2015
    %v2632 = vpack.c.b16 %v2020, %v2016
    %v2633 = vpack.c.b16 %v2021, %v2017
    %v2634 = vpack.c.b16 %v2026, %v2022
    %v2635 = vpack.c.b16 %v2027, %v2023
    %v2636 = vpack.c.b16 %v2028, %v2024
    %v2637 = vpack.c.b16 %v2029, %v2025
    %v2638 = vpack.c.b16 %v2034, %v2030
    %v2639 = vpack.c.b16 %v2035, %v2031
    %v2640 = vpack.c.b16 %v2036, %v2032
    %v2641 = vpack.c.b16 %v2037, %v2033
    %v2642 = vpack.c.b16 %v2042, %v2038
    %v2643 = vpack.c.b16 %v2043, %v2039
    %v2644 = vpack.c.b16 %v2044, %v2040
    %v2645 = vpack.c.b16 %v2045, %v2041
    %v2646 = vpack.c.b16 %v2050, %v2046
    %v2647 = vpack.c.b16 %v2051, %v2047
    %v2648 = vpack.c.b16 %v2052, %v2048
    %v2649 = vpack.c.b16 %v2053, %v2049
    %v2650 = vpack.c.b16 %v2058, %v2054
    %v2651 = vpack.c.b16 %v2059, %v2055
    %v2652 = vpack.c.b16 %v2060, %v2056
    %v2653 = vpack.c.b16 %v2061, %v2057
    %v2654 = vpack.c.b16 %v2066, %v2062
    %v2655 = vpack.c.b16 %v2067, %v2063
    %v2656 = vpack.c.b16 %v2068, %v2064
    %v2657 = vpack.c.b16 %v2069, %v2065
    %v2658 = vpack.c.b16 %v2074, %v2070
    %v2659 = vpack.c.b16 %v2075, %v2071
    %v2660 = vpack.c.b16 %v2076, %v2072
    %v2661 = vpack.c.b16 %v2077, %v2073
    %v2662 = vpack.c.b16 %v2082, %v2078
    %v2663 = vpack.c.b16 %v2083, %v2079
    %v2664 = vpack.c.b16 %v2084, %v2080
    %v2665 = vpack.c.b16 %v2085, %v2081
    %v2666 = vpack.c.b16 %v2090, %v2086
    %v2667 = vpack.c.b16 %v2091, %v2087
    %v2668 = vpack.c.b16 %v2092, %v2088
    %v2669 = vpack.c.b16 %v2093, %v2089
    %v2670 = vpack.c.b16 %v2098, %v2094
    %v2671 = vpack.c.b16 %v2099, %v2095
    %v2672 = vpack.c.b16 %v2100, %v2096
    %v2673 = vpack.c.b16 %v2101, %v2097
    %v2674 = vpack.c.b16 %v2106, %v2102
    %v2675 = vpack.c.b16 %v2107, %v2103
    %v2676 = vpack.c.b16 %v2108, %v2104
    %v2677 = vpack.c.b16 %v2109, %v2105
    %v2678 = vpack.c.b16 %v2114, %v2110
    %v2679 = vpack.c.b16 %v2115, %v2111
    %v2680 = vpack.c.b16 %v2116, %v2112
    %v2681 = vpack.c.b16 %v2117, %v2113
    %v2682 = vpack.c.b16 %v2122, %v2118
    %v2683 = vpack.c.b16 %v2123, %v2119
    %v2684 = vpack.c.b16 %v2124, %v2120
    %v2685 = vpack.c.b16 %v2125, %v2121
    %v2686 = vpack.c.b16 %v2130, %v2126
    %v2687 = vpack.c.b16 %v2131, %v2127
    %v2688 = vpack.c.b16 %v2132, %v2128
    %v2689 = vpack.c.b16 %v2133, %v2129
    %v2690 = vpack.c.b16 %v2138, %v2134
    %v2691 = vpack.c.b16 %v2139, %v2135
    %v2692 = vpack.c.b16 %v2140, %v2136
    %v2693 = vpack.c.b16 %v2141, %v2137
    %v2694 = vpack.c.b16 %v2146, %v2142
    %v2695 = vpack.c.b16 %v2147, %v2143
    %v2696 = vpack.c.b16 %v2148, %v2144
    %v2697 = vpack.c.b16 %v2149, %v2145
    %v2698 = vpack.c.b16 %v2154, %v2150
    %v2699 = vpack.c.b16 %v2155, %v2151
    %v2700 = vpack.c.b16 %v2156, %v2152
    %v2701 = vpack.c.b16 %v2157, %v2153
    %v2702 = vpack.c.b16 %v2162, %v2158
    %v2703 = vpack.c.b16 %v2163, %v2159
    %v2704 = vpack.c.b16 %v2164, %v2160
    %v2705 = vpack.c.b16 %v2165, %v2161
    %v2706 = vpack.c.b16 %v2170, %v2166
    %v2707 = vpack.c.b16 %v2171, %v2167
    %v2708 = vpack.c.b16 %v2172, %v2168
    %v2709 = vpack.c.b16 %v2173, %v2169
    %v2710 = vpack.c.b16 %v2178, %v2174
    %v2711 = vpack.c.b16 %v2179, %v2175
    %v2712 = vpack.c.b16 %v2180, %v2176
    %v2713 = vpack.c.b16 %v2181, %v2177
    %v2714 = vpack.c.b16 %v2186, %v2182
    %v2715 = vpack.c.b16 %v2187, %v2183
    %v2716 = vpack.c.b16 %v2188, %v2184
    %v2717 = vpack.c.b16 %v2189, %v2185
    %v2718 = vpack.c.b16 %v2194, %v2190
    %v2719 = vpack.c.b16 %v2195, %v2191
    %v2720 = vpack.c.b16 %v2196, %v2192
    %v2721 = vpack.c.b16 %v2197, %v2193
    %v2722 = vpack.c.b16 %v2202, %v2198
    %v2723 = vpack.c.b16 %v2203, %v2199
    %v2724 = vpack.c.b16 %v2204, %v2200
    %v2725 = vpack.c.b16 %v2205, %v2201
    %v2726 = vpack.c.b16 %v2210, %v2206
    %v2727 = vpack.c.b16 %v2211, %v2207
    %v2728 = vpack.c.b16 %v2212, %v2208
    %v2729 = vpack.c.b16 %v2213, %v2209
    %v2730 = vpack.c.b16 %v2218, %v2214
    %v2731 = vpack.c.b16 %v2219, %v2215
    %v2732 = vpack.c.b16 %v2220, %v2216
    %v2733 = vpack.c.b16 %v2221, %v2217
    %3246 = vmatpush.bf16.msra.mxu0 %v2250
    %3247 = vmatpush.bf16.msra.mxu0 %v2246
    %3248 = vmatpush.bf16.msra.mxu0 %v2242
    %3249 = vmatpush.bf16.msra.mxu0 %v2238
    %3250 = vmatpush.bf16.msra.mxu0 %v2234
    %3251 = vmatpush.bf16.msra.mxu0 %v2230
    %3252 = vmatpush.bf16.msra.mxu0 %v2226
    %3253 = vmatpush.bf16.msra.mxu0 %v2222
    %3254 = vmatmul.bf16.gmra.mxu0 %v148
    %v3255 = vpop.f32.mrf.mxu0
    %v3256 = vadd.f32 %v678, %v3255
    %v3257 = vpop.f32.mrf.mxu0
    %v3258 = vadd.f32 %v678, %v3257
    %3259 = vdwg.mxu0
    %3260 = vmatpush.bf16.msra.mxu0 %v2282
    %3261 = vmatpush.bf16.msra.mxu0 %v2278
    %3262 = vmatpush.bf16.msra.mxu0 %v2274
    %3263 = vmatpush.bf16.msra.mxu0 %v2270
    %3264 = vmatpush.bf16.msra.mxu0 %v2266
    %3265 = vmatpush.bf16.msra.mxu0 %v2262
    %3266 = vmatpush.bf16.msra.mxu0 %v2258
    %3267 = vmatpush.bf16.msra.mxu0 %v2254
    %3268 = vmatmul.bf16.gmra.mxu0 %v149
    %v3269 = vpop.f32.mrf.mxu0
    %v3270 = vadd.f32 %v3256, %v3269
    %v3271 = vpop.f32.mrf.mxu0
    %v3272 = vadd.f32 %v3258, %v3271
    %3273 = vdwg.mxu0
    %3274 = vmatpush.bf16.msra.mxu0 %v2314
    %3275 = vmatpush.bf16.msra.mxu0 %v2310
    %3276 = vmatpush.bf16.msra.mxu0 %v2306
    %3277 = vmatpush.bf16.msra.mxu0 %v2302
    %3278 = vmatpush.bf16.msra.mxu0 %v2298
    %3279 = vmatpush.bf16.msra.mxu0 %v2294
    %3280 = vmatpush.bf16.msra.mxu0 %v2290
    %3281 = vmatpush.bf16.msra.mxu0 %v2286
    %3282 = vmatmul.bf16.gmra.mxu0 %v150
    %v3283 = vpop.f32.mrf.mxu0
    %v3284 = vadd.f32 %v3270, %v3283
    %v3285 = vpop.f32.mrf.mxu0
    %v3286 = vadd.f32 %v3272, %v3285
    %3287 = vdwg.mxu0
    %3288 = vmatpush.bf16.msra.mxu0 %v2346
    %3289 = vmatpush.bf16.msra.mxu0 %v2342
    %3290 = vmatpush.bf16.msra.mxu0 %v2338
    %3291 = vmatpush.bf16.msra.mxu0 %v2334
    %3292 = vmatpush.bf16.msra.mxu0 %v2330
    %3293 = vmatpush.bf16.msra.mxu0 %v2326
    %3294 = vmatpush.bf16.msra.mxu0 %v2322
    %3295 = vmatpush.bf16.msra.mxu0 %v2318
    %3296 = vmatmul.bf16.gmra.mxu0 %v151
    %v3297 = vpop.f32.mrf.mxu0
    %v3298 = vadd.f32 %v3284, %v3297
    %v3299 = vpop.f32.mrf.mxu0
    %v3300 = vadd.f32 %v3286, %v3299
    %3301 = vdwg.mxu0
    %3302 = vmatpush.bf16.msra.mxu0 %v2378
    %3303 = vmatpush.bf16.msra.mxu0 %v2374
    %3304 = vmatpush.bf16.msra.mxu0 %v2370
    %3305 = vmatpush.bf16.msra.mxu0 %v2366
    %3306 = vmatpush.bf16.msra.mxu0 %v2362
    %3307 = vmatpush.bf16.msra.mxu0 %v2358
    %3308 = vmatpush.bf16.msra.mxu0 %v2354
    %3309 = vmatpush.bf16.msra.mxu0 %v2350
    %3310 = vmatmul.bf16.gmra.mxu0 %v152
    %v3311 = vpop.f32.mrf.mxu0
    %v3312 = vadd.f32 %v3298, %v3311
    %v3313 = vpop.f32.mrf.mxu0
    %v3314 = vadd.f32 %v3300, %v3313
    %3315 = vdwg.mxu0
    %3316 = vmatpush.bf16.msra.mxu0 %v2410
    %3317 = vmatpush.bf16.msra.mxu0 %v2406
    %3318 = vmatpush.bf16.msra.mxu0 %v2402
    %3319 = vmatpush.bf16.msra.mxu0 %v2398
    %3320 = vmatpush.bf16.msra.mxu0 %v2394
    %3321 = vmatpush.bf16.msra.mxu0 %v2390
    %3322 = vmatpush.bf16.msra.mxu0 %v2386
    %3323 = vmatpush.bf16.msra.mxu0 %v2382
    %3324 = vmatmul.bf16.gmra.mxu0 %v153
    %v3325 = vpop.f32.mrf.mxu0
    %v3326 = vadd.f32 %v3312, %v3325
    %v3327 = vpop.f32.mrf.mxu0
    %v3328 = vadd.f32 %v3314, %v3327
    %3329 = vdwg.mxu0
    %3330 = vmatpush.bf16.msra.mxu0 %v2442
    %3331 = vmatpush.bf16.msra.mxu0 %v2438
    %3332 = vmatpush.bf16.msra.mxu0 %v2434
    %3333 = vmatpush.bf16.msra.mxu0 %v2430
    %3334 = vmatpush.bf16.msra.mxu0 %v2426
    %3335 = vmatpush.bf16.msra.mxu0 %v2422
    %3336 = vmatpush.bf16.msra.mxu0 %v2418
    %3337 = vmatpush.bf16.msra.mxu0 %v2414
    %3338 = vmatmul.bf16.gmra.mxu0 %v154
    %v3339 = vpop.f32.mrf.mxu0
    %v3340 = vadd.f32 %v3326, %v3339
    %v3341 = vpop.f32.mrf.mxu0
    %v3342 = vadd.f32 %v3328, %v3341
    %3343 = vdwg.mxu0
    %3344 = vmatpush.bf16.msra.mxu0 %v2474
    %3345 = vmatpush.bf16.msra.mxu0 %v2470
    %3346 = vmatpush.bf16.msra.mxu0 %v2466
    %3347 = vmatpush.bf16.msra.mxu0 %v2462
    %3348 = vmatpush.bf16.msra.mxu0 %v2458
    %3349 = vmatpush.bf16.msra.mxu0 %v2454
    %3350 = vmatpush.bf16.msra.mxu0 %v2450
    %3351 = vmatpush.bf16.msra.mxu0 %v2446
    %3352 = vmatmul.bf16.gmra.mxu0 %v155
    %v3353 = vpop.f32.mrf.mxu0
    %v3354 = vadd.f32 %v3340, %v3353
    %v3355 = vpop.f32.mrf.mxu0
    %v3356 = vadd.f32 %v3342, %v3355
    %3357 = vdwg.mxu0
    %3358 = vmatpush.bf16.msra.mxu0 %v2506
    %3359 = vmatpush.bf16.msra.mxu0 %v2502
    %3360 = vmatpush.bf16.msra.mxu0 %v2498
    %3361 = vmatpush.bf16.msra.mxu0 %v2494
    %3362 = vmatpush.bf16.msra.mxu0 %v2490
    %3363 = vmatpush.bf16.msra.mxu0 %v2486
    %3364 = vmatpush.bf16.msra.mxu0 %v2482
    %3365 = vmatpush.bf16.msra.mxu0 %v2478
    %3366 = vmatmul.bf16.gmra.mxu0 %v156
    %v3367 = vpop.f32.mrf.mxu0
    %v3368 = vadd.f32 %v3354, %v3367
    %v3369 = vpop.f32.mrf.mxu0
    %v3370 = vadd.f32 %v3356, %v3369
    %3371 = vdwg.mxu0
    %3372 = vmatpush.bf16.msra.mxu0 %v2538
    %3373 = vmatpush.bf16.msra.mxu0 %v2534
    %3374 = vmatpush.bf16.msra.mxu0 %v2530
    %3375 = vmatpush.bf16.msra.mxu0 %v2526
    %3376 = vmatpush.bf16.msra.mxu0 %v2522
    %3377 = vmatpush.bf16.msra.mxu0 %v2518
    %3378 = vmatpush.bf16.msra.mxu0 %v2514
    %3379 = vmatpush.bf16.msra.mxu0 %v2510
    %3380 = vmatmul.bf16.gmra.mxu0 %v157
    %v3381 = vpop.f32.mrf.mxu0
    %v3382 = vadd.f32 %v3368, %v3381
    %v3383 = vpop.f32.mrf.mxu0
    %v3384 = vadd.f32 %v3370, %v3383
    %3385 = vdwg.mxu0
    %3386 = vmatpush.bf16.msra.mxu0 %v2570
    %3387 = vmatpush.bf16.msra.mxu0 %v2566
    %3388 = vmatpush.bf16.msra.mxu0 %v2562
    %3389 = vmatpush.bf16.msra.mxu0 %v2558
    %3390 = vmatpush.bf16.msra.mxu0 %v2554
    %3391 = vmatpush.bf16.msra.mxu0 %v2550
    %3392 = vmatpush.bf16.msra.mxu0 %v2546
    %3393 = vmatpush.bf16.msra.mxu0 %v2542
    %3394 = vmatmul.bf16.gmra.mxu0 %v158
    %v3395 = vpop.f32.mrf.mxu0
    %v3396 = vadd.f32 %v3382, %v3395
    %v3397 = vpop.f32.mrf.mxu0
    %v3398 = vadd.f32 %v3384, %v3397
    %3399 = vdwg.mxu0
    %3400 = vmatpush.bf16.msra.mxu0 %v2602
    %3401 = vmatpush.bf16.msra.mxu0 %v2598
    %3402 = vmatpush.bf16.msra.mxu0 %v2594
    %3403 = vmatpush.bf16.msra.mxu0 %v2590
    %3404 = vmatpush.bf16.msra.mxu0 %v2586
    %3405 = vmatpush.bf16.msra.mxu0 %v2582
    %3406 = vmatpush.bf16.msra.mxu0 %v2578
    %3407 = vmatpush.bf16.msra.mxu0 %v2574
    %3408 = vmatmul.bf16.gmra.mxu0 %v159
    %v3409 = vpop.f32.mrf.mxu0
    %v3410 = vadd.f32 %v3396, %v3409
    %v3411 = vpop.f32.mrf.mxu0
    %v3412 = vadd.f32 %v3398, %v3411
    %3413 = vdwg.mxu0
    %3414 = vmatpush.bf16.msra.mxu0 %v2634
    %3415 = vmatpush.bf16.msra.mxu0 %v2630
    %3416 = vmatpush.bf16.msra.mxu0 %v2626
    %3417 = vmatpush.bf16.msra.mxu0 %v2622
    %3418 = vmatpush.bf16.msra.mxu0 %v2618
    %3419 = vmatpush.bf16.msra.mxu0 %v2614
    %3420 = vmatpush.bf16.msra.mxu0 %v2610
    %3421 = vmatpush.bf16.msra.mxu0 %v2606
    %3422 = vmatmul.bf16.gmra.mxu0 %v160
    %v3423 = vpop.f32.mrf.mxu0
    %v3424 = vadd.f32 %v3410, %v3423
    %v3425 = vpop.f32.mrf.mxu0
    %v3426 = vadd.f32 %v3412, %v3425
    %3427 = vdwg.mxu0
    %3428 = vmatpush.bf16.msra.mxu0 %v2666
    %3429 = vmatpush.bf16.msra.mxu0 %v2662
    %3430 = vmatpush.bf16.msra.mxu0 %v2658
    %3431 = vmatpush.bf16.msra.mxu0 %v2654
    %3432 = vmatpush.bf16.msra.mxu0 %v2650
    %3433 = vmatpush.bf16.msra.mxu0 %v2646
    %3434 = vmatpush.bf16.msra.mxu0 %v2642
    %3435 = vmatpush.bf16.msra.mxu0 %v2638
    %3436 = vmatmul.bf16.gmra.mxu0 %v161
    %v3437 = vpop.f32.mrf.mxu0
    %v3438 = vadd.f32 %v3424, %v3437
    %v3439 = vpop.f32.mrf.mxu0
    %v3440 = vadd.f32 %v3426, %v3439
    %3441 = vdwg.mxu0
    %3442 = vmatpush.bf16.msra.mxu0 %v2698
    %3443 = vmatpush.bf16.msra.mxu0 %v2694
    %3444 = vmatpush.bf16.msra.mxu0 %v2690
    %3445 = vmatpush.bf16.msra.mxu0 %v2686
    %3446 = vmatpush.bf16.msra.mxu0 %v2682
    %3447 = vmatpush.bf16.msra.mxu0 %v2678
    %3448 = vmatpush.bf16.msra.mxu0 %v2674
    %3449 = vmatpush.bf16.msra.mxu0 %v2670
    %3450 = vmatmul.bf16.gmra.mxu0 %v162
    %v3451 = vpop.f32.mrf.mxu0
    %v3452 = vadd.f32 %v3438, %v3451
    %v3453 = vpop.f32.mrf.mxu0
    %v3454 = vadd.f32 %v3440, %v3453
    %3455 = vdwg.mxu0
    %3456 = vmatpush.bf16.msra.mxu0 %v2730
    %3457 = vmatpush.bf16.msra.mxu0 %v2726
    %3458 = vmatpush.bf16.msra.mxu0 %v2722
    %3459 = vmatpush.bf16.msra.mxu0 %v2718
    %3460 = vmatpush.bf16.msra.mxu0 %v2714
    %3461 = vmatpush.bf16.msra.mxu0 %v2710
    %3462 = vmatpush.bf16.msra.mxu0 %v2706
    %3463 = vmatpush.bf16.msra.mxu0 %v2702
    %3464 = vmatmul.bf16.gmra.mxu0 %v163
    %v3465 = vpop.f32.mrf.mxu0
    %v3466 = vadd.f32 %v3452, %v3465
    %v3467 = vpop.f32.mrf.mxu0
    %v3468 = vadd.f32 %v3454, %v3467
    %3469 = vdwg.mxu0
    %3470 = vmatpush.bf16.msra.mxu0 %v2251
    %3471 = vmatpush.bf16.msra.mxu0 %v2247
    %3472 = vmatpush.bf16.msra.mxu0 %v2243
    %3473 = vmatpush.bf16.msra.mxu0 %v2239
    %3474 = vmatpush.bf16.msra.mxu0 %v2235
    %3475 = vmatpush.bf16.msra.mxu0 %v2231
    %3476 = vmatpush.bf16.msra.mxu0 %v2227
    %3477 = vmatpush.bf16.msra.mxu0 %v2223
    %3478 = vmatmul.bf16.gmra.mxu0 %v148
    %v3479 = vpop.f32.mrf.mxu0
    %v3480 = vadd.f32 %v679, %v3479
    %v3481 = vpop.f32.mrf.mxu0
    %v3482 = vadd.f32 %v679, %v3481
    %3483 = vdwg.mxu0
    %3484 = vmatpush.bf16.msra.mxu0 %v2283
    %3485 = vmatpush.bf16.msra.mxu0 %v2279
    %3486 = vmatpush.bf16.msra.mxu0 %v2275
    %3487 = vmatpush.bf16.msra.mxu0 %v2271
    %3488 = vmatpush.bf16.msra.mxu0 %v2267
    %3489 = vmatpush.bf16.msra.mxu0 %v2263
    %3490 = vmatpush.bf16.msra.mxu0 %v2259
    %3491 = vmatpush.bf16.msra.mxu0 %v2255
    %3492 = vmatmul.bf16.gmra.mxu0 %v149
    %v3493 = vpop.f32.mrf.mxu0
    %v3494 = vadd.f32 %v3480, %v3493
    %v3495 = vpop.f32.mrf.mxu0
    %v3496 = vadd.f32 %v3482, %v3495
    %3497 = vdwg.mxu0
    %3498 = vmatpush.bf16.msra.mxu0 %v2315
    %3499 = vmatpush.bf16.msra.mxu0 %v2311
    %3500 = vmatpush.bf16.msra.mxu0 %v2307
    %3501 = vmatpush.bf16.msra.mxu0 %v2303
    %3502 = vmatpush.bf16.msra.mxu0 %v2299
    %3503 = vmatpush.bf16.msra.mxu0 %v2295
    %3504 = vmatpush.bf16.msra.mxu0 %v2291
    %3505 = vmatpush.bf16.msra.mxu0 %v2287
    %3506 = vmatmul.bf16.gmra.mxu0 %v150
    %v3507 = vpop.f32.mrf.mxu0
    %v3508 = vadd.f32 %v3494, %v3507
    %v3509 = vpop.f32.mrf.mxu0
    %v3510 = vadd.f32 %v3496, %v3509
    %3511 = vdwg.mxu0
    %3512 = vmatpush.bf16.msra.mxu0 %v2347
    %3513 = vmatpush.bf16.msra.mxu0 %v2343
    %3514 = vmatpush.bf16.msra.mxu0 %v2339
    %3515 = vmatpush.bf16.msra.mxu0 %v2335
    %3516 = vmatpush.bf16.msra.mxu0 %v2331
    %3517 = vmatpush.bf16.msra.mxu0 %v2327
    %3518 = vmatpush.bf16.msra.mxu0 %v2323
    %3519 = vmatpush.bf16.msra.mxu0 %v2319
    %3520 = vmatmul.bf16.gmra.mxu0 %v151
    %v3521 = vpop.f32.mrf.mxu0
    %v3522 = vadd.f32 %v3508, %v3521
    %v3523 = vpop.f32.mrf.mxu0
    %v3524 = vadd.f32 %v3510, %v3523
    %3525 = vdwg.mxu0
    %3526 = vmatpush.bf16.msra.mxu0 %v2379
    %3527 = vmatpush.bf16.msra.mxu0 %v2375
    %3528 = vmatpush.bf16.msra.mxu0 %v2371
    %3529 = vmatpush.bf16.msra.mxu0 %v2367
    %3530 = vmatpush.bf16.msra.mxu0 %v2363
    %3531 = vmatpush.bf16.msra.mxu0 %v2359
    %3532 = vmatpush.bf16.msra.mxu0 %v2355
    %3533 = vmatpush.bf16.msra.mxu0 %v2351
    %3534 = vmatmul.bf16.gmra.mxu0 %v152
    %v3535 = vpop.f32.mrf.mxu0
    %v3536 = vadd.f32 %v3522, %v3535
    %v3537 = vpop.f32.mrf.mxu0
    %v3538 = vadd.f32 %v3524, %v3537
    %3539 = vdwg.mxu0
    %3540 = vmatpush.bf16.msra.mxu0 %v2411
    %3541 = vmatpush.bf16.msra.mxu0 %v2407
    %3542 = vmatpush.bf16.msra.mxu0 %v2403
    %3543 = vmatpush.bf16.msra.mxu0 %v2399
    %3544 = vmatpush.bf16.msra.mxu0 %v2395
    %3545 = vmatpush.bf16.msra.mxu0 %v2391
    %3546 = vmatpush.bf16.msra.mxu0 %v2387
    %3547 = vmatpush.bf16.msra.mxu0 %v2383
    %3548 = vmatmul.bf16.gmra.mxu0 %v153
    %v3549 = vpop.f32.mrf.mxu0
    %v3550 = vadd.f32 %v3536, %v3549
    %v3551 = vpop.f32.mrf.mxu0
    %v3552 = vadd.f32 %v3538, %v3551
    %3553 = vdwg.mxu0
    %3554 = vmatpush.bf16.msra.mxu0 %v2443
    %3555 = vmatpush.bf16.msra.mxu0 %v2439
    %3556 = vmatpush.bf16.msra.mxu0 %v2435
    %3557 = vmatpush.bf16.msra.mxu0 %v2431
    %3558 = vmatpush.bf16.msra.mxu0 %v2427
    %3559 = vmatpush.bf16.msra.mxu0 %v2423
    %3560 = vmatpush.bf16.msra.mxu0 %v2419
    %3561 = vmatpush.bf16.msra.mxu0 %v2415
    %3562 = vmatmul.bf16.gmra.mxu0 %v154
    %v3563 = vpop.f32.mrf.mxu0
    %v3564 = vadd.f32 %v3550, %v3563
    %v3565 = vpop.f32.mrf.mxu0
    %v3566 = vadd.f32 %v3552, %v3565
    %3567 = vdwg.mxu0
    %3568 = vmatpush.bf16.msra.mxu0 %v2475
    %3569 = vmatpush.bf16.msra.mxu0 %v2471
    %3570 = vmatpush.bf16.msra.mxu0 %v2467
    %3571 = vmatpush.bf16.msra.mxu0 %v2463
    %3572 = vmatpush.bf16.msra.mxu0 %v2459
    %3573 = vmatpush.bf16.msra.mxu0 %v2455
    %3574 = vmatpush.bf16.msra.mxu0 %v2451
    %3575 = vmatpush.bf16.msra.mxu0 %v2447
    %3576 = vmatmul.bf16.gmra.mxu0 %v155
    %v3577 = vpop.f32.mrf.mxu0
    %v3578 = vadd.f32 %v3564, %v3577
    %v3579 = vpop.f32.mrf.mxu0
    %v3580 = vadd.f32 %v3566, %v3579
    %3581 = vdwg.mxu0
    %3582 = vmatpush.bf16.msra.mxu0 %v2507
    %3583 = vmatpush.bf16.msra.mxu0 %v2503
    %3584 = vmatpush.bf16.msra.mxu0 %v2499
    %3585 = vmatpush.bf16.msra.mxu0 %v2495
    %3586 = vmatpush.bf16.msra.mxu0 %v2491
    %3587 = vmatpush.bf16.msra.mxu0 %v2487
    %3588 = vmatpush.bf16.msra.mxu0 %v2483
    %3589 = vmatpush.bf16.msra.mxu0 %v2479
    %3590 = vmatmul.bf16.gmra.mxu0 %v156
    %v3591 = vpop.f32.mrf.mxu0
    %v3592 = vadd.f32 %v3578, %v3591
    %v3593 = vpop.f32.mrf.mxu0
    %v3594 = vadd.f32 %v3580, %v3593
    %3595 = vdwg.mxu0
    %3596 = vmatpush.bf16.msra.mxu0 %v2539
    %3597 = vmatpush.bf16.msra.mxu0 %v2535
    %3598 = vmatpush.bf16.msra.mxu0 %v2531
    %3599 = vmatpush.bf16.msra.mxu0 %v2527
    %3600 = vmatpush.bf16.msra.mxu0 %v2523
    %3601 = vmatpush.bf16.msra.mxu0 %v2519
    %3602 = vmatpush.bf16.msra.mxu0 %v2515
    %3603 = vmatpush.bf16.msra.mxu0 %v2511
    %3604 = vmatmul.bf16.gmra.mxu0 %v157
    %v3605 = vpop.f32.mrf.mxu0
    %v3606 = vadd.f32 %v3592, %v3605
    %v3607 = vpop.f32.mrf.mxu0
    %v3608 = vadd.f32 %v3594, %v3607
    %3609 = vdwg.mxu0
    %3610 = vmatpush.bf16.msra.mxu0 %v2571
    %3611 = vmatpush.bf16.msra.mxu0 %v2567
    %3612 = vmatpush.bf16.msra.mxu0 %v2563
    %3613 = vmatpush.bf16.msra.mxu0 %v2559
    %3614 = vmatpush.bf16.msra.mxu0 %v2555
    %3615 = vmatpush.bf16.msra.mxu0 %v2551
    %3616 = vmatpush.bf16.msra.mxu0 %v2547
    %3617 = vmatpush.bf16.msra.mxu0 %v2543
    %3618 = vmatmul.bf16.gmra.mxu0 %v158
    %v3619 = vpop.f32.mrf.mxu0
    %v3620 = vadd.f32 %v3606, %v3619
    %v3621 = vpop.f32.mrf.mxu0
    %v3622 = vadd.f32 %v3608, %v3621
    %3623 = vdwg.mxu0
    %3624 = vmatpush.bf16.msra.mxu0 %v2603
    %3625 = vmatpush.bf16.msra.mxu0 %v2599
    %3626 = vmatpush.bf16.msra.mxu0 %v2595
    %3627 = vmatpush.bf16.msra.mxu0 %v2591
    %3628 = vmatpush.bf16.msra.mxu0 %v2587
    %3629 = vmatpush.bf16.msra.mxu0 %v2583
    %3630 = vmatpush.bf16.msra.mxu0 %v2579
    %3631 = vmatpush.bf16.msra.mxu0 %v2575
    %3632 = vmatmul.bf16.gmra.mxu0 %v159
    %v3633 = vpop.f32.mrf.mxu0
    %v3634 = vadd.f32 %v3620, %v3633
    %v3635 = vpop.f32.mrf.mxu0
    %v3636 = vadd.f32 %v3622, %v3635
    %3637 = vdwg.mxu0
    %3638 = vmatpush.bf16.msra.mxu0 %v2635
    %3639 = vmatpush.bf16.msra.mxu0 %v2631
    %3640 = vmatpush.bf16.msra.mxu0 %v2627
    %3641 = vmatpush.bf16.msra.mxu0 %v2623
    %3642 = vmatpush.bf16.msra.mxu0 %v2619
    %3643 = vmatpush.bf16.msra.mxu0 %v2615
    %3644 = vmatpush.bf16.msra.mxu0 %v2611
    %3645 = vmatpush.bf16.msra.mxu0 %v2607
    %3646 = vmatmul.bf16.gmra.mxu0 %v160
    %v3647 = vpop.f32.mrf.mxu0
    %v3648 = vadd.f32 %v3634, %v3647
    %v3649 = vpop.f32.mrf.mxu0
    %v3650 = vadd.f32 %v3636, %v3649
    %3651 = vdwg.mxu0
    %3652 = vmatpush.bf16.msra.mxu0 %v2667
    %3653 = vmatpush.bf16.msra.mxu0 %v2663
    %3654 = vmatpush.bf16.msra.mxu0 %v2659
    %3655 = vmatpush.bf16.msra.mxu0 %v2655
    %3656 = vmatpush.bf16.msra.mxu0 %v2651
    %3657 = vmatpush.bf16.msra.mxu0 %v2647
    %3658 = vmatpush.bf16.msra.mxu0 %v2643
    %3659 = vmatpush.bf16.msra.mxu0 %v2639
    %3660 = vmatmul.bf16.gmra.mxu0 %v161
    %v3661 = vpop.f32.mrf.mxu0
    %v3662 = vadd.f32 %v3648, %v3661
    %v3663 = vpop.f32.mrf.mxu0
    %v3664 = vadd.f32 %v3650, %v3663
    %3665 = vdwg.mxu0
    %3666 = vmatpush.bf16.msra.mxu0 %v2699
    %3667 = vmatpush.bf16.msra.mxu0 %v2695
    %3668 = vmatpush.bf16.msra.mxu0 %v2691
    %3669 = vmatpush.bf16.msra.mxu0 %v2687
    %3670 = vmatpush.bf16.msra.mxu0 %v2683
    %3671 = vmatpush.bf16.msra.mxu0 %v2679
    %3672 = vmatpush.bf16.msra.mxu0 %v2675
    %3673 = vmatpush.bf16.msra.mxu0 %v2671
    %3674 = vmatmul.bf16.gmra.mxu0 %v162
    %v3675 = vpop.f32.mrf.mxu0
    %v3676 = vadd.f32 %v3662, %v3675
    %v3677 = vpop.f32.mrf.mxu0
    %v3678 = vadd.f32 %v3664, %v3677
    %3679 = vdwg.mxu0
    %3680 = vmatpush.bf16.msra.mxu0 %v2731
    %3681 = vmatpush.bf16.msra.mxu0 %v2727
    %3682 = vmatpush.bf16.msra.mxu0 %v2723
    %3683 = vmatpush.bf16.msra.mxu0 %v2719
    %3684 = vmatpush.bf16.msra.mxu0 %v2715
    %3685 = vmatpush.bf16.msra.mxu0 %v2711
    %3686 = vmatpush.bf16.msra.mxu0 %v2707
    %3687 = vmatpush.bf16.msra.mxu0 %v2703
    %3688 = vmatmul.bf16.gmra.mxu0 %v163
    %v3689 = vpop.f32.mrf.mxu0
    %v3690 = vadd.f32 %v3676, %v3689
    %v3691 = vpop.f32.mrf.mxu0
    %v3692 = vadd.f32 %v3678, %v3691
    %3693 = vdwg.mxu0
    %3694 = vmatpush.bf16.msra.mxu0 %v2252
    %3695 = vmatpush.bf16.msra.mxu0 %v2248
    %3696 = vmatpush.bf16.msra.mxu0 %v2244
    %3697 = vmatpush.bf16.msra.mxu0 %v2240
    %3698 = vmatpush.bf16.msra.mxu0 %v2236
    %3699 = vmatpush.bf16.msra.mxu0 %v2232
    %3700 = vmatpush.bf16.msra.mxu0 %v2228
    %3701 = vmatpush.bf16.msra.mxu0 %v2224
    %3702 = vmatmul.bf16.gmra.mxu0 %v148
    %v3703 = vpop.f32.mrf.mxu0
    %v3704 = vadd.f32 %v680, %v3703
    %v3705 = vpop.f32.mrf.mxu0
    %v3706 = vadd.f32 %v680, %v3705
    %3707 = vdwg.mxu0
    %3708 = vmatpush.bf16.msra.mxu0 %v2284
    %3709 = vmatpush.bf16.msra.mxu0 %v2280
    %3710 = vmatpush.bf16.msra.mxu0 %v2276
    %3711 = vmatpush.bf16.msra.mxu0 %v2272
    %3712 = vmatpush.bf16.msra.mxu0 %v2268
    %3713 = vmatpush.bf16.msra.mxu0 %v2264
    %3714 = vmatpush.bf16.msra.mxu0 %v2260
    %3715 = vmatpush.bf16.msra.mxu0 %v2256
    %3716 = vmatmul.bf16.gmra.mxu0 %v149
    %v3717 = vpop.f32.mrf.mxu0
    %v3718 = vadd.f32 %v3704, %v3717
    %v3719 = vpop.f32.mrf.mxu0
    %v3720 = vadd.f32 %v3706, %v3719
    %3721 = vdwg.mxu0
    %3722 = vmatpush.bf16.msra.mxu0 %v2316
    %3723 = vmatpush.bf16.msra.mxu0 %v2312
    %3724 = vmatpush.bf16.msra.mxu0 %v2308
    %3725 = vmatpush.bf16.msra.mxu0 %v2304
    %3726 = vmatpush.bf16.msra.mxu0 %v2300
    %3727 = vmatpush.bf16.msra.mxu0 %v2296
    %3728 = vmatpush.bf16.msra.mxu0 %v2292
    %3729 = vmatpush.bf16.msra.mxu0 %v2288
    %3730 = vmatmul.bf16.gmra.mxu0 %v150
    %v3731 = vpop.f32.mrf.mxu0
    %v3732 = vadd.f32 %v3718, %v3731
    %v3733 = vpop.f32.mrf.mxu0
    %v3734 = vadd.f32 %v3720, %v3733
    %3735 = vdwg.mxu0
    %3736 = vmatpush.bf16.msra.mxu0 %v2348
    %3737 = vmatpush.bf16.msra.mxu0 %v2344
    %3738 = vmatpush.bf16.msra.mxu0 %v2340
    %3739 = vmatpush.bf16.msra.mxu0 %v2336
    %3740 = vmatpush.bf16.msra.mxu0 %v2332
    %3741 = vmatpush.bf16.msra.mxu0 %v2328
    %3742 = vmatpush.bf16.msra.mxu0 %v2324
    %3743 = vmatpush.bf16.msra.mxu0 %v2320
    %3744 = vmatmul.bf16.gmra.mxu0 %v151
    %v3745 = vpop.f32.mrf.mxu0
    %v3746 = vadd.f32 %v3732, %v3745
    %v3747 = vpop.f32.mrf.mxu0
    %v3748 = vadd.f32 %v3734, %v3747
    %3749 = vdwg.mxu0
    %3750 = vmatpush.bf16.msra.mxu0 %v2380
    %3751 = vmatpush.bf16.msra.mxu0 %v2376
    %3752 = vmatpush.bf16.msra.mxu0 %v2372
    %3753 = vmatpush.bf16.msra.mxu0 %v2368
    %3754 = vmatpush.bf16.msra.mxu0 %v2364
    %3755 = vmatpush.bf16.msra.mxu0 %v2360
    %3756 = vmatpush.bf16.msra.mxu0 %v2356
    %3757 = vmatpush.bf16.msra.mxu0 %v2352
    %3758 = vmatmul.bf16.gmra.mxu0 %v152
    %v3759 = vpop.f32.mrf.mxu0
    %v3760 = vadd.f32 %v3746, %v3759
    %v3761 = vpop.f32.mrf.mxu0
    %v3762 = vadd.f32 %v3748, %v3761
    %3763 = vdwg.mxu0
    %3764 = vmatpush.bf16.msra.mxu0 %v2412
    %3765 = vmatpush.bf16.msra.mxu0 %v2408
    %3766 = vmatpush.bf16.msra.mxu0 %v2404
    %3767 = vmatpush.bf16.msra.mxu0 %v2400
    %3768 = vmatpush.bf16.msra.mxu0 %v2396
    %3769 = vmatpush.bf16.msra.mxu0 %v2392
    %3770 = vmatpush.bf16.msra.mxu0 %v2388
    %3771 = vmatpush.bf16.msra.mxu0 %v2384
    %3772 = vmatmul.bf16.gmra.mxu0 %v153
    %v3773 = vpop.f32.mrf.mxu0
    %v3774 = vadd.f32 %v3760, %v3773
    %v3775 = vpop.f32.mrf.mxu0
    %v3776 = vadd.f32 %v3762, %v3775
    %3777 = vdwg.mxu0
    %3778 = vmatpush.bf16.msra.mxu0 %v2444
    %3779 = vmatpush.bf16.msra.mxu0 %v2440
    %3780 = vmatpush.bf16.msra.mxu0 %v2436
    %3781 = vmatpush.bf16.msra.mxu0 %v2432
    %3782 = vmatpush.bf16.msra.mxu0 %v2428
    %3783 = vmatpush.bf16.msra.mxu0 %v2424
    %3784 = vmatpush.bf16.msra.mxu0 %v2420
    %3785 = vmatpush.bf16.msra.mxu0 %v2416
    %3786 = vmatmul.bf16.gmra.mxu0 %v154
    %v3787 = vpop.f32.mrf.mxu0
    %v3788 = vadd.f32 %v3774, %v3787
    %v3789 = vpop.f32.mrf.mxu0
    %v3790 = vadd.f32 %v3776, %v3789
    %3791 = vdwg.mxu0
    %3792 = vmatpush.bf16.msra.mxu0 %v2476
    %3793 = vmatpush.bf16.msra.mxu0 %v2472
    %3794 = vmatpush.bf16.msra.mxu0 %v2468
    %3795 = vmatpush.bf16.msra.mxu0 %v2464
    %3796 = vmatpush.bf16.msra.mxu0 %v2460
    %3797 = vmatpush.bf16.msra.mxu0 %v2456
    %3798 = vmatpush.bf16.msra.mxu0 %v2452
    %3799 = vmatpush.bf16.msra.mxu0 %v2448
    %3800 = vmatmul.bf16.gmra.mxu0 %v155
    %v3801 = vpop.f32.mrf.mxu0
    %v3802 = vadd.f32 %v3788, %v3801
    %v3803 = vpop.f32.mrf.mxu0
    %v3804 = vadd.f32 %v3790, %v3803
    %3805 = vdwg.mxu0
    %3806 = vmatpush.bf16.msra.mxu0 %v2508
    %3807 = vmatpush.bf16.msra.mxu0 %v2504
    %3808 = vmatpush.bf16.msra.mxu0 %v2500
    %3809 = vmatpush.bf16.msra.mxu0 %v2496
    %3810 = vmatpush.bf16.msra.mxu0 %v2492
    %3811 = vmatpush.bf16.msra.mxu0 %v2488
    %3812 = vmatpush.bf16.msra.mxu0 %v2484
    %3813 = vmatpush.bf16.msra.mxu0 %v2480
    %3814 = vmatmul.bf16.gmra.mxu0 %v156
    %v3815 = vpop.f32.mrf.mxu0
    %v3816 = vadd.f32 %v3802, %v3815
    %v3817 = vpop.f32.mrf.mxu0
    %v3818 = vadd.f32 %v3804, %v3817
    %3819 = vdwg.mxu0
    %3820 = vmatpush.bf16.msra.mxu0 %v2540
    %3821 = vmatpush.bf16.msra.mxu0 %v2536
    %3822 = vmatpush.bf16.msra.mxu0 %v2532
    %3823 = vmatpush.bf16.msra.mxu0 %v2528
    %3824 = vmatpush.bf16.msra.mxu0 %v2524
    %3825 = vmatpush.bf16.msra.mxu0 %v2520
    %3826 = vmatpush.bf16.msra.mxu0 %v2516
    %3827 = vmatpush.bf16.msra.mxu0 %v2512
    %3828 = vmatmul.bf16.gmra.mxu0 %v157
    %v3829 = vpop.f32.mrf.mxu0
    %v3830 = vadd.f32 %v3816, %v3829
    %v3831 = vpop.f32.mrf.mxu0
    %v3832 = vadd.f32 %v3818, %v3831
    %3833 = vdwg.mxu0
    %3834 = vmatpush.bf16.msra.mxu0 %v2572
    %3835 = vmatpush.bf16.msra.mxu0 %v2568
    %3836 = vmatpush.bf16.msra.mxu0 %v2564
    %3837 = vmatpush.bf16.msra.mxu0 %v2560
    %3838 = vmatpush.bf16.msra.mxu0 %v2556
    %3839 = vmatpush.bf16.msra.mxu0 %v2552
    %3840 = vmatpush.bf16.msra.mxu0 %v2548
    %3841 = vmatpush.bf16.msra.mxu0 %v2544
    %3842 = vmatmul.bf16.gmra.mxu0 %v158
    %v3843 = vpop.f32.mrf.mxu0
    %v3844 = vadd.f32 %v3830, %v3843
    %v3845 = vpop.f32.mrf.mxu0
    %v3846 = vadd.f32 %v3832, %v3845
    %3847 = vdwg.mxu0
    %3848 = vmatpush.bf16.msra.mxu0 %v2604
    %3849 = vmatpush.bf16.msra.mxu0 %v2600
    %3850 = vmatpush.bf16.msra.mxu0 %v2596
    %3851 = vmatpush.bf16.msra.mxu0 %v2592
    %3852 = vmatpush.bf16.msra.mxu0 %v2588
    %3853 = vmatpush.bf16.msra.mxu0 %v2584
    %3854 = vmatpush.bf16.msra.mxu0 %v2580
    %3855 = vmatpush.bf16.msra.mxu0 %v2576
    %3856 = vmatmul.bf16.gmra.mxu0 %v159
    %v3857 = vpop.f32.mrf.mxu0
    %v3858 = vadd.f32 %v3844, %v3857
    %v3859 = vpop.f32.mrf.mxu0
    %v3860 = vadd.f32 %v3846, %v3859
    %3861 = vdwg.mxu0
    %3862 = vmatpush.bf16.msra.mxu0 %v2636
    %3863 = vmatpush.bf16.msra.mxu0 %v2632
    %3864 = vmatpush.bf16.msra.mxu0 %v2628
    %3865 = vmatpush.bf16.msra.mxu0 %v2624
    %3866 = vmatpush.bf16.msra.mxu0 %v2620
    %3867 = vmatpush.bf16.msra.mxu0 %v2616
    %3868 = vmatpush.bf16.msra.mxu0 %v2612
    %3869 = vmatpush.bf16.msra.mxu0 %v2608
    %3870 = vmatmul.bf16.gmra.mxu0 %v160
    %v3871 = vpop.f32.mrf.mxu0
    %v3872 = vadd.f32 %v3858, %v3871
    %v3873 = vpop.f32.mrf.mxu0
    %v3874 = vadd.f32 %v3860, %v3873
    %3875 = vdwg.mxu0
    %3876 = vmatpush.bf16.msra.mxu0 %v2668
    %3877 = vmatpush.bf16.msra.mxu0 %v2664
    %3878 = vmatpush.bf16.msra.mxu0 %v2660
    %3879 = vmatpush.bf16.msra.mxu0 %v2656
    %3880 = vmatpush.bf16.msra.mxu0 %v2652
    %3881 = vmatpush.bf16.msra.mxu0 %v2648
    %3882 = vmatpush.bf16.msra.mxu0 %v2644
    %3883 = vmatpush.bf16.msra.mxu0 %v2640
    %3884 = vmatmul.bf16.gmra.mxu0 %v161
    %v3885 = vpop.f32.mrf.mxu0
    %v3886 = vadd.f32 %v3872, %v3885
    %v3887 = vpop.f32.mrf.mxu0
    %v3888 = vadd.f32 %v3874, %v3887
    %3889 = vdwg.mxu0
    %3890 = vmatpush.bf16.msra.mxu0 %v2700
    %3891 = vmatpush.bf16.msra.mxu0 %v2696
    %3892 = vmatpush.bf16.msra.mxu0 %v2692
    %3893 = vmatpush.bf16.msra.mxu0 %v2688
    %3894 = vmatpush.bf16.msra.mxu0 %v2684
    %3895 = vmatpush.bf16.msra.mxu0 %v2680
    %3896 = vmatpush.bf16.msra.mxu0 %v2676
    %3897 = vmatpush.bf16.msra.mxu0 %v2672
    %3898 = vmatmul.bf16.gmra.mxu0 %v162
    %v3899 = vpop.f32.mrf.mxu0
    %v3900 = vadd.f32 %v3886, %v3899
    %v3901 = vpop.f32.mrf.mxu0
    %v3902 = vadd.f32 %v3888, %v3901
    %3903 = vdwg.mxu0
    %3904 = vmatpush.bf16.msra.mxu0 %v2732
    %3905 = vmatpush.bf16.msra.mxu0 %v2728
    %3906 = vmatpush.bf16.msra.mxu0 %v2724
    %3907 = vmatpush.bf16.msra.mxu0 %v2720
    %3908 = vmatpush.bf16.msra.mxu0 %v2716
    %3909 = vmatpush.bf16.msra.mxu0 %v2712
    %3910 = vmatpush.bf16.msra.mxu0 %v2708
    %3911 = vmatpush.bf16.msra.mxu0 %v2704
    %3912 = vmatmul.bf16.gmra.mxu0 %v163
    %v3913 = vpop.f32.mrf.mxu0
    %v3914 = vadd.f32 %v3900, %v3913
    %v3915 = vpop.f32.mrf.mxu0
    %v3916 = vadd.f32 %v3902, %v3915
    %3917 = vdwg.mxu0
    %3918 = vmatpush.bf16.msra.mxu0 %v2253
    %3919 = vmatpush.bf16.msra.mxu0 %v2249
    %3920 = vmatpush.bf16.msra.mxu0 %v2245
    %3921 = vmatpush.bf16.msra.mxu0 %v2241
    %3922 = vmatpush.bf16.msra.mxu0 %v2237
    %3923 = vmatpush.bf16.msra.mxu0 %v2233
    %3924 = vmatpush.bf16.msra.mxu0 %v2229
    %3925 = vmatpush.bf16.msra.mxu0 %v2225
    %3926 = vmatmul.bf16.gmra.mxu0 %v148
    %v3927 = vpop.f32.mrf.mxu0
    %v3928 = vadd.f32 %v681, %v3927
    %v3929 = vpop.f32.mrf.mxu0
    %v3930 = vadd.f32 %v681, %v3929
    %3931 = vdwg.mxu0
    %3932 = vmatpush.bf16.msra.mxu0 %v2285
    %3933 = vmatpush.bf16.msra.mxu0 %v2281
    %3934 = vmatpush.bf16.msra.mxu0 %v2277
    %3935 = vmatpush.bf16.msra.mxu0 %v2273
    %3936 = vmatpush.bf16.msra.mxu0 %v2269
    %3937 = vmatpush.bf16.msra.mxu0 %v2265
    %3938 = vmatpush.bf16.msra.mxu0 %v2261
    %3939 = vmatpush.bf16.msra.mxu0 %v2257
    %3940 = vmatmul.bf16.gmra.mxu0 %v149
    %v3941 = vpop.f32.mrf.mxu0
    %v3942 = vadd.f32 %v3928, %v3941
    %v3943 = vpop.f32.mrf.mxu0
    %v3944 = vadd.f32 %v3930, %v3943
    %3945 = vdwg.mxu0
    %3946 = vmatpush.bf16.msra.mxu0 %v2317
    %3947 = vmatpush.bf16.msra.mxu0 %v2313
    %3948 = vmatpush.bf16.msra.mxu0 %v2309
    %3949 = vmatpush.bf16.msra.mxu0 %v2305
    %3950 = vmatpush.bf16.msra.mxu0 %v2301
    %3951 = vmatpush.bf16.msra.mxu0 %v2297
    %3952 = vmatpush.bf16.msra.mxu0 %v2293
    %3953 = vmatpush.bf16.msra.mxu0 %v2289
    %3954 = vmatmul.bf16.gmra.mxu0 %v150
    %v3955 = vpop.f32.mrf.mxu0
    %v3956 = vadd.f32 %v3942, %v3955
    %v3957 = vpop.f32.mrf.mxu0
    %v3958 = vadd.f32 %v3944, %v3957
    %3959 = vdwg.mxu0
    %3960 = vmatpush.bf16.msra.mxu0 %v2349
    %3961 = vmatpush.bf16.msra.mxu0 %v2345
    %3962 = vmatpush.bf16.msra.mxu0 %v2341
    %3963 = vmatpush.bf16.msra.mxu0 %v2337
    %3964 = vmatpush.bf16.msra.mxu0 %v2333
    %3965 = vmatpush.bf16.msra.mxu0 %v2329
    %3966 = vmatpush.bf16.msra.mxu0 %v2325
    %3967 = vmatpush.bf16.msra.mxu0 %v2321
    %3968 = vmatmul.bf16.gmra.mxu0 %v151
    %v3969 = vpop.f32.mrf.mxu0
    %v3970 = vadd.f32 %v3956, %v3969
    %v3971 = vpop.f32.mrf.mxu0
    %v3972 = vadd.f32 %v3958, %v3971
    %3973 = vdwg.mxu0
    %3974 = vmatpush.bf16.msra.mxu0 %v2381
    %3975 = vmatpush.bf16.msra.mxu0 %v2377
    %3976 = vmatpush.bf16.msra.mxu0 %v2373
    %3977 = vmatpush.bf16.msra.mxu0 %v2369
    %3978 = vmatpush.bf16.msra.mxu0 %v2365
    %3979 = vmatpush.bf16.msra.mxu0 %v2361
    %3980 = vmatpush.bf16.msra.mxu0 %v2357
    %3981 = vmatpush.bf16.msra.mxu0 %v2353
    %3982 = vmatmul.bf16.gmra.mxu0 %v152
    %v3983 = vpop.f32.mrf.mxu0
    %v3984 = vadd.f32 %v3970, %v3983
    %v3985 = vpop.f32.mrf.mxu0
    %v3986 = vadd.f32 %v3972, %v3985
    %3987 = vdwg.mxu0
    %3988 = vmatpush.bf16.msra.mxu0 %v2413
    %3989 = vmatpush.bf16.msra.mxu0 %v2409
    %3990 = vmatpush.bf16.msra.mxu0 %v2405
    %3991 = vmatpush.bf16.msra.mxu0 %v2401
    %3992 = vmatpush.bf16.msra.mxu0 %v2397
    %3993 = vmatpush.bf16.msra.mxu0 %v2393
    %3994 = vmatpush.bf16.msra.mxu0 %v2389
    %3995 = vmatpush.bf16.msra.mxu0 %v2385
    %3996 = vmatmul.bf16.gmra.mxu0 %v153
    %v3997 = vpop.f32.mrf.mxu0
    %v3998 = vadd.f32 %v3984, %v3997
    %v3999 = vpop.f32.mrf.mxu0
    %v4000 = vadd.f32 %v3986, %v3999
    %4001 = vdwg.mxu0
    %4002 = vmatpush.bf16.msra.mxu0 %v2445
    %4003 = vmatpush.bf16.msra.mxu0 %v2441
    %4004 = vmatpush.bf16.msra.mxu0 %v2437
    %4005 = vmatpush.bf16.msra.mxu0 %v2433
    %4006 = vmatpush.bf16.msra.mxu0 %v2429
    %4007 = vmatpush.bf16.msra.mxu0 %v2425
    %4008 = vmatpush.bf16.msra.mxu0 %v2421
    %4009 = vmatpush.bf16.msra.mxu0 %v2417
    %4010 = vmatmul.bf16.gmra.mxu0 %v154
    %v4011 = vpop.f32.mrf.mxu0
    %v4012 = vadd.f32 %v3998, %v4011
    %v4013 = vpop.f32.mrf.mxu0
    %v4014 = vadd.f32 %v4000, %v4013
    %4015 = vdwg.mxu0
    %4016 = vmatpush.bf16.msra.mxu0 %v2477
    %4017 = vmatpush.bf16.msra.mxu0 %v2473
    %4018 = vmatpush.bf16.msra.mxu0 %v2469
    %4019 = vmatpush.bf16.msra.mxu0 %v2465
    %4020 = vmatpush.bf16.msra.mxu0 %v2461
    %4021 = vmatpush.bf16.msra.mxu0 %v2457
    %4022 = vmatpush.bf16.msra.mxu0 %v2453
    %4023 = vmatpush.bf16.msra.mxu0 %v2449
    %4024 = vmatmul.bf16.gmra.mxu0 %v155
    %v4025 = vpop.f32.mrf.mxu0
    %v4026 = vadd.f32 %v4012, %v4025
    %v4027 = vpop.f32.mrf.mxu0
    %v4028 = vadd.f32 %v4014, %v4027
    %4029 = vdwg.mxu0
    %4030 = vmatpush.bf16.msra.mxu0 %v2509
    %4031 = vmatpush.bf16.msra.mxu0 %v2505
    %4032 = vmatpush.bf16.msra.mxu0 %v2501
    %4033 = vmatpush.bf16.msra.mxu0 %v2497
    %4034 = vmatpush.bf16.msra.mxu0 %v2493
    %4035 = vmatpush.bf16.msra.mxu0 %v2489
    %4036 = vmatpush.bf16.msra.mxu0 %v2485
    %4037 = vmatpush.bf16.msra.mxu0 %v2481
    %4038 = vmatmul.bf16.gmra.mxu0 %v156
    %v4039 = vpop.f32.mrf.mxu0
    %v4040 = vadd.f32 %v4026, %v4039
    %v4041 = vpop.f32.mrf.mxu0
    %v4042 = vadd.f32 %v4028, %v4041
    %4043 = vdwg.mxu0
    %4044 = vmatpush.bf16.msra.mxu0 %v2541
    %4045 = vmatpush.bf16.msra.mxu0 %v2537
    %4046 = vmatpush.bf16.msra.mxu0 %v2533
    %4047 = vmatpush.bf16.msra.mxu0 %v2529
    %4048 = vmatpush.bf16.msra.mxu0 %v2525
    %4049 = vmatpush.bf16.msra.mxu0 %v2521
    %4050 = vmatpush.bf16.msra.mxu0 %v2517
    %4051 = vmatpush.bf16.msra.mxu0 %v2513
    %4052 = vmatmul.bf16.gmra.mxu0 %v157
    %v4053 = vpop.f32.mrf.mxu0
    %v4054 = vadd.f32 %v4040, %v4053
    %v4055 = vpop.f32.mrf.mxu0
    %v4056 = vadd.f32 %v4042, %v4055
    %4057 = vdwg.mxu0
    %4058 = vmatpush.bf16.msra.mxu0 %v2573
    %4059 = vmatpush.bf16.msra.mxu0 %v2569
    %4060 = vmatpush.bf16.msra.mxu0 %v2565
    %4061 = vmatpush.bf16.msra.mxu0 %v2561
    %4062 = vmatpush.bf16.msra.mxu0 %v2557
    %4063 = vmatpush.bf16.msra.mxu0 %v2553
    %4064 = vmatpush.bf16.msra.mxu0 %v2549
    %4065 = vmatpush.bf16.msra.mxu0 %v2545
    %4066 = vmatmul.bf16.gmra.mxu0 %v158
    %v4067 = vpop.f32.mrf.mxu0
    %v4068 = vadd.f32 %v4054, %v4067
    %v4069 = vpop.f32.mrf.mxu0
    %v4070 = vadd.f32 %v4056, %v4069
    %4071 = vdwg.mxu0
    %4072 = vmatpush.bf16.msra.mxu0 %v2605
    %4073 = vmatpush.bf16.msra.mxu0 %v2601
    %4074 = vmatpush.bf16.msra.mxu0 %v2597
    %4075 = vmatpush.bf16.msra.mxu0 %v2593
    %4076 = vmatpush.bf16.msra.mxu0 %v2589
    %4077 = vmatpush.bf16.msra.mxu0 %v2585
    %4078 = vmatpush.bf16.msra.mxu0 %v2581
    %4079 = vmatpush.bf16.msra.mxu0 %v2577
    %4080 = vmatmul.bf16.gmra.mxu0 %v159
    %v4081 = vpop.f32.mrf.mxu0
    %v4082 = vadd.f32 %v4068, %v4081
    %v4083 = vpop.f32.mrf.mxu0
    %v4084 = vadd.f32 %v4070, %v4083
    %4085 = vdwg.mxu0
    %4086 = vmatpush.bf16.msra.mxu0 %v2637
    %4087 = vmatpush.bf16.msra.mxu0 %v2633
    %4088 = vmatpush.bf16.msra.mxu0 %v2629
    %4089 = vmatpush.bf16.msra.mxu0 %v2625
    %4090 = vmatpush.bf16.msra.mxu0 %v2621
    %4091 = vmatpush.bf16.msra.mxu0 %v2617
    %4092 = vmatpush.bf16.msra.mxu0 %v2613
    %4093 = vmatpush.bf16.msra.mxu0 %v2609
    %4094 = vmatmul.bf16.gmra.mxu0 %v160
    %v4095 = vpop.f32.mrf.mxu0
    %v4096 = vadd.f32 %v4082, %v4095
    %v4097 = vpop.f32.mrf.mxu0
    %v4098 = vadd.f32 %v4084, %v4097
    %4099 = vdwg.mxu0
    %4100 = vmatpush.bf16.msra.mxu0 %v2669
    %4101 = vmatpush.bf16.msra.mxu0 %v2665
    %4102 = vmatpush.bf16.msra.mxu0 %v2661
    %4103 = vmatpush.bf16.msra.mxu0 %v2657
    %4104 = vmatpush.bf16.msra.mxu0 %v2653
    %4105 = vmatpush.bf16.msra.mxu0 %v2649
    %4106 = vmatpush.bf16.msra.mxu0 %v2645
    %4107 = vmatpush.bf16.msra.mxu0 %v2641
    %4108 = vmatmul.bf16.gmra.mxu0 %v161
    %v4109 = vpop.f32.mrf.mxu0
    %v4110 = vadd.f32 %v4096, %v4109
    %v4111 = vpop.f32.mrf.mxu0
    %v4112 = vadd.f32 %v4098, %v4111
    %4113 = vdwg.mxu0
    %4114 = vmatpush.bf16.msra.mxu0 %v2701
    %4115 = vmatpush.bf16.msra.mxu0 %v2697
    %4116 = vmatpush.bf16.msra.mxu0 %v2693
    %4117 = vmatpush.bf16.msra.mxu0 %v2689
    %4118 = vmatpush.bf16.msra.mxu0 %v2685
    %4119 = vmatpush.bf16.msra.mxu0 %v2681
    %4120 = vmatpush.bf16.msra.mxu0 %v2677
    %4121 = vmatpush.bf16.msra.mxu0 %v2673
    %4122 = vmatmul.bf16.gmra.mxu0 %v162
    %v4123 = vpop.f32.mrf.mxu0
    %v4124 = vadd.f32 %v4110, %v4123
    %v4125 = vpop.f32.mrf.mxu0
    %v4126 = vadd.f32 %v4112, %v4125
    %4127 = vdwg.mxu0
    %4128 = vmatpush.bf16.msra.mxu0 %v2733
    %4129 = vmatpush.bf16.msra.mxu0 %v2729
    %4130 = vmatpush.bf16.msra.mxu0 %v2725
    %4131 = vmatpush.bf16.msra.mxu0 %v2721
    %4132 = vmatpush.bf16.msra.mxu0 %v2717
    %4133 = vmatpush.bf16.msra.mxu0 %v2713
    %4134 = vmatpush.bf16.msra.mxu0 %v2709
    %4135 = vmatpush.bf16.msra.mxu0 %v2705
    %4136 = vmatmul.bf16.gmra.mxu0 %v163
    %v4137 = vpop.f32.mrf.mxu0
    %v4138 = vadd.f32 %v4124, %v4137
    %v4139 = vpop.f32.mrf.mxu0
    %v4140 = vadd.f32 %v4126, %v4139
    %4141 = vdwg.mxu0
    %v4142 = vmax.f32 %v3466, 0.0
    %v4143 = vmax.f32 %v3690, 0.0
    %v4144 = vmax.f32 %v3914, 0.0
    %v4145 = vmax.f32 %v4138, 0.0
    %v4146 = vmax.f32 %v3468, 0.0
    %v4147 = vmax.f32 %v3692, 0.0
    %v4148 = vmax.f32 %v3916, 0.0
    %v4149 = vmax.f32 %v4140, 0.0
    %v4150 = vpack.c.bf16 %v4146, %v4142
    %v4151 = vpack.c.bf16 %v4147, %v4143
    %v4152 = vpack.c.bf16 %v4148, %v4144
    %v4153 = vpack.c.bf16 %v4149, %v4145
    %v4154 = vld [vmem:[#allocation8] sm:$0xff]
    %v4155 = vld [vmem:[#allocation8 + $0x8] sm:$0xff]
    %v4156 = vld [vmem:[#allocation8 + $0x10] sm:$0xff]
    %v4157 = vld [vmem:[#allocation8 + $0x18] sm:$0xff]
    %v4158 = vld [vmem:[#allocation8 + $0x20] sm:$0xff]
    %v4159 = vld [vmem:[#allocation8 + $0x28] sm:$0xff]
    %v4160 = vld [vmem:[#allocation8 + $0x30] sm:$0xff]
    %v4161 = vld [vmem:[#allocation8 + $0x38] sm:$0xff]
    %v4162 = vld [vmem:[#allocation8 + $0x40] sm:$0xff]
    %v4163 = vld [vmem:[#allocation8 + $0x48] sm:$0xff]
    %v4164 = vld [vmem:[#allocation8 + $0x50] sm:$0xff]
    %v4165 = vld [vmem:[#allocation8 + $0x58] sm:$0xff]
    %v4166 = vld [vmem:[#allocation8 + $0x60] sm:$0xff]
    %v4167 = vld [vmem:[#allocation8 + $0x68] sm:$0xff]
    %v4168 = vld [vmem:[#allocation8 + $0x70] sm:$0xff]
    %v4169 = vld [vmem:[#allocation8 + $0x78] sm:$0xff]
    %v4170 = vld [vmem:[#allocation8 + $0x80] sm:$0xff]
    %v4171 = vld [vmem:[#allocation8 + $0x88] sm:$0xff]
    %v4172 = vld [vmem:[#allocation8 + $0x90] sm:$0xff]
    %v4173 = vld [vmem:[#allocation8 + $0x98] sm:$0xff]
    %v4174 = vld [vmem:[#allocation8 + $0xa0] sm:$0xff]
    %v4175 = vld [vmem:[#allocation8 + $0xa8] sm:$0xff]
    %v4176 = vld [vmem:[#allocation8 + $0xb0] sm:$0xff]
    %v4177 = vld [vmem:[#allocation8 + $0xb8] sm:$0xff]
    %v4178 = vld [vmem:[#allocation8 + $0xc0] sm:$0xff]
    %v4179 = vld [vmem:[#allocation8 + $0xc8] sm:$0xff]
    %v4180 = vld [vmem:[#allocation8 + $0xd0] sm:$0xff]
    %v4181 = vld [vmem:[#allocation8 + $0xd8] sm:$0xff]
    %v4182 = vld [vmem:[#allocation8 + $0xe0] sm:$0xff]
    %v4183 = vld [vmem:[#allocation8 + $0xe8] sm:$0xff]
    %v4184 = vld [vmem:[#allocation8 + $0xf0] sm:$0xff]
    %v4185 = vld [vmem:[#allocation8 + $0xf8] sm:$0xff]
    %v4186 = vld [vmem:[#allocation8 + $0x100] sm:$0xff]
    %v4187 = vld [vmem:[#allocation8 + $0x108] sm:$0xff]
    %v4188 = vld [vmem:[#allocation8 + $0x110] sm:$0xff]
    %v4189 = vld [vmem:[#allocation8 + $0x118] sm:$0xff]
    %v4190 = vld [vmem:[#allocation8 + $0x120] sm:$0xff]
    %v4191 = vld [vmem:[#allocation8 + $0x128] sm:$0xff]
    %v4192 = vld [vmem:[#allocation8 + $0x130] sm:$0xff]
    %v4193 = vld [vmem:[#allocation8 + $0x138] sm:$0xff]
    %v4194 = vld [vmem:[#allocation8 + $0x140] sm:$0xff]
    %v4195 = vld [vmem:[#allocation8 + $0x148] sm:$0xff]
    %v4196 = vld [vmem:[#allocation8 + $0x150] sm:$0xff]
    %v4197 = vld [vmem:[#allocation8 + $0x158] sm:$0xff]
    %v4198 = vld [vmem:[#allocation8 + $0x160] sm:$0xff]
    %v4199 = vld [vmem:[#allocation8 + $0x168] sm:$0xff]
    %v4200 = vld [vmem:[#allocation8 + $0x170] sm:$0xff]
    %v4201 = vld [vmem:[#allocation8 + $0x178] sm:$0xff]
    %v4202 = vld [vmem:[#allocation8 + $0x180] sm:$0xff]
    %v4203 = vld [vmem:[#allocation8 + $0x188] sm:$0xff]
    %v4204 = vld [vmem:[#allocation8 + $0x190] sm:$0xff]
    %v4205 = vld [vmem:[#allocation8 + $0x198] sm:$0xff]
    %v4206 = vld [vmem:[#allocation8 + $0x1a0] sm:$0xff]
    %v4207 = vld [vmem:[#allocation8 + $0x1a8] sm:$0xff]
    %v4208 = vld [vmem:[#allocation8 + $0x1b0] sm:$0xff]
    %v4209 = vld [vmem:[#allocation8 + $0x1b8] sm:$0xff]
    %v4210 = vld [vmem:[#allocation8 + $0x1c0] sm:$0xff]
    %v4211 = vld [vmem:[#allocation8 + $0x1c8] sm:$0xff]
    %v4212 = vld [vmem:[#allocation8 + $0x1d0] sm:$0xff]
    %v4213 = vld [vmem:[#allocation8 + $0x1d8] sm:$0xff]
    %v4214 = vld [vmem:[#allocation8 + $0x1e0] sm:$0xff]
    %v4215 = vld [vmem:[#allocation8 + $0x1e8] sm:$0xff]
    %v4216 = vld [vmem:[#allocation8 + $0x1f0] sm:$0xff]
    %v4217 = vld [vmem:[#allocation8 + $0x1f8] sm:$0xff]
    %v4218 = vld [vmem:[#allocation10] sm:$0x3]
    %v4220 = vperm.slane %v4218, 0
    %v4221 = vperm.slane %v4218, 1
    %v4288 = vunpack.c.l.b16 %v4154
    %v4289 = vunpack.c.h.b16 %v4154
    %v4290 = vunpack.c.l.b16 %v4155
    %v4291 = vunpack.c.h.b16 %v4155
    %v4292 = vunpack.c.l.b16 %v4156
    %v4293 = vunpack.c.h.b16 %v4156
    %v4294 = vunpack.c.l.b16 %v4157
    %v4295 = vunpack.c.h.b16 %v4157
    %v4296 = vunpack.c.l.b16 %v4158
    %v4297 = vunpack.c.h.b16 %v4158
    %v4298 = vunpack.c.l.b16 %v4159
    %v4299 = vunpack.c.h.b16 %v4159
    %v4300 = vunpack.c.l.b16 %v4160
    %v4301 = vunpack.c.h.b16 %v4160
    %v4302 = vunpack.c.l.b16 %v4161
    %v4303 = vunpack.c.h.b16 %v4161
    %v4304 = vunpack.c.l.b16 %v4162
    %v4305 = vunpack.c.h.b16 %v4162
    %v4306 = vunpack.c.l.b16 %v4163
    %v4307 = vunpack.c.h.b16 %v4163
    %v4308 = vunpack.c.l.b16 %v4164
    %v4309 = vunpack.c.h.b16 %v4164
    %v4310 = vunpack.c.l.b16 %v4165
    %v4311 = vunpack.c.h.b16 %v4165
    %v4312 = vunpack.c.l.b16 %v4166
    %v4313 = vunpack.c.h.b16 %v4166
    %v4314 = vunpack.c.l.b16 %v4167
    %v4315 = vunpack.c.h.b16 %v4167
    %v4316 = vunpack.c.l.b16 %v4168
    %v4317 = vunpack.c.h.b16 %v4168
    %v4318 = vunpack.c.l.b16 %v4169
    %v4319 = vunpack.c.h.b16 %v4169
    %v4320 = vunpack.c.l.b16 %v4170
    %v4321 = vunpack.c.h.b16 %v4170
    %v4322 = vunpack.c.l.b16 %v4171
    %v4323 = vunpack.c.h.b16 %v4171
    %v4324 = vunpack.c.l.b16 %v4172
    %v4325 = vunpack.c.h.b16 %v4172
    %v4326 = vunpack.c.l.b16 %v4173
    %v4327 = vunpack.c.h.b16 %v4173
    %v4328 = vunpack.c.l.b16 %v4174
    %v4329 = vunpack.c.h.b16 %v4174
    %v4330 = vunpack.c.l.b16 %v4175
    %v4331 = vunpack.c.h.b16 %v4175
    %v4332 = vunpack.c.l.b16 %v4176
    %v4333 = vunpack.c.h.b16 %v4176
    %v4334 = vunpack.c.l.b16 %v4177
    %v4335 = vunpack.c.h.b16 %v4177
    %v4336 = vunpack.c.l.b16 %v4178
    %v4337 = vunpack.c.h.b16 %v4178
    %v4338 = vunpack.c.l.b16 %v4179
    %v4339 = vunpack.c.h.b16 %v4179
    %v4340 = vunpack.c.l.b16 %v4180
    %v4341 = vunpack.c.h.b16 %v4180
    %v4342 = vunpack.c.l.b16 %v4181
    %v4343 = vunpack.c.h.b16 %v4181
    %v4344 = vunpack.c.l.b16 %v4182
    %v4345 = vunpack.c.h.b16 %v4182
    %v4346 = vunpack.c.l.b16 %v4183
    %v4347 = vunpack.c.h.b16 %v4183
    %v4348 = vunpack.c.l.b16 %v4184
    %v4349 = vunpack.c.h.b16 %v4184
    %v4350 = vunpack.c.l.b16 %v4185
    %v4351 = vunpack.c.h.b16 %v4185
    %v4352 = vunpack.c.l.b16 %v4186
    %v4353 = vunpack.c.h.b16 %v4186
    %v4354 = vunpack.c.l.b16 %v4187
    %v4355 = vunpack.c.h.b16 %v4187
    %v4356 = vunpack.c.l.b16 %v4188
    %v4357 = vunpack.c.h.b16 %v4188
    %v4358 = vunpack.c.l.b16 %v4189
    %v4359 = vunpack.c.h.b16 %v4189
    %v4360 = vunpack.c.l.b16 %v4190
    %v4361 = vunpack.c.h.b16 %v4190
    %v4362 = vunpack.c.l.b16 %v4191
    %v4363 = vunpack.c.h.b16 %v4191
    %v4364 = vunpack.c.l.b16 %v4192
    %v4365 = vunpack.c.h.b16 %v4192
    %v4366 = vunpack.c.l.b16 %v4193
    %v4367 = vunpack.c.h.b16 %v4193
    %v4368 = vunpack.c.l.b16 %v4194
    %v4369 = vunpack.c.h.b16 %v4194
    %v4370 = vunpack.c.l.b16 %v4195
    %v4371 = vunpack.c.h.b16 %v4195
    %v4372 = vunpack.c.l.b16 %v4196
    %v4373 = vunpack.c.h.b16 %v4196
    %v4374 = vunpack.c.l.b16 %v4197
    %v4375 = vunpack.c.h.b16 %v4197
    %v4376 = vunpack.c.l.b16 %v4198
    %v4377 = vunpack.c.h.b16 %v4198
    %v4378 = vunpack.c.l.b16 %v4199
    %v4379 = vunpack.c.h.b16 %v4199
    %v4380 = vunpack.c.l.b16 %v4200
    %v4381 = vunpack.c.h.b16 %v4200
    %v4382 = vunpack.c.l.b16 %v4201
    %v4383 = vunpack.c.h.b16 %v4201
    %v4384 = vunpack.c.l.b16 %v4202
    %v4385 = vunpack.c.h.b16 %v4202
    %v4386 = vunpack.c.l.b16 %v4203
    %v4387 = vunpack.c.h.b16 %v4203
    %v4388 = vunpack.c.l.b16 %v4204
    %v4389 = vunpack.c.h.b16 %v4204
    %v4390 = vunpack.c.l.b16 %v4205
    %v4391 = vunpack.c.h.b16 %v4205
    %v4392 = vunpack.c.l.b16 %v4206
    %v4393 = vunpack.c.h.b16 %v4206
    %v4394 = vunpack.c.l.b16 %v4207
    %v4395 = vunpack.c.h.b16 %v4207
    %v4396 = vunpack.c.l.b16 %v4208
    %v4397 = vunpack.c.h.b16 %v4208
    %v4398 = vunpack.c.l.b16 %v4209
    %v4399 = vunpack.c.h.b16 %v4209
    %v4400 = vunpack.c.l.b16 %v4210
    %v4401 = vunpack.c.h.b16 %v4210
    %v4402 = vunpack.c.l.b16 %v4211
    %v4403 = vunpack.c.h.b16 %v4211
    %v4404 = vunpack.c.l.b16 %v4212
    %v4405 = vunpack.c.h.b16 %v4212
    %v4406 = vunpack.c.l.b16 %v4213
    %v4407 = vunpack.c.h.b16 %v4213
    %v4408 = vunpack.c.l.b16 %v4214
    %v4409 = vunpack.c.h.b16 %v4214
    %v4410 = vunpack.c.l.b16 %v4215
    %v4411 = vunpack.c.h.b16 %v4215
    %v4412 = vunpack.c.l.b16 %v4216
    %v4413 = vunpack.c.h.b16 %v4216
    %v4414 = vunpack.c.l.b16 %v4217
    %v4415 = vunpack.c.h.b16 %v4217
    %v4416 = vpack.c.b16 %v4290, %v4288
    %v4417 = vpack.c.b16 %v4291, %v4289
    %v4418 = vpack.c.b16 %v4294, %v4292
    %v4419 = vpack.c.b16 %v4295, %v4293
    %v4420 = vpack.c.b16 %v4298, %v4296
    %v4421 = vpack.c.b16 %v4299, %v4297
    %v4422 = vpack.c.b16 %v4302, %v4300
    %v4423 = vpack.c.b16 %v4303, %v4301
    %v4424 = vpack.c.b16 %v4306, %v4304
    %v4425 = vpack.c.b16 %v4307, %v4305
    %v4426 = vpack.c.b16 %v4310, %v4308
    %v4427 = vpack.c.b16 %v4311, %v4309
    %v4428 = vpack.c.b16 %v4314, %v4312
    %v4429 = vpack.c.b16 %v4315, %v4313
    %v4430 = vpack.c.b16 %v4318, %v4316
    %v4431 = vpack.c.b16 %v4319, %v4317
    %v4432 = vpack.c.b16 %v4322, %v4320
    %v4433 = vpack.c.b16 %v4323, %v4321
    %v4434 = vpack.c.b16 %v4326, %v4324
    %v4435 = vpack.c.b16 %v4327, %v4325
    %v4436 = vpack.c.b16 %v4330, %v4328
    %v4437 = vpack.c.b16 %v4331, %v4329
    %v4438 = vpack.c.b16 %v4334, %v4332
    %v4439 = vpack.c.b16 %v4335, %v4333
    %v4440 = vpack.c.b16 %v4338, %v4336
    %v4441 = vpack.c.b16 %v4339, %v4337
    %v4442 = vpack.c.b16 %v4342, %v4340
    %v4443 = vpack.c.b16 %v4343, %v4341
    %v4444 = vpack.c.b16 %v4346, %v4344
    %v4445 = vpack.c.b16 %v4347, %v4345
    %v4446 = vpack.c.b16 %v4350, %v4348
    %v4447 = vpack.c.b16 %v4351, %v4349
    %v4448 = vpack.c.b16 %v4354, %v4352
    %v4449 = vpack.c.b16 %v4355, %v4353
    %v4450 = vpack.c.b16 %v4358, %v4356
    %v4451 = vpack.c.b16 %v4359, %v4357
    %v4452 = vpack.c.b16 %v4362, %v4360
    %v4453 = vpack.c.b16 %v4363, %v4361
    %v4454 = vpack.c.b16 %v4366, %v4364
    %v4455 = vpack.c.b16 %v4367, %v4365
    %v4456 = vpack.c.b16 %v4370, %v4368
    %v4457 = vpack.c.b16 %v4371, %v4369
    %v4458 = vpack.c.b16 %v4374, %v4372
    %v4459 = vpack.c.b16 %v4375, %v4373
    %v4460 = vpack.c.b16 %v4378, %v4376
    %v4461 = vpack.c.b16 %v4379, %v4377
    %v4462 = vpack.c.b16 %v4382, %v4380
    %v4463 = vpack.c.b16 %v4383, %v4381
    %v4464 = vpack.c.b16 %v4386, %v4384
    %v4465 = vpack.c.b16 %v4387, %v4385
    %v4466 = vpack.c.b16 %v4390, %v4388
    %v4467 = vpack.c.b16 %v4391, %v4389
    %v4468 = vpack.c.b16 %v4394, %v4392
    %v4469 = vpack.c.b16 %v4395, %v4393
    %v4470 = vpack.c.b16 %v4398, %v4396
    %v4471 = vpack.c.b16 %v4399, %v4397
    %v4472 = vpack.c.b16 %v4402, %v4400
    %v4473 = vpack.c.b16 %v4403, %v4401
    %v4474 = vpack.c.b16 %v4406, %v4404
    %v4475 = vpack.c.b16 %v4407, %v4405
    %v4476 = vpack.c.b16 %v4410, %v4408
    %v4477 = vpack.c.b16 %v4411, %v4409
    %v4478 = vpack.c.b16 %v4414, %v4412
    %v4479 = vpack.c.b16 %v4415, %v4413
    %4544 = vmatpush.bf16.msra.mxu0 %v4430
    %4545 = vmatpush.bf16.msra.mxu0 %v4428
    %4546 = vmatpush.bf16.msra.mxu0 %v4426
    %4547 = vmatpush.bf16.msra.mxu0 %v4424
    %4548 = vmatpush.bf16.msra.mxu0 %v4422
    %4549 = vmatpush.bf16.msra.mxu0 %v4420
    %4550 = vmatpush.bf16.msra.mxu0 %v4418
    %4551 = vmatpush.bf16.msra.mxu0 %v4416
    %4552 = vmatmul.bf16.gmra.mxu0 %v4150
    %v4553 = vpop.f32.mrf.mxu0
    %v4554 = vadd.f32 %v4220, %v4553
    %v4555 = vpop.f32.mrf.mxu0
    %v4556 = vadd.f32 %v4220, %v4555
    %4557 = vdwg.mxu0
    %4558 = vmatpush.bf16.msra.mxu0 %v4446
    %4559 = vmatpush.bf16.msra.mxu0 %v4444
    %4560 = vmatpush.bf16.msra.mxu0 %v4442
    %4561 = vmatpush.bf16.msra.mxu0 %v4440
    %4562 = vmatpush.bf16.msra.mxu0 %v4438
    %4563 = vmatpush.bf16.msra.mxu0 %v4436
    %4564 = vmatpush.bf16.msra.mxu0 %v4434
    %4565 = vmatpush.bf16.msra.mxu0 %v4432
    %4566 = vmatmul.bf16.gmra.mxu0 %v4151
    %v4567 = vpop.f32.mrf.mxu0
    %v4568 = vadd.f32 %v4554, %v4567
    %v4569 = vpop.f32.mrf.mxu0
    %v4570 = vadd.f32 %v4556, %v4569
    %4571 = vdwg.mxu0
    %4572 = vmatpush.bf16.msra.mxu0 %v4462
    %4573 = vmatpush.bf16.msra.mxu0 %v4460
    %4574 = vmatpush.bf16.msra.mxu0 %v4458
    %4575 = vmatpush.bf16.msra.mxu0 %v4456
    %4576 = vmatpush.bf16.msra.mxu0 %v4454
    %4577 = vmatpush.bf16.msra.mxu0 %v4452
    %4578 = vmatpush.bf16.msra.mxu0 %v4450
    %4579 = vmatpush.bf16.msra.mxu0 %v4448
    %4580 = vmatmul.bf16.gmra.mxu0 %v4152
    %v4581 = vpop.f32.mrf.mxu0
    %v4582 = vadd.f32 %v4568, %v4581
    %v4583 = vpop.f32.mrf.mxu0
    %v4584 = vadd.f32 %v4570, %v4583
    %4585 = vdwg.mxu0
    %4586 = vmatpush.bf16.msra.mxu0 %v4478
    %4587 = vmatpush.bf16.msra.mxu0 %v4476
    %4588 = vmatpush.bf16.msra.mxu0 %v4474
    %4589 = vmatpush.bf16.msra.mxu0 %v4472
    %4590 = vmatpush.bf16.msra.mxu0 %v4470
    %4591 = vmatpush.bf16.msra.mxu0 %v4468
    %4592 = vmatpush.bf16.msra.mxu0 %v4466
    %4593 = vmatpush.bf16.msra.mxu0 %v4464
    %4594 = vmatmul.bf16.gmra.mxu0 %v4153
    %v4595 = vpop.f32.mrf.mxu0
    %v4596 = vadd.f32 %v4582, %v4595
    %v4597 = vpop.f32.mrf.mxu0
    %v4598 = vadd.f32 %v4584, %v4597
    %4599 = vdwg.mxu0
    %4600 = vmatpush.bf16.msra.mxu0 %v4431
    %4601 = vmatpush.bf16.msra.mxu0 %v4429
    %4602 = vmatpush.bf16.msra.mxu0 %v4427
    %4603 = vmatpush.bf16.msra.mxu0 %v4425
    %4604 = vmatpush.bf16.msra.mxu0 %v4423
    %4605 = vmatpush.bf16.msra.mxu0 %v4421
    %4606 = vmatpush.bf16.msra.mxu0 %v4419
    %4607 = vmatpush.bf16.msra.mxu0 %v4417
    %4608 = vmatmul.bf16.gmra.mxu0 %v4150
    %v4609 = vpop.f32.mrf.mxu0
    %v4610 = vadd.f32 %v4221, %v4609
    %v4611 = vpop.f32.mrf.mxu0
    %v4612 = vadd.f32 %v4221, %v4611
    %4613 = vdwg.mxu0
    %4614 = vmatpush.bf16.msra.mxu0 %v4447
    %4615 = vmatpush.bf16.msra.mxu0 %v4445
    %4616 = vmatpush.bf16.msra.mxu0 %v4443
    %4617 = vmatpush.bf16.msra.mxu0 %v4441
    %4618 = vmatpush.bf16.msra.mxu0 %v4439
    %4619 = vmatpush.bf16.msra.mxu0 %v4437
    %4620 = vmatpush.bf16.msra.mxu0 %v4435
    %4621 = vmatpush.bf16.msra.mxu0 %v4433
    %4622 = vmatmul.bf16.gmra.mxu0 %v4151
    %v4623 = vpop.f32.mrf.mxu0
    %v4624 = vadd.f32 %v4610, %v4623
    %v4625 = vpop.f32.mrf.mxu0
    %v4626 = vadd.f32 %v4612, %v4625
    %4627 = vdwg.mxu0
    %4628 = vmatpush.bf16.msra.mxu0 %v4463
    %4629 = vmatpush.bf16.msra.mxu0 %v4461
    %4630 = vmatpush.bf16.msra.mxu0 %v4459
    %4631 = vmatpush.bf16.msra.mxu0 %v4457
    %4632 = vmatpush.bf16.msra.mxu0 %v4455
    %4633 = vmatpush.bf16.msra.mxu0 %v4453
    %4634 = vmatpush.bf16.msra.mxu0 %v4451
    %4635 = vmatpush.bf16.msra.mxu0 %v4449
    %4636 = vmatmul.bf16.gmra.mxu0 %v4152
    %v4637 = vpop.f32.mrf.mxu0
    %v4638 = vadd.f32 %v4624, %v4637
    %v4639 = vpop.f32.mrf.mxu0
    %v4640 = vadd.f32 %v4626, %v4639
    %4641 = vdwg.mxu0
    %4642 = vmatpush.bf16.msra.mxu0 %v4479
    %4643 = vmatpush.bf16.msra.mxu0 %v4477
    %4644 = vmatpush.bf16.msra.mxu0 %v4475
    %4645 = vmatpush.bf16.msra.mxu0 %v4473
    %4646 = vmatpush.bf16.msra.mxu0 %v4471
    %4647 = vmatpush.bf16.msra.mxu0 %v4469
    %4648 = vmatpush.bf16.msra.mxu0 %v4467
    %4649 = vmatpush.bf16.msra.mxu0 %v4465
    %4650 = vmatmul.bf16.gmra.mxu0 %v4153
    %v4651 = vpop.f32.mrf.mxu0
    %v4652 = vadd.f32 %v4638, %v4651
    %v4653 = vpop.f32.mrf.mxu0
    %v4654 = vadd.f32 %v4640, %v4653
    %4655 = vdwg.mxu0
    %v4656 = vmax.f32 %v4596, 0.0
    %v4657 = vmax.f32 %v4652, 0.0
    %v4658 = vmax.f32 %v4598, 0.0
    %v4659 = vmax.f32 %v4654, 0.0
    %v4660 = vld [vmem:[#allocation11] sm:$0xff]
    %v4661 = vpack.c.bf16 %v4658, %v4656
    %v4662 = vpack.c.bf16 %v4659, %v4657
    %v4663 = vld [vmem:[%s6] sm:$0xff]
    %4665 = vset.pattern.permute.xlu0 0
    %4666 = vperm.xlu0 %4665, %v4663
    %v4667 = vpop.permute.xlu0 %4666
    %v4670 = vunpack.c.l.b16 %v4660
    %v4671 = vunpack.c.h.b16 %v4660
    %v4672 = vpack.c.b16 %v4670, %v4670
    %v4673 = vpack.c.b16 %v4671, %v4671
    %4676 = vmatpush.bf16.xpose.msra.mxu0 0
    %4677 = vmatpush.bf16.xpose.msra.mxu0 0
    %4678 = vmatpush.bf16.xpose.msra.mxu0 0
    %4679 = vmatpush.bf16.xpose.msra.mxu0 0
    %4680 = vmatpush.bf16.xpose.msra.mxu0 0
    %4681 = vmatpush.bf16.xpose.msra.mxu0 0
    %4682 = vmatpush.bf16.xpose.msra.mxu0 0
    %4683 = vmatpush.bf16.xpose.msra.mxu0 %v4661
    %4684 = vmatmul.bf16.gmra.mxu0 %v4672
    %v4685 = vpop.f32.mrf.mxu0
    %v4686 = vadd.f32 %v4667, %v4685
    %v4687 = vpop.f32.mrf.mxu0
    %4688 = vdwg.mxu0
    %4689 = vmatpush.bf16.xpose.msra.mxu0 0
    %4690 = vmatpush.bf16.xpose.msra.mxu0 0
    %4691 = vmatpush.bf16.xpose.msra.mxu0 0
    %4692 = vmatpush.bf16.xpose.msra.mxu0 0
    %4693 = vmatpush.bf16.xpose.msra.mxu0 0
    %4694 = vmatpush.bf16.xpose.msra.mxu0 0
    %4695 = vmatpush.bf16.xpose.msra.mxu0 0
    %4696 = vmatpush.bf16.xpose.msra.mxu0 %v4662
    %4697 = vmatmul.bf16.gmra.mxu0 %v4673
    %v4698 = vpop.f32.mrf.mxu0
    %v4699 = vadd.f32 %v4686, %v4698
    %v4700 = vpop.f32.mrf.mxu0
    %4701 = vdwg.mxu0
    %v4702 = vxor.u32 %v4699, 2147483648
    %v4703 = vmul.f32 %v4702, 1.442695
    %v4704 = vpow.pop %v4703
    %v4705 = vadd.f32 %v4704, 1.0
    %v4706 = vrcp.pop %v4705
    %v4707 = vmul.f32 %v4705, %v4706
    %v4708 = vsub.f32 1.0, %v4707
    %v4709 = vmul.f32 %v4706, %v4708
    %v4710 = vadd.f32 %v4706, %v4709
    %vm4711 = vweird.f32 %v4705
    %vm4712 = vweird.f32 %v4706
    %vm4713 = vmor %vm4711, %vm4712
    %v4714 = vsel %vm4713, %v4706, %v4710
    %v4715 = vand.u32 2147483647, %v4705
    %vm4716 = vcmp.eq.f32.partialorder %v4715, 8.507059e+37
    %v4717 = vand.u32 %v4705, 2147483648
    %v4718 = vor.u32 1.1754944e-38, %v4717
    %v4719 = vsel %vm4716, %v4718, %v4714
    %v4720 = vmul.f32 1.0, %v4719
    %vm4721 = vcmask 130048
    %4722 = vst.msk [vmem:[#allocation13] sm:$0xff] %vm4721, %v4720
    // Predicated region
    $region54: #{tpu_custom_call.1} parent=1 // pred_check
      _
    $region55: #{tpu_custom_call.1} parent=1 // pred_check_branch
      %4724 = sbr.rel (0) target = $region57
    $region56: #{tpu_custom_call.1} parent=1 // pred_region
      %4726 = vsyncadd [#allocation4], 0
      %s4728 = sshll.u32 [#allocation13], 4
      %s4729 = int_to_ptr.vmem [resolvable:$true] %s4728
      %s4730 = sshll.u32 %s7, 4
      %s4731 = int_to_ptr.hbm [resolvable:$true] %s4730
      %4733 = dma.vmem_to_hbm [thread:$0]  %s4729, 128, %s4731, [#allocation4]
    $region57: #{tpu_custom_call.1} parent=1 // pred_fallthru
      _
    // Predicated region
    $region58: #{tpu_custom_call.1} parent=1 // pred_check
      _
    $region59: #{tpu_custom_call.1} parent=1 // pred_check_branch
      %4735 = sbr.rel (0) target = $region61
    $region60: #{tpu_custom_call.1} parent=1 // pred_region
      %4737 = dma.done [#allocation4], 128
    $region61: #{tpu_custom_call.1} parent=1 // pred_fallthru
      _
    %4738 = vsyncpa [#allocation3], 1
    %4739 = vsyncpa [#allocation6], 1
    %4740 = vsyncpa [#allocation9], 1
    %4741 = vsyncpa [#allocation12], 1
    %4742 = vsyncpa [#allocation4], 1

</llo_original>
